<compile_context>
chip_gen: v7x
topology: tpu7x:2x2x1
jax: 0.10.0
libtpu: 0.0.40
codegen_flags: <defaults>
</compile_context>

<pallas_src>
import functools

import jax
import jax.numpy as jnp
import numpy as np
from jax.experimental import pallas as pl
from jax.experimental.pallas import tpu as pltpu


# ----------------------------- Pallas kernel ------------------------------- #

def _unet_fused_kernel(x_ref, w1_ref, b1_ref, w2_ref, b2_ref, w3t_ref, b3_ref,
                       o_ref, h_ref, im_ref, *, H, W, Wp):
    """Fused Conv3x3+ReLU -> Conv3x3+ReLU -> Conv1x1 for one batch element.

    x_ref  : (rows, 9*Cin)       bf16  wrapper-built im2col of padded input
    w1_ref : (9*Cin, Cmid)       bf16
    b1_ref : (1, Cmid)           f32
    w2_ref : (9*Cmid, Cmid)      bf16
    b2_ref : (1, Cmid)           f32
    w3t_ref: (Cout, Cmid)        bf16  1x1 conv weight, transposed
    b3_ref : (Cout, 1)           f32
    o_ref  : (Cout, rows)        f32   lane-dense transposed output (NCHW order)
    h_ref  : ((H+2)*Wp + 2, Cmid) bf16 scratch: zero-padded flat conv1 output
    im_ref : (rows, 9*Cmid)      bf16 scratch: conv2 im2col buffer
    """
    rows = H * Wp
    Cmid = h_ref.shape[-1]
    lead = Wp + 1                      # flat row of valid pixel (0,0) in h_ref

    # ---- conv1: ONE (rows, 9*Cin) @ (9*Cin, Cmid) matmul + bias + ReLU ----- #
    h1 = jnp.dot(x_ref[...], w1_ref[...], preferred_element_type=jnp.float32)
    h1 = jnp.maximum(h1 + b1_ref[...], 0.0)

    # Zero the wrap-around garbage columns (j >= W of each flat row): they land
    # exactly on conv2's zero-pad positions and must stay 0.
    col = jax.lax.broadcasted_iota(jnp.int32, (rows, 1), 0) % Wp
    h1 = jnp.where(col < W, h1, 0.0).astype(jnp.bfloat16)

    # ---- stage conv1 output as a zero-padded flat image (bf16, VMEM) ------- #
    # Re-zero the small pad regions every step; the valid-region store below
    # never touches them, and a first-step-only init is unsafe when the
    # "parallel" grid is split across TensorCores (per-core scratch).
    h_ref[pl.ds(0, lead), :] = jnp.zeros((lead, Cmid), jnp.bfloat16)
    h_ref[pl.ds(lead + rows, Wp + 1), :] = jnp.zeros((Wp + 1, Cmid),
                                                     jnp.bfloat16)
    h_ref[pl.ds(lead, rows), :] = h1

    # ---- conv2 im2col: 9 row-shifted slices side-by-side -> (rows, 9*Cmid) - #
    for t in range(9):                 # static unroll
        kh, kw = divmod(t, 3)
        off = kh * Wp + kw             # kh stride is sublane-aligned (Wp%8==0)
        im_ref[:, t * Cmid:(t + 1) * Cmid] = h_ref[pl.ds(off, rows), :]

    # ---- conv2: ONE K = 9*Cmid = 576 matmul + bias + ReLU ------------------ #
    h2 = jnp.dot(im_ref[...], w2_ref[...], preferred_element_type=jnp.float32)
    h2 = jnp.maximum(h2 + b2_ref[...], 0.0)

    # ---- conv3: 1x1, transposed so the store is lane-dense & NCHW-ordered -- #
    y = jax.lax.dot_general(
        w3t_ref[...], h2.astype(jnp.bfloat16),
        dimension_numbers=(((1,), (1,)), ((), ())),
        preferred_element_type=jnp.float32)                      # (Cout, rows)
    o_ref[...] = y + b3_ref[...]


# ------------------------------ JAX wrapper -------------------------------- #

def unet_forward_impl(x_nchw, params):
    N, Cin, H, W = x_nchw.shape
    Cmid = params["w1"].shape[-1]
    Cout = params["w3"].shape[-1]

    Wp = -(-(W + 2) // 8) * 8           # flat row stride, multiple of 8
    rows = H * Wp                       # flat output rows per image (384 @16x16)
    R_pad = (H + 2) * Wp + 2            # padded flat image rows (+2 tap slack)
    K1 = 9 * Cin
    K2 = 9 * Cmid

    # ---- conv1 im2col in XLA (cheap: Cin is tiny) -------------------------- #
    x = jnp.transpose(x_nchw, (0, 2, 3, 1))                        # NHWC
    xp = jnp.pad(x, ((0, 0), (1, 1), (1, Wp - W - 1), (0, 0)))     # (N,H+2,Wp,C)
    xf = jnp.pad(xp.reshape(N, (H + 2) * Wp, Cin), ((0, 0), (0, 2), (0, 0)))
    taps = [xf[:, kh * Wp + kw: kh * Wp + kw + rows, :]
            for kh in range(3) for kw in range(3)]
    x_im2col = jnp.concatenate(taps, axis=-1).astype(jnp.bfloat16)  # (N,rows,36)

    # ---- weights: flat tap-major K layouts, bf16 for the MXU --------------- #
    w1 = params["w1"].reshape(K1, Cmid).astype(jnp.bfloat16)       # (36, Cmid)
    w2 = params["w2"].reshape(K2, Cmid).astype(jnp.bfloat16)       # (576, Cmid)
    w3t = params["w3"].T.astype(jnp.bfloat16)                      # (Cout, Cmid)
    b1 = params["b1"].reshape(1, Cmid)
    b2 = params["b2"].reshape(1, Cmid)
    b3 = params["b3"].reshape(Cout, 1)

    kernel = functools.partial(_unet_fused_kernel, H=H, W=W, Wp=Wp)
    out = pl.pallas_call(
        kernel,
        out_shape=jax.ShapeDtypeStruct((N, Cout, rows), jnp.float32),
        grid=(N,),
        in_specs=[
            pl.BlockSpec((None, rows, K1), lambda n: (n, 0, 0)),
            pl.BlockSpec((K1, Cmid), lambda n: (0, 0)),
            pl.BlockSpec((1, Cmid), lambda n: (0, 0)),
            pl.BlockSpec((K2, Cmid), lambda n: (0, 0)),
            pl.BlockSpec((1, Cmid), lambda n: (0, 0)),
            pl.BlockSpec((Cout, Cmid), lambda n: (0, 0)),
            pl.BlockSpec((Cout, 1), lambda n: (0, 0)),
        ],
        out_specs=pl.BlockSpec((None, Cout, rows), lambda n: (n, 0, 0)),
        scratch_shapes=[pltpu.VMEM((R_pad, Cmid), jnp.bfloat16),
                        pltpu.VMEM((rows, K2), jnp.bfloat16)],
        compiler_params=pltpu.CompilerParams(
            dimension_semantics=("parallel",)),
    )(x_im2col, w1, b1, w2, b2, w3t, b3)

    # Output is already NCHW-ordered (Cout major, flat rows lane-dense);
    # just strip the Wp - W padded columns per row.
    return out.reshape(N, Cout, H, Wp)[:, :, :, :W]


unet_forward = jax.jit(unet_forward_impl)


# --------------------------- params & reference ---------------------------- #

def init_params(key, in_channels, out_channels):
    """Deterministic synthetic init (conv weights stored as HWIO / IO)."""
    ks = jax.random.split(key, 6)

    def winit(k, shape, fan_in):
        return jax.random.normal(k, shape, jnp.float32) / np.sqrt(fan_in)

    return dict(
        w1=winit(ks[0], (3, 3, in_channels, 64), 9 * in_channels),
        b1=winit(ks[1], (1, 64), 64),
        w2=winit(ks[2], (3, 3, 64, 64), 9 * 64),
        b2=winit(ks[3], (1, 64), 64),
        w3=winit(ks[4], (64, out_channels), 64),
        b3=winit(ks[5], (1, out_channels), out_channels),
    )


def unet_reference(x_nchw, params):
    """Pure-JAX f32 reference (lax.conv) used only for correctness checking."""
    x = jnp.transpose(x_nchw, (0, 2, 3, 1))

    def conv(h, w, b):
        y = jax.lax.conv_general_dilated(
            h, w, (1, 1), "SAME",
            dimension_numbers=("NHWC", "HWIO", "NHWC"),
            precision=jax.lax.Precision.HIGHEST)
        return y + b.reshape(1, 1, 1, -1)

    h = jax.nn.relu(conv(x, params["w1"], params["b1"]))
    h = jax.nn.relu(conv(h, params["w2"], params["b2"]))
    w3 = params["w3"].reshape(1, 1, params["w3"].shape[0], -1)
    y = conv(h, w3, params["b3"])
    return jnp.transpose(y, (0, 3, 1, 2))


if __name__ == "__main__":
    key = jax.random.PRNGKey(0)
    kx, kp = jax.random.split(key)

    N, Cin, H, W, Cout = 2, 4, 16, 16, 3
    x = jax.random.normal(kx, (N, Cin, H, W), jnp.float32)   # NCHW like PyTorch
    params = init_params(kp, Cin, Cout)

    y = unet_forward(x, params)
    y = jax.block_until_ready(y)
    assert y.shape == (N, Cout, H, W)

    # Tolerance accommodates bf16 MXU operands (f32 accumulation) vs f32 ref.
    y_ref = unet_reference(x, params)
    np.testing.assert_allclose(np.asarray(y), np.asarray(y_ref),
                               rtol=3e-2, atol=3e-2)

    print("KERNEL_OK")
</pallas_src>

<mosaic_0001>
module attributes {stable_mosaic.version = 11 : i64} {
  func.func @_unet_fused_kernel(%arg0: i32, %arg1: memref<1x384x36xbf16, #tpu.memory_space<vmem>>, %arg2: memref<36x64xbf16, #tpu.memory_space<vmem>>, %arg3: memref<1x64xf32, #tpu.memory_space<vmem>>, %arg4: memref<576x64xbf16, #tpu.memory_space<vmem>>, %arg5: memref<1x64xf32, #tpu.memory_space<vmem>>, %arg6: memref<3x64xbf16, #tpu.memory_space<vmem>>, %arg7: memref<3x1xf32, #tpu.memory_space<vmem>>, %arg8: memref<1x3x384xf32, #tpu.memory_space<vmem>>, %arg9: memref<434x64xbf16, #tpu.memory_space<vmem>>, %arg10: memref<384x576xbf16, #tpu.memory_space<vmem>>) attributes {dimension_semantics = [#tpu.dimension_semantics<parallel>], iteration_bounds = array<i64: 2>, scalar_prefetch = 0 : i64, scratch_operands = 2 : i64, tpu.core_type = #tpu.core_type<tc>, window_params = [{transform_indices = @transform_0, window_bounds = array<i64: 1, 384, 36>}, {pipeline_mode = #tpu.pipeline_mode<synchronous>, transform_indices = @transform_1, window_bounds = array<i64: 36, 64>}, {pipeline_mode = #tpu.pipeline_mode<synchronous>, transform_indices = @transform_2, window_bounds = array<i64: 1, 64>}, {pipeline_mode = #tpu.pipeline_mode<synchronous>, transform_indices = @transform_3, window_bounds = array<i64: 576, 64>}, {pipeline_mode = #tpu.pipeline_mode<synchronous>, transform_indices = @transform_4, window_bounds = array<i64: 1, 64>}, {pipeline_mode = #tpu.pipeline_mode<synchronous>, transform_indices = @transform_5, window_bounds = array<i64: 3, 64>}, {pipeline_mode = #tpu.pipeline_mode<synchronous>, transform_indices = @transform_6, window_bounds = array<i64: 3, 1>}, {transform_indices = @transform_7, window_bounds = array<i64: 1, 3, 384>}]} {
    %c0 = arith.constant 0 : index
    %c0_0 = arith.constant 0 : index
    %c0_1 = arith.constant 0 : index
    %0 = vector.load %arg1[%c0, %c0_0, %c0_1] : memref<1x384x36xbf16, #tpu.memory_space<vmem>>, vector<1x384x36xbf16>
    %1 = vector.shape_cast %0 : vector<1x384x36xbf16> to vector<384x36xbf16>
    %c0_2 = arith.constant 0 : index
    %c0_3 = arith.constant 0 : index
    %2 = vector.load %arg2[%c0_2, %c0_3] : memref<36x64xbf16, #tpu.memory_space<vmem>>, vector<36x64xbf16>
    %cst = arith.constant dense<0.000000e+00> : vector<384x64xf32>
    %3 = tpu.matmul %1, %2, %cst {dimension_numbers = #tpu.dot_dimension_numbers<[1], [0], [0], [1], [0, 0, 1, 1], [], []>} : vector<384x36xbf16>, vector<36x64xbf16>, vector<384x64xf32> -> vector<384x64xf32>
    %c0_4 = arith.constant 0 : index
    %c0_5 = arith.constant 0 : index
    %4 = vector.load %arg3[%c0_4, %c0_5] : memref<1x64xf32, #tpu.memory_space<vmem>>, vector<1x64xf32>
    %5 = vector.broadcast %4 : vector<1x64xf32> to vector<384x64xf32>
    %6 = arith.addf %3, %5 : vector<384x64xf32>
    %cst_6 = arith.constant 0.000000e+00 : f32
    %7 = vector.broadcast %cst_6 : f32 to vector<384x64xf32>
    %8 = arith.maximumf %6, %7 : vector<384x64xf32>
    %9 = tpu.iota {dimensions = array<i32: 0>} : vector<384x1xi32>
    %c24_i32 = arith.constant 24 : i32
    %c0_i32 = arith.constant 0 : i32
    %10 = arith.cmpi eq, %c24_i32, %c0_i32 : i32
    %c1_i32 = arith.constant 1 : i32
    %11 = arith.select %10, %c1_i32, %c24_i32 : i32
    %12 = vector.broadcast %11 : i32 to vector<384x1xi32>
    %13 = arith.remsi %9, %12 : vector<384x1xi32>
    %c0_i32_7 = arith.constant 0 : i32
    %14 = vector.broadcast %c0_i32_7 : i32 to vector<384x1xi32>
    %15 = arith.cmpi ne, %13, %14 : vector<384x1xi32>
    %c0_i32_8 = arith.constant 0 : i32
    %16 = vector.broadcast %c0_i32_8 : i32 to vector<384x1xi32>
    %17 = arith.cmpi slt, %13, %16 : vector<384x1xi32>
    %c0_i32_9 = arith.constant 0 : i32
    %18 = arith.cmpi slt, %11, %c0_i32_9 : i32
    %19 = vector.broadcast %18 : i1 to vector<384x1xi1>
    %20 = vector.broadcast %19 : vector<384x1xi1> to vector<384x1xi1>
    %21 = arith.xori %17, %20 : vector<384x1xi1>
    %22 = arith.andi %21, %15 : vector<384x1xi1>
    %23 = vector.broadcast %11 : i32 to vector<384x1xi32>
    %24 = arith.addi %13, %23 : vector<384x1xi32>
    %25 = arith.select %22, %24, %13 : vector<384x1xi1>, vector<384x1xi32>
    %c16_i32 = arith.constant 16 : i32
    %26 = vector.broadcast %c16_i32 : i32 to vector<384x1xi32>
    %27 = arith.cmpi slt, %25, %26 : vector<384x1xi32>
    %cst_10 = arith.constant 0.000000e+00 : f32
    %28 = vector.shape_cast %27 : vector<384x1xi1> to vector<384x1xi1>
    %29 = vector.broadcast %28 : vector<384x1xi1> to vector<384x64xi1>
    %30 = vector.broadcast %cst_10 : f32 to vector<384x64xf32>
    %31 = arith.select %29, %8, %30 : vector<384x64xi1>, vector<384x64xf32>
    %32 = arith.truncf %31 : vector<384x64xf32> to vector<384x64xbf16>
    %cst_11 = arith.constant 0.000000e+00 : bf16
    %33 = vector.broadcast %cst_11 : bf16 to vector<25x64xbf16>
    %c0_12 = arith.constant 0 : index
    %c0_13 = arith.constant 0 : index
    %34 = vector.load %arg9[%c0_12, %c0_13] : memref<434x64xbf16, #tpu.memory_space<vmem>>, vector<25x64xbf16>
    tpu.vector_store %arg9[%c0_12, %c0_13], %33 {strides = array<i32>} : memref<434x64xbf16, #tpu.memory_space<vmem>>, vector<25x64xbf16>,
    %cst_14 = arith.constant 0.000000e+00 : bf16
    %35 = vector.broadcast %cst_14 : bf16 to vector<25x64xbf16>
    %c409 = arith.constant 409 : index
    %c0_15 = arith.constant 0 : index
    %36 = vector.load %arg9[%c409, %c0_15] : memref<434x64xbf16, #tpu.memory_space<vmem>>, vector<25x64xbf16>
    tpu.vector_store %arg9[%c409, %c0_15], %35 {strides = array<i32>} : memref<434x64xbf16, #tpu.memory_space<vmem>>, vector<25x64xbf16>,
    %c25 = arith.constant 25 : index
    %c0_16 = arith.constant 0 : index
    %37 = vector.load %arg9[%c25, %c0_16] : memref<434x64xbf16, #tpu.memory_space<vmem>>, vector<384x64xbf16>
    tpu.vector_store %arg9[%c25, %c0_16], %32 {strides = array<i32>} : memref<434x64xbf16, #tpu.memory_space<vmem>>, vector<384x64xbf16>,
    %c0_17 = arith.constant 0 : index
    %c0_18 = arith.constant 0 : index
    %38 = vector.load %arg9[%c0_17, %c0_18] : memref<434x64xbf16, #tpu.memory_space<vmem>>, vector<384x64xbf16>
    %c0_19 = arith.constant 0 : index
    %c0_20 = arith.constant 0 : index
    %39 = vector.load %arg10[%c0_19, %c0_20] : memref<384x576xbf16, #tpu.memory_space<vmem>>, vector<384x64xbf16>
    tpu.vector_store %arg10[%c0_19, %c0_20], %38 {strides = array<i32>} : memref<384x576xbf16, #tpu.memory_space<vmem>>, vector<384x64xbf16>,
    %c1 = arith.constant 1 : index
    %c0_21 = arith.constant 0 : index
    %40 = vector.load %arg9[%c1, %c0_21] : memref<434x64xbf16, #tpu.memory_space<vmem>>, vector<384x64xbf16>
    %c0_22 = arith.constant 0 : index
    %c64 = arith.constant 64 : index
    %41 = vector.load %arg10[%c0_22, %c64] : memref<384x576xbf16, #tpu.memory_space<vmem>>, vector<384x64xbf16>
    tpu.vector_store %arg10[%c0_22, %c64], %40 {strides = array<i32>} : memref<384x576xbf16, #tpu.memory_space<vmem>>, vector<384x64xbf16>,
    %c2 = arith.constant 2 : index
    %c0_23 = arith.constant 0 : index
    %42 = vector.load %arg9[%c2, %c0_23] : memref<434x64xbf16, #tpu.memory_space<vmem>>, vector<384x64xbf16>
    %c0_24 = arith.constant 0 : index
    %c128 = arith.constant 128 : index
    %43 = vector.load %arg10[%c0_24, %c128] : memref<384x576xbf16, #tpu.memory_space<vmem>>, vector<384x64xbf16>
    tpu.vector_store %arg10[%c0_24, %c128], %42 {strides = array<i32>} : memref<384x576xbf16, #tpu.memory_space<vmem>>, vector<384x64xbf16>,
    %c24 = arith.constant 24 : index
    %c0_25 = arith.constant 0 : index
    %44 = vector.load %arg9[%c24, %c0_25] : memref<434x64xbf16, #tpu.memory_space<vmem>>, vector<384x64xbf16>
    %c0_26 = arith.constant 0 : index
    %c192 = arith.constant 192 : index
    %45 = vector.load %arg10[%c0_26, %c192] : memref<384x576xbf16, #tpu.memory_space<vmem>>, vector<384x64xbf16>
    tpu.vector_store %arg10[%c0_26, %c192], %44 {strides = array<i32>} : memref<384x576xbf16, #tpu.memory_space<vmem>>, vector<384x64xbf16>,
    %c25_27 = arith.constant 25 : index
    %c0_28 = arith.constant 0 : index
    %46 = vector.load %arg9[%c25_27, %c0_28] : memref<434x64xbf16, #tpu.memory_space<vmem>>, vector<384x64xbf16>
    %c0_29 = arith.constant 0 : index
    %c256 = arith.constant 256 : index
    %47 = vector.load %arg10[%c0_29, %c256] : memref<384x576xbf16, #tpu.memory_space<vmem>>, vector<384x64xbf16>
    tpu.vector_store %arg10[%c0_29, %c256], %46 {strides = array<i32>} : memref<384x576xbf16, #tpu.memory_space<vmem>>, vector<384x64xbf16>,
    %c26 = arith.constant 26 : index
    %c0_30 = arith.constant 0 : index
    %48 = vector.load %arg9[%c26, %c0_30] : memref<434x64xbf16, #tpu.memory_space<vmem>>, vector<384x64xbf16>
    %c0_31 = arith.constant 0 : index
    %c320 = arith.constant 320 : index
    %49 = vector.load %arg10[%c0_31, %c320] : memref<384x576xbf16, #tpu.memory_space<vmem>>, vector<384x64xbf16>
    tpu.vector_store %arg10[%c0_31, %c320], %48 {strides = array<i32>} : memref<384x576xbf16, #tpu.memory_space<vmem>>, vector<384x64xbf16>,
    %c48 = arith.constant 48 : index
    %c0_32 = arith.constant 0 : index
    %50 = vector.load %arg9[%c48, %c0_32] : memref<434x64xbf16, #tpu.memory_space<vmem>>, vector<384x64xbf16>
    %c0_33 = arith.constant 0 : index
    %c384 = arith.constant 384 : index
    %51 = vector.load %arg10[%c0_33, %c384] : memref<384x576xbf16, #tpu.memory_space<vmem>>, vector<384x64xbf16>
    tpu.vector_store %arg10[%c0_33, %c384], %50 {strides = array<i32>} : memref<384x576xbf16, #tpu.memory_space<vmem>>, vector<384x64xbf16>,
    %c49 = arith.constant 49 : index
    %c0_34 = arith.constant 0 : index
    %52 = vector.load %arg9[%c49, %c0_34] : memref<434x64xbf16, #tpu.memory_space<vmem>>, vector<384x64xbf16>
    %c0_35 = arith.constant 0 : index
    %c448 = arith.constant 448 : index
    %53 = vector.load %arg10[%c0_35, %c448] : memref<384x576xbf16, #tpu.memory_space<vmem>>, vector<384x64xbf16>
    tpu.vector_store %arg10[%c0_35, %c448], %52 {strides = array<i32>} : memref<384x576xbf16, #tpu.memory_space<vmem>>, vector<384x64xbf16>,
    %c50 = arith.constant 50 : index
    %c0_36 = arith.constant 0 : index
    %54 = vector.load %arg9[%c50, %c0_36] : memref<434x64xbf16, #tpu.memory_space<vmem>>, vector<384x64xbf16>
    %c0_37 = arith.constant 0 : index
    %c512 = arith.constant 512 : index
    %55 = vector.load %arg10[%c0_37, %c512] : memref<384x576xbf16, #tpu.memory_space<vmem>>, vector<384x64xbf16>
    tpu.vector_store %arg10[%c0_37, %c512], %54 {strides = array<i32>} : memref<384x576xbf16, #tpu.memory_space<vmem>>, vector<384x64xbf16>,
    %c0_38 = arith.constant 0 : index
    %c0_39 = arith.constant 0 : index
    %56 = vector.load %arg10[%c0_38, %c0_39] : memref<384x576xbf16, #tpu.memory_space<vmem>>, vector<384x576xbf16>
    %c0_40 = arith.constant 0 : index
    %c0_41 = arith.constant 0 : index
    %57 = vector.load %arg4[%c0_40, %c0_41] : memref<576x64xbf16, #tpu.memory_space<vmem>>, vector<576x64xbf16>
    %cst_42 = arith.constant dense<0.000000e+00> : vector<384x64xf32>
    %58 = tpu.matmul %56, %57, %cst_42 {dimension_numbers = #tpu.dot_dimension_numbers<[1], [0], [0], [1], [0, 0, 1, 1], [], []>} : vector<384x576xbf16>, vector<576x64xbf16>, vector<384x64xf32> -> vector<384x64xf32>
    %c0_43 = arith.constant 0 : index
    %c0_44 = arith.constant 0 : index
    %59 = vector.load %arg5[%c0_43, %c0_44] : memref<1x64xf32, #tpu.memory_space<vmem>>, vector<1x64xf32>
    %60 = vector.broadcast %59 : vector<1x64xf32> to vector<384x64xf32>
    %61 = arith.addf %58, %60 : vector<384x64xf32>
    %cst_45 = arith.constant 0.000000e+00 : f32
    %62 = vector.broadcast %cst_45 : f32 to vector<384x64xf32>
    %63 = arith.maximumf %61, %62 : vector<384x64xf32>
    %c0_46 = arith.constant 0 : index
    %c0_47 = arith.constant 0 : index
    %64 = vector.load %arg6[%c0_46, %c0_47] : memref<3x64xbf16, #tpu.memory_space<vmem>>, vector<3x64xbf16>
    %65 = arith.truncf %63 : vector<384x64xf32> to vector<384x64xbf16>
    %cst_48 = arith.constant dense<0.000000e+00> : vector<3x384xf32>
    %66 = tpu.matmul %64, %65, %cst_48 {dimension_numbers = #tpu.dot_dimension_numbers<[1], [1], [0], [0], [0, 0, 1, 0], [], []>} : vector<3x64xbf16>, vector<384x64xbf16>, vector<3x384xf32> -> vector<3x384xf32>
    %c0_49 = arith.constant 0 : index
    %c0_50 = arith.constant 0 : index
    %67 = vector.load %arg7[%c0_49, %c0_50] : memref<3x1xf32, #tpu.memory_space<vmem>>, vector<3x1xf32>
    %68 = vector.broadcast %67 : vector<3x1xf32> to vector<3x384xf32>
    %69 = arith.addf %66, %68 : vector<3x384xf32>
    %c0_51 = arith.constant 0 : index
    %c0_52 = arith.constant 0 : index
    %c0_53 = arith.constant 0 : index
    %70 = vector.load %arg8[%c0_51, %c0_52, %c0_53] : memref<1x3x384xf32, #tpu.memory_space<vmem>>, vector<1x3x384xf32>
    %71 = vector.shape_cast %70 : vector<1x3x384xf32> to vector<3x384xf32>
    %72 = vector.shape_cast %69 : vector<3x384xf32> to vector<1x3x384xf32>
    tpu.vector_store %arg8[%c0_51, %c0_52, %c0_53], %72 {strides = array<i32>} : memref<1x3x384xf32, #tpu.memory_space<vmem>>, vector<1x3x384xf32>,
    return
  }
  func.func @transform_0(%arg0: i32) -> (i32, i32, i32) {
    %c0_i32 = arith.constant 0 : i32
    %c0_i32_0 = arith.constant 0 : i32
    %c0_i32_1 = arith.constant 0 : i32
    return %arg0, %c0_i32, %c0_i32_0 : i32, i32, i32
  }
  func.func @transform_1(%arg0: i32) -> (i32, i32) {
    %c0_i32 = arith.constant 0 : i32
    %c0_i32_0 = arith.constant 0 : i32
    %c0_i32_1 = arith.constant 0 : i32
    return %c0_i32, %c0_i32_0 : i32, i32
  }
  func.func @transform_2(%arg0: i32) -> (i32, i32) {
    %c0_i32 = arith.constant 0 : i32
    %c0_i32_0 = arith.constant 0 : i32
    %c0_i32_1 = arith.constant 0 : i32
    return %c0_i32, %c0_i32_0 : i32, i32
  }
  func.func @transform_3(%arg0: i32) -> (i32, i32) {
    %c0_i32 = arith.constant 0 : i32
    %c0_i32_0 = arith.constant 0 : i32
    %c0_i32_1 = arith.constant 0 : i32
    return %c0_i32, %c0_i32_0 : i32, i32
  }
  func.func @transform_4(%arg0: i32) -> (i32, i32) {
    %c0_i32 = arith.constant 0 : i32
    %c0_i32_0 = arith.constant 0 : i32
    %c0_i32_1 = arith.constant 0 : i32
    return %c0_i32, %c0_i32_0 : i32, i32
  }
  func.func @transform_5(%arg0: i32) -> (i32, i32) {
    %c0_i32 = arith.constant 0 : i32
    %c0_i32_0 = arith.constant 0 : i32
    %c0_i32_1 = arith.constant 0 : i32
    return %c0_i32, %c0_i32_0 : i32, i32
  }
  func.func @transform_6(%arg0: i32) -> (i32, i32) {
    %c0_i32 = arith.constant 0 : i32
    %c0_i32_0 = arith.constant 0 : i32
    %c0_i32_1 = arith.constant 0 : i32
    return %c0_i32, %c0_i32_0 : i32, i32
  }
  func.func @transform_7(%arg0: i32) -> (i32, i32, i32) {
    %c0_i32 = arith.constant 0 : i32
    %c0_i32_0 = arith.constant 0 : i32
    %c0_i32_1 = arith.constant 0 : i32
    return %arg0, %c0_i32, %c0_i32_0 : i32, i32, i32
  }
}

</mosaic_0001>

<llo_original>
// kernel: unet_forward_impl.1
$region0: #{unet_forward_impl.1}
  #allocation0 [shape = 'u32[]', space=smem, size = 0x4, offset = 0x4, fixed_abs, tag = 'smem constant byte address 0x4 - core index']
  #allocation1 [shape = 'u32[144,128]{1,0:T(1,128)}', space=vmem, size = 0x12000, scoped, tag = 'internal scratch']
  #allocation2 [shape = 'bf16[434,64]{1,0:T(8,128)(2,1)}', space=vmem, size = 0x1b800, scoped, tag = 'scratch operand']
  #allocation3 [shape = 'bf16[384,576]{1,0:T(16,128)(2,1)}', space=vmem, size = 0x78000, scoped, tag = 'scratch operand']
  %s0 = inlined_call_operand.vmem [shape: bf16[2,384,36], index: 0, kind: input, shape index: {}]
  %s1 = inlined_call_operand.vmem [shape: bf16[36,64], index: 1, kind: input, shape index: {}]
  %s2 = inlined_call_operand.vmem [shape: f32[1,64], index: 2, kind: input, shape index: {}]
  %s3 = inlined_call_operand.vmem [shape: bf16[576,64], index: 3, kind: input, shape index: {}]
  %s4 = inlined_call_operand.vmem [shape: f32[1,64], index: 4, kind: input, shape index: {}]
  %s5 = inlined_call_operand.vmem [shape: bf16[3,64], index: 5, kind: input, shape index: {}]
  %s6 = inlined_call_operand.vmem [shape: f32[3,1], index: 6, kind: input, shape index: {}]
  %s7 = inlined_call_operand.vmem [shape: f32[2,3,384], index: 7, kind: output, shape index: {}]
  %s8 = sld [smem:[#allocation0]]
  $region61: #{unet_forward_impl.1} parent=0
    _
  %s10 = ssub.s32 1, %s8
  %s11 = scalar_select 0, %s10, %s8
  loop: start=0, step=1, limit=4
  $region2: #{unet_forward_impl.1} parent=0 // loop_pre_header
    _
  $region3: #{unet_forward_impl.1} parent=0 // loop_header
    %s13 = sphi 0, %s17
    %p14 = scmp.ge.s32.totalorder %s13, 4
    %s23 = sphi 0, %s25
    %s26 = sphi 0, %s23
    %s27 = sphi 0, %s26
    %s43 = sphi 0, %s27
    %s47 = sphi 0, %s47
    %s49 = sphi 0, %s47
    %s50 = sphi 0, %s49
    %s64 = sphi 0, %s50
    %s68 = sphi 0, %s68
    %s70 = sphi 0, %s68
    %s71 = sphi 0, %s70
    %s85 = sphi 0, %s71
    %s89 = sphi 0, %s89
    %s91 = sphi 0, %s89
    %s92 = sphi 0, %s91
    %s106 = sphi 0, %s92
    %s110 = sphi 0, %s110
    %s112 = sphi 0, %s110
    %s113 = sphi 0, %s112
    %s127 = sphi 0, %s113
    %s131 = sphi 0, %s131
    %s133 = sphi 0, %s131
    %s134 = sphi 0, %s133
    %s148 = sphi 0, %s134
    %s152 = sphi 0, %s152
    %s154 = sphi 0, %s152
    %s155 = sphi 0, %s154
    %s169 = sphi 0, %s155
    %s175 = sphi 0, %s177
    %s178 = sphi 0, %s175
    %s179 = sphi 0, %s178
    %s195 = sphi 0, %s179
  $region4: #{unet_forward_impl.1} parent=0 // loop_header_branch
    %16 = sbr.rel (%p14) target = $region8
  $region5: #{unet_forward_impl.1} parent=0 // loop_body
    %s18 = ssub.s32 %s13, 1
    %s19 = ssub.s32 %s13, 2
    %s20 = sadd.s32 %s13, 1
    %s21 = ssub.s32 %s13, %s20
    %p22 = scmp.eq.s32.totalorder %s21, 0
    %s24 = sadd.s32 %s23, 1
    %s25 = scalar_select %p22, %s23, %s24
    %p28 = pneg %p22
    %p29 = scmp.eq.s32.totalorder %s13, 1
    %p30 = por %p28, %p29
    %p31 = scmp.ne.s32.totalorder %s23, %s26
    %p32 = scmp.eq.s32.totalorder %s13, 0
    %p33 = por %p31, %p32
    %p34 = scmp.ne.s32.totalorder %s23, %s26
    %p35 = scmp.eq.s32.totalorder %s18, 1
    %p36 = por %p34, %p35
    %p37 = scmp.ne.s32.totalorder %s26, %s27
    %p38 = scmp.eq.s32.totalorder %s18, 0
    %p39 = por %p37, %p38
    %p40 = scmp.ne.s32.totalorder %s26, %s27
    %p41 = scmp.eq.s32.totalorder %s19, 1
    %p42 = por %p40, %p41
    %p44 = scmp.ne.s32.totalorder %s27, %s43
    %p45 = scmp.eq.s32.totalorder %s19, 0
    %p46 = por %p44, %p45
    %s48 = sadd.s32 %s47, 1
    %p51 = scmp.eq.s32.totalorder %s13, 1
    %p52 = scmp.ne.s32.totalorder %s47, %s49
    %p53 = scmp.eq.s32.totalorder %s13, 0
    %p54 = por %p52, %p53
    %p55 = scmp.ne.s32.totalorder %s47, %s49
    %p56 = scmp.eq.s32.totalorder %s18, 1
    %p57 = por %p55, %p56
    %p58 = scmp.ne.s32.totalorder %s49, %s50
    %p59 = scmp.eq.s32.totalorder %s18, 0
    %p60 = por %p58, %p59
    %p61 = scmp.ne.s32.totalorder %s49, %s50
    %p62 = scmp.eq.s32.totalorder %s19, 1
    %p63 = por %p61, %p62
    %p65 = scmp.ne.s32.totalorder %s50, %s64
    %p66 = scmp.eq.s32.totalorder %s19, 0
    %p67 = por %p65, %p66
    %s69 = sadd.s32 %s68, 1
    %p72 = scmp.eq.s32.totalorder %s13, 1
    %p73 = scmp.ne.s32.totalorder %s68, %s70
    %p74 = scmp.eq.s32.totalorder %s13, 0
    %p75 = por %p73, %p74
    %p76 = scmp.ne.s32.totalorder %s68, %s70
    %p77 = scmp.eq.s32.totalorder %s18, 1
    %p78 = por %p76, %p77
    %p79 = scmp.ne.s32.totalorder %s70, %s71
    %p80 = scmp.eq.s32.totalorder %s18, 0
    %p81 = por %p79, %p80
    %p82 = scmp.ne.s32.totalorder %s70, %s71
    %p83 = scmp.eq.s32.totalorder %s19, 1
    %p84 = por %p82, %p83
    %p86 = scmp.ne.s32.totalorder %s71, %s85
    %p87 = scmp.eq.s32.totalorder %s19, 0
    %p88 = por %p86, %p87
    %s90 = sadd.s32 %s89, 1
    %p93 = scmp.eq.s32.totalorder %s13, 1
    %p94 = scmp.ne.s32.totalorder %s89, %s91
    %p95 = scmp.eq.s32.totalorder %s13, 0
    %p96 = por %p94, %p95
    %p97 = scmp.ne.s32.totalorder %s89, %s91
    %p98 = scmp.eq.s32.totalorder %s18, 1
    %p99 = por %p97, %p98
    %p100 = scmp.ne.s32.totalorder %s91, %s92
    %p101 = scmp.eq.s32.totalorder %s18, 0
    %p102 = por %p100, %p101
    %p103 = scmp.ne.s32.totalorder %s91, %s92
    %p104 = scmp.eq.s32.totalorder %s19, 1
    %p105 = por %p103, %p104
    %p107 = scmp.ne.s32.totalorder %s92, %s106
    %p108 = scmp.eq.s32.totalorder %s19, 0
    %p109 = por %p107, %p108
    %s111 = sadd.s32 %s110, 1
    %p114 = scmp.eq.s32.totalorder %s13, 1
    %p115 = scmp.ne.s32.totalorder %s110, %s112
    %p116 = scmp.eq.s32.totalorder %s13, 0
    %p117 = por %p115, %p116
    %p118 = scmp.ne.s32.totalorder %s110, %s112
    %p119 = scmp.eq.s32.totalorder %s18, 1
    %p120 = por %p118, %p119
    %p121 = scmp.ne.s32.totalorder %s112, %s113
    %p122 = scmp.eq.s32.totalorder %s18, 0
    %p123 = por %p121, %p122
    %p124 = scmp.ne.s32.totalorder %s112, %s113
    %p125 = scmp.eq.s32.totalorder %s19, 1
    %p126 = por %p124, %p125
    %p128 = scmp.ne.s32.totalorder %s113, %s127
    %p129 = scmp.eq.s32.totalorder %s19, 0
    %p130 = por %p128, %p129
    %s132 = sadd.s32 %s131, 1
    %p135 = scmp.eq.s32.totalorder %s13, 1
    %p136 = scmp.ne.s32.totalorder %s131, %s133
    %p137 = scmp.eq.s32.totalorder %s13, 0
    %p138 = por %p136, %p137
    %p139 = scmp.ne.s32.totalorder %s131, %s133
    %p140 = scmp.eq.s32.totalorder %s18, 1
    %p141 = por %p139, %p140
    %p142 = scmp.ne.s32.totalorder %s133, %s134
    %p143 = scmp.eq.s32.totalorder %s18, 0
    %p144 = por %p142, %p143
    %p145 = scmp.ne.s32.totalorder %s133, %s134
    %p146 = scmp.eq.s32.totalorder %s19, 1
    %p147 = por %p145, %p146
    %p149 = scmp.ne.s32.totalorder %s134, %s148
    %p150 = scmp.eq.s32.totalorder %s19, 0
    %p151 = por %p149, %p150
    %s153 = sadd.s32 %s152, 1
    %p156 = scmp.eq.s32.totalorder %s13, 1
    %p157 = scmp.ne.s32.totalorder %s152, %s154
    %p158 = scmp.eq.s32.totalorder %s13, 0
    %p159 = por %p157, %p158
    %p160 = scmp.ne.s32.totalorder %s152, %s154
    %p161 = scmp.eq.s32.totalorder %s18, 1
    %p162 = por %p160, %p161
    %p163 = scmp.ne.s32.totalorder %s154, %s155
    %p164 = scmp.eq.s32.totalorder %s18, 0
    %p165 = por %p163, %p164
    %p166 = scmp.ne.s32.totalorder %s154, %s155
    %p167 = scmp.eq.s32.totalorder %s19, 1
    %p168 = por %p166, %p167
    %p170 = scmp.ne.s32.totalorder %s155, %s169
    %p171 = scmp.eq.s32.totalorder %s19, 0
    %p172 = por %p170, %p171
    %s173 = ssub.s32 %s13, %s20
    %p174 = scmp.eq.s32.totalorder %s173, 0
    %s176 = sadd.s32 %s175, 1
    %s177 = scalar_select %p174, %s175, %s176
    %p180 = pneg %p174
    %p181 = scmp.eq.s32.totalorder %s13, 1
    %p182 = por %p180, %p181
    %p183 = scmp.ne.s32.totalorder %s175, %s178
    %p184 = scmp.eq.s32.totalorder %s13, 0
    %p185 = por %p183, %p184
    %p186 = scmp.ne.s32.totalorder %s175, %s178
    %p187 = scmp.eq.s32.totalorder %s18, 1
    %p188 = por %p186, %p187
    %p189 = scmp.ne.s32.totalorder %s178, %s179
    %p190 = scmp.eq.s32.totalorder %s18, 0
    %p191 = por %p189, %p190
    %p192 = scmp.ne.s32.totalorder %s178, %s179
    %p193 = scmp.eq.s32.totalorder %s19, 1
    %p194 = por %p192, %p193
    %p196 = scmp.ne.s32.totalorder %s179, %s195
    %p197 = scmp.eq.s32.totalorder %s19, 0
    %p198 = por %p196, %p197
    %p199 = scmp.le.s32.totalorder 1, %s13
    %p200 = scmp.lt.s32.totalorder %s13, 3
    %p201 = pnand %p199, %p200
    %p202 = pneg %p201
    // Predicated region
    $region9: #{unet_forward_impl.1} parent=5 // pred_check
      _
    $region10: #{unet_forward_impl.1} parent=5 // pred_check_branch
      %204 = sbr.rel (%p201) target = $region12
    $region11: #{unet_forward_impl.1} parent=5 // pred_region
      %s205 = ssub.s32 %s13, 1
      // Predicated region
      $region13: #{unet_forward_impl.1} parent=11 // pred_check
        %p206 = pneg %p60
      $region14: #{unet_forward_impl.1} parent=11 // pred_check_branch
        %208 = sbr.rel (%p206) target = $region16
      $region15: #{unet_forward_impl.1} parent=11 // pred_region
        _
      $region16: #{unet_forward_impl.1} parent=11 // pred_fallthru
        _
      // Predicated region
      $region17: #{unet_forward_impl.1} parent=11 // pred_check
        %p209 = pneg %p81
      $region18: #{unet_forward_impl.1} parent=11 // pred_check_branch
        %211 = sbr.rel (%p209) target = $region20
      $region19: #{unet_forward_impl.1} parent=11 // pred_region
        _
      $region20: #{unet_forward_impl.1} parent=11 // pred_fallthru
        _
      // Predicated region
      $region21: #{unet_forward_impl.1} parent=11 // pred_check
        %p212 = pneg %p102
      $region22: #{unet_forward_impl.1} parent=11 // pred_check_branch
        %214 = sbr.rel (%p212) target = $region24
      $region23: #{unet_forward_impl.1} parent=11 // pred_region
        _
      $region24: #{unet_forward_impl.1} parent=11 // pred_fallthru
        _
      // Predicated region
      $region25: #{unet_forward_impl.1} parent=11 // pred_check
        %p215 = pneg %p123
      $region26: #{unet_forward_impl.1} parent=11 // pred_check_branch
        %217 = sbr.rel (%p215) target = $region28
      $region27: #{unet_forward_impl.1} parent=11 // pred_region
        _
      $region28: #{unet_forward_impl.1} parent=11 // pred_fallthru
        _
      // Predicated region
      $region29: #{unet_forward_impl.1} parent=11 // pred_check
        %p218 = pneg %p144
      $region30: #{unet_forward_impl.1} parent=11 // pred_check_branch
        %220 = sbr.rel (%p218) target = $region32
      $region31: #{unet_forward_impl.1} parent=11 // pred_region
        _
      $region32: #{unet_forward_impl.1} parent=11 // pred_fallthru
        _
      // Predicated region
      $region33: #{unet_forward_impl.1} parent=11 // pred_check
        %p221 = pneg %p165
      $region34: #{unet_forward_impl.1} parent=11 // pred_check_branch
        %223 = sbr.rel (%p221) target = $region36
      $region35: #{unet_forward_impl.1} parent=11 // pred_region
        _
      $region36: #{unet_forward_impl.1} parent=11 // pred_fallthru
        _
    $region12: #{unet_forward_impl.1} parent=5 // pred_fallthru
      _
    %p224 = scmp.lt.s32.totalorder %s13, 2
    // Predicated region
    $region37: #{unet_forward_impl.1} parent=5 // pred_check
      %p225 = pneg %p224
    $region38: #{unet_forward_impl.1} parent=5 // pred_check_branch
      %227 = sbr.rel (%p225) target = $region40
    $region39: #{unet_forward_impl.1} parent=5 // pred_region
      // Predicated region
      $region41: #{unet_forward_impl.1} parent=39 // pred_check
        %p228 = pneg %p33
      $region42: #{unet_forward_impl.1} parent=39 // pred_check_branch
        %230 = sbr.rel (%p228) target = $region44
      $region43: #{unet_forward_impl.1} parent=39 // pred_region
        %p231 = scmp.lt.s32.totalorder %s13, 1
        %s232 = scalar_select %p231, %s13, 1
        %s233 = smul.addr %s232, 48
        %s234 = smul.addr %s233, 4
        %s235 = scalar_lea.vmem %s0, %s234
      $region44: #{unet_forward_impl.1} parent=39 // pred_fallthru
        _
    $region40: #{unet_forward_impl.1} parent=5 // pred_fallthru
      _
    %p236 = scmp.le.s32.totalorder 1, %s13
    %p237 = scmp.lt.s32.totalorder %s13, 3
    %p238 = pnand %p236, %p237
    %p239 = pneg %p238
    // Predicated region
    $region45: #{unet_forward_impl.1} parent=5 // pred_check
      _
    $region46: #{unet_forward_impl.1} parent=5 // pred_check_branch
      %241 = sbr.rel (%p238) target = $region48
    $region47: #{unet_forward_impl.1} parent=5 // pred_region
      %s242 = ssub.s32 %s13, 1
      %p243 = scmp.lt.s32.totalorder %s18, 1
      %s244 = scalar_select %p243, %s18, 1
      %s245 = smul.addr %s244, 48
      %s246 = smul.addr %s245, 4
      %s247 = scalar_lea.vmem %s0, %s246
      %p248 = pneg %p39
      %p249 = pneg %p36
      %p250 = pneg %p60
      %p251 = pneg %p57
      %p252 = pneg %p81
      %p253 = pneg %p78
      %p254 = pneg %p102
      %p255 = pneg %p99
      %p256 = pneg %p123
      %p257 = pneg %p120
      %p258 = pneg %p144
      %p259 = pneg %p141
      %p260 = pneg %p165
      %p261 = pneg %p162
      %p262 = pneg %p191
      %p263 = pneg %p188
      %p264 = scmp.lt.s32.totalorder %s18, 1
      %s265 = scalar_select %p264, %s18, 1
      %s266 = smul.addr %s265, 3
      %s267 = smul.addr %s266, 4
      %s268 = scalar_lea.vmem %s7, %s267
      %p269 = scmp.lt.s32.totalorder %s18, 1
      %s270 = scalar_select %p269, %s18, 1
      %s271 = smul.addr %s270, 48
      %s272 = smul.addr %s271, 4
      %s273 = scalar_lea.vmem %s0, %s272
      %p274 = scmp.lt.s32.totalorder %s18, 1
      %s275 = scalar_select %p274, %s18, 1
      %s276 = smul.addr %s275, 3
      %s277 = smul.addr %s276, 4
      %s278 = scalar_lea.vmem %s7, %s277
      %v280 = vld [vmem:[%s273] sm:$0xf]
      %v281 = vld [vmem:[%s273 + $0x4] sm:$0xf]
      %v282 = vld [vmem:[%s273 + $0x8] sm:$0xf]
      %v283 = vld [vmem:[%s273 + $0xc] sm:$0xf]
      %v284 = vld [vmem:[%s273 + $0x10] sm:$0xf]
      %v285 = vld [vmem:[%s273 + $0x14] sm:$0xf]
      %v286 = vld [vmem:[%s273 + $0x18] sm:$0xf]
      %v287 = vld [vmem:[%s273 + $0x1c] sm:$0xf]
      %v288 = vld [vmem:[%s273 + $0x20] sm:$0xf]
      %v289 = vld [vmem:[%s273 + $0x24] sm:$0xf]
      %v290 = vld [vmem:[%s273 + $0x28] sm:$0xf]
      %v291 = vld [vmem:[%s273 + $0x2c] sm:$0xf]
      %v292 = vld [vmem:[%s273 + $0x30] sm:$0xf]
      %v293 = vld [vmem:[%s273 + $0x34] sm:$0xf]
      %v294 = vld [vmem:[%s273 + $0x38] sm:$0xf]
      %v295 = vld [vmem:[%s273 + $0x3c] sm:$0xf]
      %v296 = vld [vmem:[%s273 + $0x40] sm:$0xf]
      %v297 = vld [vmem:[%s273 + $0x44] sm:$0xf]
      %v298 = vld [vmem:[%s273 + $0x48] sm:$0xf]
      %v299 = vld [vmem:[%s273 + $0x4c] sm:$0xf]
      %v300 = vld [vmem:[%s273 + $0x50] sm:$0xf]
      %v301 = vld [vmem:[%s273 + $0x54] sm:$0xf]
      %v302 = vld [vmem:[%s273 + $0x58] sm:$0xf]
      %v303 = vld [vmem:[%s273 + $0x5c] sm:$0xf]
      %v304 = vld [vmem:[%s273 + $0x60] sm:$0xf]
      %v305 = vld [vmem:[%s273 + $0x64] sm:$0xf]
      %v306 = vld [vmem:[%s273 + $0x68] sm:$0xf]
      %v307 = vld [vmem:[%s273 + $0x6c] sm:$0xf]
      %v308 = vld [vmem:[%s273 + $0x70] sm:$0xf]
      %v309 = vld [vmem:[%s273 + $0x74] sm:$0xf]
      %v310 = vld [vmem:[%s273 + $0x78] sm:$0xf]
      %v311 = vld [vmem:[%s273 + $0x7c] sm:$0xf]
      %v312 = vld [vmem:[%s273 + $0x80] sm:$0xf]
      %v313 = vld [vmem:[%s273 + $0x84] sm:$0xf]
      %v314 = vld [vmem:[%s273 + $0x88] sm:$0xf]
      %v315 = vld [vmem:[%s273 + $0x8c] sm:$0xf]
      %v316 = vld [vmem:[%s273 + $0x90] sm:$0xf]
      %v317 = vld [vmem:[%s273 + $0x94] sm:$0xf]
      %v318 = vld [vmem:[%s273 + $0x98] sm:$0xf]
      %v319 = vld [vmem:[%s273 + $0x9c] sm:$0xf]
      %v320 = vld [vmem:[%s273 + $0xa0] sm:$0xf]
      %v321 = vld [vmem:[%s273 + $0xa4] sm:$0xf]
      %v322 = vld [vmem:[%s273 + $0xa8] sm:$0xf]
      %v323 = vld [vmem:[%s273 + $0xac] sm:$0xf]
      %v324 = vld [vmem:[%s273 + $0xb0] sm:$0xf]
      %v325 = vld [vmem:[%s273 + $0xb4] sm:$0xf]
      %v326 = vld [vmem:[%s273 + $0xb8] sm:$0xf]
      %v327 = vld [vmem:[%s273 + $0xbc] sm:$0xf]
      %v328 = vld [vmem:[%s1] sm:$0xf]
      %v329 = vld [vmem:[%s1 + $0x4] sm:$0xf]
      %v330 = vld [vmem:[%s1 + $0x8] sm:$0xf]
      %v331 = vld [vmem:[%s1 + $0xc] sm:$0xf]
      %v332 = vld [vmem:[%s1 + $0x10] sm:$0x3]
      %v333 = vld [vmem:[%s2] sm:$0x1]
      %v335 = vlaneseq
      %v336 = vshrl.u32 %v335, 7
      %v337 = vsub.s32 0, %v336
      %v338 = vrot.slane %v333, %v337
      %v388 = vunpack.c.l.b16 %v280
      %v389 = vunpack.c.l.b16 %v281
      %v390 = vunpack.c.l.b16 %v282
      %v391 = vunpack.c.l.b16 %v283
      %v392 = vunpack.c.l.b16 %v284
      %v393 = vunpack.c.l.b16 %v285
      %v394 = vunpack.c.l.b16 %v286
      %v395 = vunpack.c.l.b16 %v287
      %v396 = vunpack.c.l.b16 %v288
      %v397 = vunpack.c.l.b16 %v289
      %v398 = vunpack.c.l.b16 %v290
      %v399 = vunpack.c.l.b16 %v291
      %v400 = vunpack.c.l.b16 %v292
      %v401 = vunpack.c.l.b16 %v293
      %v402 = vunpack.c.l.b16 %v294
      %v403 = vunpack.c.l.b16 %v295
      %v404 = vunpack.c.l.b16 %v296
      %v405 = vunpack.c.l.b16 %v297
      %v406 = vunpack.c.l.b16 %v298
      %v407 = vunpack.c.l.b16 %v299
      %v408 = vunpack.c.l.b16 %v300
      %v409 = vunpack.c.l.b16 %v301
      %v410 = vunpack.c.l.b16 %v302
      %v411 = vunpack.c.l.b16 %v303
      %v412 = vunpack.c.l.b16 %v304
      %v413 = vunpack.c.l.b16 %v305
      %v414 = vunpack.c.l.b16 %v306
      %v415 = vunpack.c.l.b16 %v307
      %v416 = vunpack.c.l.b16 %v308
      %v417 = vunpack.c.l.b16 %v309
      %v418 = vunpack.c.l.b16 %v310
      %v419 = vunpack.c.l.b16 %v311
      %v420 = vunpack.c.l.b16 %v312
      %v421 = vunpack.c.l.b16 %v313
      %v422 = vunpack.c.l.b16 %v314
      %v423 = vunpack.c.l.b16 %v315
      %v424 = vunpack.c.l.b16 %v316
      %v425 = vunpack.c.l.b16 %v317
      %v426 = vunpack.c.l.b16 %v318
      %v427 = vunpack.c.l.b16 %v319
      %v428 = vunpack.c.l.b16 %v320
      %v429 = vunpack.c.l.b16 %v321
      %v430 = vunpack.c.l.b16 %v322
      %v431 = vunpack.c.l.b16 %v323
      %v432 = vunpack.c.l.b16 %v324
      %v433 = vunpack.c.l.b16 %v325
      %v434 = vunpack.c.l.b16 %v326
      %v435 = vunpack.c.l.b16 %v327
      %v436 = vpack.c.b16 %v389, %v388
      %v437 = vpack.c.b16 %v391, %v390
      %v438 = vpack.c.b16 %v393, %v392
      %v439 = vpack.c.b16 %v395, %v394
      %v440 = vpack.c.b16 %v397, %v396
      %v441 = vpack.c.b16 %v399, %v398
      %v442 = vpack.c.b16 %v401, %v400
      %v443 = vpack.c.b16 %v403, %v402
      %v444 = vpack.c.b16 %v405, %v404
      %v445 = vpack.c.b16 %v407, %v406
      %v446 = vpack.c.b16 %v409, %v408
      %v447 = vpack.c.b16 %v411, %v410
      %v448 = vpack.c.b16 %v413, %v412
      %v449 = vpack.c.b16 %v415, %v414
      %v450 = vpack.c.b16 %v417, %v416
      %v451 = vpack.c.b16 %v419, %v418
      %v452 = vpack.c.b16 %v421, %v420
      %v453 = vpack.c.b16 %v423, %v422
      %v454 = vpack.c.b16 %v425, %v424
      %v455 = vpack.c.b16 %v427, %v426
      %v456 = vpack.c.b16 %v429, %v428
      %v457 = vpack.c.b16 %v431, %v430
      %v458 = vpack.c.b16 %v433, %v432
      %v459 = vpack.c.b16 %v435, %v434
      %v465 = vunpack.c.l.b16 %v328
      %v466 = vunpack.c.l.b16 %v329
      %v467 = vunpack.c.l.b16 %v330
      %v468 = vunpack.c.l.b16 %v331
      %v469 = vunpack.c.l.b16 %v332
      %v470 = vpack.c.b16 %v466, %v465
      %v471 = vpack.c.b16 %v468, %v467
      %v472 = vpack.c.b16 %v469, %v469
      %vm475 = vcmask 293888
      %v477 = vsel %vm475, %v436, 0
      %v480 = vsel %vm475, %v437, 0
      %v483 = vsel %vm475, %v438, 0
      %v486 = vsel %vm475, %v439, 0
      %v489 = vsel %vm475, %v440, 0
      %v492 = vsel %vm475, %v441, 0
      %v495 = vsel %vm475, %v442, 0
      %v498 = vsel %vm475, %v443, 0
      %v501 = vsel %vm475, %v444, 0
      %v504 = vsel %vm475, %v445, 0
      %v507 = vsel %vm475, %v446, 0
      %v510 = vsel %vm475, %v447, 0
      %v513 = vsel %vm475, %v448, 0
      %v516 = vsel %vm475, %v449, 0
      %v519 = vsel %vm475, %v450, 0
      %v522 = vsel %vm475, %v451, 0
      %v525 = vsel %vm475, %v452, 0
      %v528 = vsel %vm475, %v453, 0
      %v531 = vsel %vm475, %v454, 0
      %v534 = vsel %vm475, %v455, 0
      %v537 = vsel %vm475, %v456, 0
      %v540 = vsel %vm475, %v457, 0
      %v543 = vsel %vm475, %v458, 0
      %v546 = vsel %vm475, %v459, 0
      %vm548 = vcmask 1041408
      %v550 = vsel %vm548, %v472, 0
      %552 = vmatprep.subr.bf16.mxu0 0
      %553 = vmatpush1.bf16.msra.mxu0 %v470
      %554 = vmatprep.subr.bf16.mxu0 0
      %555 = vmatpush1.bf16.msra.mxu0 %v471
      %556 = vmatprep.subr.bf16.mxu0 0
      %557 = vmatpush1.bf16.msra.mxu0 %v550
      %558 = vmatprep.subr.bf16.mxu0 0
      %559 = vmatpush1.bf16.msra.mxu0 0
      %560 = vmatprep.subr.bf16.mxu0 0
      %561 = vmatpush1.bf16.msra.mxu0 0
      %562 = vmatprep.subr.bf16.mxu0 0
      %563 = vmatpush1.bf16.msra.mxu0 0
      %564 = vmatprep.subr.bf16.mxu0 0
      %565 = vmatpush1.bf16.msra.mxu0 0
      %566 = vmatprep.subr.bf16.mxu0 0
      %567 = vmatpush1.bf16.msra.mxu0 0
      %568 = vmatprep.subr.bf16.mxu0 0
      %569 = vmatpush1.bf16.msra.mxu0 0
      %570 = vmatprep.subr.bf16.mxu0 0
      %571 = vmatpush1.bf16.msra.mxu0 0
      %572 = vmatprep.subr.bf16.mxu0 0
      %573 = vmatpush1.bf16.msra.mxu0 0
      %574 = vmatprep.subr.bf16.mxu0 0
      %575 = vmatpush1.bf16.msra.mxu0 0
      %576 = vmatprep.subr.bf16.mxu0 0
      %577 = vmatpush1.bf16.msra.mxu0 0
      %578 = vmatprep.subr.bf16.mxu0 0
      %579 = vmatpush1.bf16.msra.mxu0 0
      %580 = vmatprep.subr.bf16.mxu0 0
      %581 = vmatpush1.bf16.msra.mxu0 0
      %582 = vmatprep.subr.bf16.mxu0 0
      %583 = vmatpush1.bf16.msra.mxu0 0
      %584 = vmatprep.mubr.bf16.mxu0 0
      %585 = vmatmul.mubr.bf16.gmra.mrb[0].mxu0 %v477
      %v586 = vpop.f32.mrb[0].mxu0
      %v587 = vadd.f32 %v338, %v586
      %v588 = vpop.f32.mrb[0].mxu0
      %v589 = vpop.f32.mrb[0].mxu0
      %v590 = vadd.f32 %v338, %v589
      %v591 = vpop.f32.mrb[0].mxu0
      %592 = vmatprep.mubr.bf16.mxu0 0
      %593 = vmatmul.mubr.bf16.gmra.mrb[0].mxu0 %v480
      %v594 = vpop.f32.mrb[0].mxu0
      %v595 = vadd.f32 %v338, %v594
      %v596 = vpop.f32.mrb[0].mxu0
      %v597 = vpop.f32.mrb[0].mxu0
      %v598 = vadd.f32 %v338, %v597
      %v599 = vpop.f32.mrb[0].mxu0
      %600 = vmatprep.mubr.bf16.mxu0 0
      %601 = vmatmul.mubr.bf16.gmra.mrb[0].mxu0 %v483
      %v602 = vpop.f32.mrb[0].mxu0
      %v603 = vadd.f32 %v338, %v602
      %v604 = vpop.f32.mrb[0].mxu0
      %v605 = vpop.f32.mrb[0].mxu0
      %v606 = vadd.f32 %v338, %v605
      %v607 = vpop.f32.mrb[0].mxu0
      %608 = vmatprep.mubr.bf16.mxu0 0
      %609 = vmatmul.mubr.bf16.gmra.mrb[0].mxu0 %v486
      %v610 = vpop.f32.mrb[0].mxu0
      %v611 = vadd.f32 %v338, %v610
      %v612 = vpop.f32.mrb[0].mxu0
      %v613 = vpop.f32.mrb[0].mxu0
      %v614 = vadd.f32 %v338, %v613
      %v615 = vpop.f32.mrb[0].mxu0
      %616 = vmatprep.mubr.bf16.mxu0 0
      %617 = vmatmul.mubr.bf16.gmra.mrb[0].mxu0 %v489
      %v618 = vpop.f32.mrb[0].mxu0
      %v619 = vadd.f32 %v338, %v618
      %v620 = vpop.f32.mrb[0].mxu0
      %v621 = vpop.f32.mrb[0].mxu0
      %v622 = vadd.f32 %v338, %v621
      %v623 = vpop.f32.mrb[0].mxu0
      %624 = vmatprep.mubr.bf16.mxu0 0
      %625 = vmatmul.mubr.bf16.gmra.mrb[0].mxu0 %v492
      %v626 = vpop.f32.mrb[0].mxu0
      %v627 = vadd.f32 %v338, %v626
      %v628 = vpop.f32.mrb[0].mxu0
      %v629 = vpop.f32.mrb[0].mxu0
      %v630 = vadd.f32 %v338, %v629
      %v631 = vpop.f32.mrb[0].mxu0
      %632 = vmatprep.mubr.bf16.mxu0 0
      %633 = vmatmul.mubr.bf16.gmra.mrb[0].mxu0 %v495
      %v634 = vpop.f32.mrb[0].mxu0
      %v635 = vadd.f32 %v338, %v634
      %v636 = vpop.f32.mrb[0].mxu0
      %v637 = vpop.f32.mrb[0].mxu0
      %v638 = vadd.f32 %v338, %v637
      %v639 = vpop.f32.mrb[0].mxu0
      %640 = vmatprep.mubr.bf16.mxu0 0
      %641 = vmatmul.mubr.bf16.gmra.mrb[0].mxu0 %v498
      %v642 = vpop.f32.mrb[0].mxu0
      %v643 = vadd.f32 %v338, %v642
      %v644 = vpop.f32.mrb[0].mxu0
      %v645 = vpop.f32.mrb[0].mxu0
      %v646 = vadd.f32 %v338, %v645
      %v647 = vpop.f32.mrb[0].mxu0
      %648 = vmatprep.mubr.bf16.mxu0 0
      %649 = vmatmul.mubr.bf16.gmra.mrb[0].mxu0 %v501
      %v650 = vpop.f32.mrb[0].mxu0
      %v651 = vadd.f32 %v338, %v650
      %v652 = vpop.f32.mrb[0].mxu0
      %v653 = vpop.f32.mrb[0].mxu0
      %v654 = vadd.f32 %v338, %v653
      %v655 = vpop.f32.mrb[0].mxu0
      %656 = vmatprep.mubr.bf16.mxu0 0
      %657 = vmatmul.mubr.bf16.gmra.mrb[0].mxu0 %v504
      %v658 = vpop.f32.mrb[0].mxu0
      %v659 = vadd.f32 %v338, %v658
      %v660 = vpop.f32.mrb[0].mxu0
      %v661 = vpop.f32.mrb[0].mxu0
      %v662 = vadd.f32 %v338, %v661
      %v663 = vpop.f32.mrb[0].mxu0
      %664 = vmatprep.mubr.bf16.mxu0 0
      %665 = vmatmul.mubr.bf16.gmra.mrb[0].mxu0 %v507
      %v666 = vpop.f32.mrb[0].mxu0
      %v667 = vadd.f32 %v338, %v666
      %v668 = vpop.f32.mrb[0].mxu0
      %v669 = vpop.f32.mrb[0].mxu0
      %v670 = vadd.f32 %v338, %v669
      %v671 = vpop.f32.mrb[0].mxu0
      %672 = vmatprep.mubr.bf16.mxu0 0
      %673 = vmatmul.mubr.bf16.gmra.mrb[0].mxu0 %v510
      %v674 = vpop.f32.mrb[0].mxu0
      %v675 = vadd.f32 %v338, %v674
      %v676 = vpop.f32.mrb[0].mxu0
      %v677 = vpop.f32.mrb[0].mxu0
      %v678 = vadd.f32 %v338, %v677
      %v679 = vpop.f32.mrb[0].mxu0
      %680 = vmatprep.mubr.bf16.mxu0 0
      %681 = vmatmul.mubr.bf16.gmra.mrb[0].mxu0 %v513
      %v682 = vpop.f32.mrb[0].mxu0
      %v683 = vadd.f32 %v338, %v682
      %v684 = vpop.f32.mrb[0].mxu0
      %v685 = vpop.f32.mrb[0].mxu0
      %v686 = vadd.f32 %v338, %v685
      %v687 = vpop.f32.mrb[0].mxu0
      %688 = vmatprep.mubr.bf16.mxu0 0
      %689 = vmatmul.mubr.bf16.gmra.mrb[0].mxu0 %v516
      %v690 = vpop.f32.mrb[0].mxu0
      %v691 = vadd.f32 %v338, %v690
      %v692 = vpop.f32.mrb[0].mxu0
      %v693 = vpop.f32.mrb[0].mxu0
      %v694 = vadd.f32 %v338, %v693
      %v695 = vpop.f32.mrb[0].mxu0
      %696 = vmatprep.mubr.bf16.mxu0 0
      %697 = vmatmul.mubr.bf16.gmra.mrb[0].mxu0 %v519
      %v698 = vpop.f32.mrb[0].mxu0
      %v699 = vadd.f32 %v338, %v698
      %v700 = vpop.f32.mrb[0].mxu0
      %v701 = vpop.f32.mrb[0].mxu0
      %v702 = vadd.f32 %v338, %v701
      %v703 = vpop.f32.mrb[0].mxu0
      %704 = vmatprep.mubr.bf16.mxu0 0
      %705 = vmatmul.mubr.bf16.gmra.mrb[0].mxu0 %v522
      %v706 = vpop.f32.mrb[0].mxu0
      %v707 = vadd.f32 %v338, %v706
      %v708 = vpop.f32.mrb[0].mxu0
      %v709 = vpop.f32.mrb[0].mxu0
      %v710 = vadd.f32 %v338, %v709
      %v711 = vpop.f32.mrb[0].mxu0
      %712 = vmatprep.mubr.bf16.mxu0 0
      %713 = vmatmul.mubr.bf16.gmra.mrb[0].mxu0 %v525
      %v714 = vpop.f32.mrb[0].mxu0
      %v715 = vadd.f32 %v338, %v714
      %v716 = vpop.f32.mrb[0].mxu0
      %v717 = vpop.f32.mrb[0].mxu0
      %v718 = vadd.f32 %v338, %v717
      %v719 = vpop.f32.mrb[0].mxu0
      %720 = vmatprep.mubr.bf16.mxu0 0
      %721 = vmatmul.mubr.bf16.gmra.mrb[0].mxu0 %v528
      %v722 = vpop.f32.mrb[0].mxu0
      %v723 = vadd.f32 %v338, %v722
      %v724 = vpop.f32.mrb[0].mxu0
      %v725 = vpop.f32.mrb[0].mxu0
      %v726 = vadd.f32 %v338, %v725
      %v727 = vpop.f32.mrb[0].mxu0
      %728 = vmatprep.mubr.bf16.mxu0 0
      %729 = vmatmul.mubr.bf16.gmra.mrb[0].mxu0 %v531
      %v730 = vpop.f32.mrb[0].mxu0
      %v731 = vadd.f32 %v338, %v730
      %v732 = vpop.f32.mrb[0].mxu0
      %v733 = vpop.f32.mrb[0].mxu0
      %v734 = vadd.f32 %v338, %v733
      %v735 = vpop.f32.mrb[0].mxu0
      %736 = vmatprep.mubr.bf16.mxu0 0
      %737 = vmatmul.mubr.bf16.gmra.mrb[0].mxu0 %v534
      %v738 = vpop.f32.mrb[0].mxu0
      %v739 = vadd.f32 %v338, %v738
      %v740 = vpop.f32.mrb[0].mxu0
      %v741 = vpop.f32.mrb[0].mxu0
      %v742 = vadd.f32 %v338, %v741
      %v743 = vpop.f32.mrb[0].mxu0
      %744 = vmatprep.mubr.bf16.mxu0 0
      %745 = vmatmul.mubr.bf16.gmra.mrb[0].mxu0 %v537
      %v746 = vpop.f32.mrb[0].mxu0
      %v747 = vadd.f32 %v338, %v746
      %v748 = vpop.f32.mrb[0].mxu0
      %v749 = vpop.f32.mrb[0].mxu0
      %v750 = vadd.f32 %v338, %v749
      %v751 = vpop.f32.mrb[0].mxu0
      %752 = vmatprep.mubr.bf16.mxu0 0
      %753 = vmatmul.mubr.bf16.gmra.mrb[0].mxu0 %v540
      %v754 = vpop.f32.mrb[0].mxu0
      %v755 = vadd.f32 %v338, %v754
      %v756 = vpop.f32.mrb[0].mxu0
      %v757 = vpop.f32.mrb[0].mxu0
      %v758 = vadd.f32 %v338, %v757
      %v759 = vpop.f32.mrb[0].mxu0
      %760 = vmatprep.mubr.bf16.mxu0 0
      %761 = vmatmul.mubr.bf16.gmra.mrb[0].mxu0 %v543
      %v762 = vpop.f32.mrb[0].mxu0
      %v763 = vadd.f32 %v338, %v762
      %v764 = vpop.f32.mrb[0].mxu0
      %v765 = vpop.f32.mrb[0].mxu0
      %v766 = vadd.f32 %v338, %v765
      %v767 = vpop.f32.mrb[0].mxu0
      %768 = vmatprep.mubr.bf16.mxu0 0
      %769 = vmatmul.mubr.bf16.gmra.mrb[0].mxu0 %v546
      %v770 = vpop.f32.mrb[0].mxu0
      %v771 = vadd.f32 %v338, %v770
      %v772 = vpop.f32.mrb[0].mxu0
      %v773 = vpop.f32.mrb[0].mxu0
      %v774 = vadd.f32 %v338, %v773
      %v775 = vpop.f32.mrb[0].mxu0
      %776 = vdwg.mxu0
      %v777 = vmax.f32 %v587, 0.0
      %v778 = vmax.f32 %v590, 0.0
      %v779 = vmax.f32 %v595, 0.0
      %v780 = vmax.f32 %v598, 0.0
      %v781 = vmax.f32 %v603, 0.0
      %v782 = vmax.f32 %v606, 0.0
      %v783 = vmax.f32 %v611, 0.0
      %v784 = vmax.f32 %v614, 0.0
      %v785 = vmax.f32 %v619, 0.0
      %v786 = vmax.f32 %v622, 0.0
      %v787 = vmax.f32 %v627, 0.0
      %v788 = vmax.f32 %v630, 0.0
      %v789 = vmax.f32 %v635, 0.0
      %v790 = vmax.f32 %v638, 0.0
      %v791 = vmax.f32 %v643, 0.0
      %v792 = vmax.f32 %v646, 0.0
      %v793 = vmax.f32 %v651, 0.0
      %v794 = vmax.f32 %v654, 0.0
      %v795 = vmax.f32 %v659, 0.0
      %v796 = vmax.f32 %v662, 0.0
      %v797 = vmax.f32 %v667, 0.0
      %v798 = vmax.f32 %v670, 0.0
      %v799 = vmax.f32 %v675, 0.0
      %v800 = vmax.f32 %v678, 0.0
      %v801 = vmax.f32 %v683, 0.0
      %v802 = vmax.f32 %v686, 0.0
      %v803 = vmax.f32 %v691, 0.0
      %v804 = vmax.f32 %v694, 0.0
      %v805 = vmax.f32 %v699, 0.0
      %v806 = vmax.f32 %v702, 0.0
      %v807 = vmax.f32 %v707, 0.0
      %v808 = vmax.f32 %v710, 0.0
      %v809 = vmax.f32 %v715, 0.0
      %v810 = vmax.f32 %v718, 0.0
      %v811 = vmax.f32 %v723, 0.0
      %v812 = vmax.f32 %v726, 0.0
      %v813 = vmax.f32 %v731, 0.0
      %v814 = vmax.f32 %v734, 0.0
      %v815 = vmax.f32 %v739, 0.0
      %v816 = vmax.f32 %v742, 0.0
      %v817 = vmax.f32 %v747, 0.0
      %v818 = vmax.f32 %v750, 0.0
      %v819 = vmax.f32 %v755, 0.0
      %v820 = vmax.f32 %v758, 0.0
      %v821 = vmax.f32 %v763, 0.0
      %v822 = vmax.f32 %v766, 0.0
      %v823 = vmax.f32 %v771, 0.0
      %v824 = vmax.f32 %v774, 0.0
      %v825 = vlaneseq
      %v826 = vshrl.u32 %v825, 7
      %v827 = vadd.s32 %v826, 8
      %v828 = vadd.s32 %v826, 16
      %v829 = vadd.s32 %v826, 24
      %v830 = vadd.s32 %v826, 32
      %v831 = vadd.s32 %v826, 40
      %v832 = vadd.s32 %v826, 48
      %v833 = vadd.s32 %v826, 56
      %v834 = vadd.s32 %v826, 64
      %v835 = vadd.s32 %v826, 72
      %v836 = vadd.s32 %v826, 80
      %v837 = vadd.s32 %v826, 88
      %v838 = vadd.s32 %v826, 96
      %v839 = vadd.s32 %v826, 104
      %v840 = vadd.s32 %v826, 112
      %v841 = vadd.s32 %v826, 120
      %v842 = vadd.s32 %v826, 128
      %v843 = vadd.s32 %v826, 136
      %v844 = vadd.s32 %v826, 144
      %v845 = vadd.s32 %v826, 152
      %v846 = vadd.s32 %v826, 160
      %v847 = vadd.s32 %v826, 168
      %v848 = vadd.s32 %v826, 176
      %v849 = vadd.s32 %v826, 184
      %v850 = vadd.s32 %v826, 192
      %v851 = vadd.s32 %v826, 200
      %v852 = vadd.s32 %v826, 208
      %v853 = vadd.s32 %v826, 216
      %v854 = vadd.s32 %v826, 224
      %v855 = vadd.s32 %v826, 232
      %v856 = vadd.s32 %v826, 240
      %v857 = vadd.s32 %v826, 248
      %v858 = vadd.s32 %v826, 256
      %v859 = vadd.s32 %v826, 264
      %v860 = vadd.s32 %v826, 272
      %v861 = vadd.s32 %v826, 280
      %v862 = vadd.s32 %v826, 288
      %v863 = vadd.s32 %v826, 296
      %v864 = vadd.s32 %v826, 304
      %v865 = vadd.s32 %v826, 312
      %v866 = vadd.s32 %v826, 320
      %v867 = vadd.s32 %v826, 328
      %v868 = vadd.s32 %v826, 336
      %v869 = vadd.s32 %v826, 344
      %v870 = vadd.s32 %v826, 352
      %v871 = vadd.s32 %v826, 360
      %v872 = vadd.s32 %v826, 368
      %v873 = vadd.s32 %v826, 376
      %vm874 = vcmp.lt.s32.totalorder %v826, 0
      %v875 = vsub.s32 0, %v826
      %v876 = vsel %vm874, %v875, %v826
      %v877 = vmul.u32.u64.compose %v876, 2863311531
      %v878 = vextract.low.u32 %v877
      %v879 = vextract.high.u32 %v877
      %v880 = vshrl.u32 %v879, 4
      %v881 = vmul.u32 %v880, 24
      %v882 = vsub.s32 %v876, %v881
      %v883 = vsub.s32 0, %v882
      %v884 = vsel %vm874, %v883, %v882
      %vm885 = vcmp.lt.s32.totalorder %v827, 0
      %v886 = vsub.s32 0, %v827
      %v887 = vsel %vm885, %v886, %v827
      %v888 = vmul.u32.u64.compose %v887, 2863311531
      %v889 = vextract.low.u32 %v888
      %v890 = vextract.high.u32 %v888
      %v891 = vshrl.u32 %v890, 4
      %v892 = vmul.u32 %v891, 24
      %v893 = vsub.s32 %v887, %v892
      %v894 = vsub.s32 0, %v893
      %v895 = vsel %vm885, %v894, %v893
      %vm896 = vcmp.lt.s32.totalorder %v828, 0
      %v897 = vsub.s32 0, %v828
      %v898 = vsel %vm896, %v897, %v828
      %v899 = vmul.u32.u64.compose %v898, 2863311531
      %v900 = vextract.low.u32 %v899
      %v901 = vextract.high.u32 %v899
      %v902 = vshrl.u32 %v901, 4
      %v903 = vmul.u32 %v902, 24
      %v904 = vsub.s32 %v898, %v903
      %v905 = vsub.s32 0, %v904
      %v906 = vsel %vm896, %v905, %v904
      %vm907 = vcmp.lt.s32.totalorder %v829, 0
      %v908 = vsub.s32 0, %v829
      %v909 = vsel %vm907, %v908, %v829
      %v910 = vmul.u32.u64.compose %v909, 2863311531
      %v911 = vextract.low.u32 %v910
      %v912 = vextract.high.u32 %v910
      %v913 = vshrl.u32 %v912, 4
      %v914 = vmul.u32 %v913, 24
      %v915 = vsub.s32 %v909, %v914
      %v916 = vsub.s32 0, %v915
      %v917 = vsel %vm907, %v916, %v915
      %vm918 = vcmp.lt.s32.totalorder %v830, 0
      %v919 = vsub.s32 0, %v830
      %v920 = vsel %vm918, %v919, %v830
      %v921 = vmul.u32.u64.compose %v920, 2863311531
      %v922 = vextract.low.u32 %v921
      %v923 = vextract.high.u32 %v921
      %v924 = vshrl.u32 %v923, 4
      %v925 = vmul.u32 %v924, 24
      %v926 = vsub.s32 %v920, %v925
      %v927 = vsub.s32 0, %v926
      %v928 = vsel %vm918, %v927, %v926
      %vm929 = vcmp.lt.s32.totalorder %v831, 0
      %v930 = vsub.s32 0, %v831
      %v931 = vsel %vm929, %v930, %v831
      %v932 = vmul.u32.u64.compose %v931, 2863311531
      %v933 = vextract.low.u32 %v932
      %v934 = vextract.high.u32 %v932
      %v935 = vshrl.u32 %v934, 4
      %v936 = vmul.u32 %v935, 24
      %v937 = vsub.s32 %v931, %v936
      %v938 = vsub.s32 0, %v937
      %v939 = vsel %vm929, %v938, %v937
      %vm940 = vcmp.lt.s32.totalorder %v832, 0
      %v941 = vsub.s32 0, %v832
      %v942 = vsel %vm940, %v941, %v832
      %v943 = vmul.u32.u64.compose %v942, 2863311531
      %v944 = vextract.low.u32 %v943
      %v945 = vextract.high.u32 %v943
      %v946 = vshrl.u32 %v945, 4
      %v947 = vmul.u32 %v946, 24
      %v948 = vsub.s32 %v942, %v947
      %v949 = vsub.s32 0, %v948
      %v950 = vsel %vm940, %v949, %v948
      %vm951 = vcmp.lt.s32.totalorder %v833, 0
      %v952 = vsub.s32 0, %v833
      %v953 = vsel %vm951, %v952, %v833
      %v954 = vmul.u32.u64.compose %v953, 2863311531
      %v955 = vextract.low.u32 %v954
      %v956 = vextract.high.u32 %v954
      %v957 = vshrl.u32 %v956, 4
      %v958 = vmul.u32 %v957, 24
      %v959 = vsub.s32 %v953, %v958
      %v960 = vsub.s32 0, %v959
      %v961 = vsel %vm951, %v960, %v959
      %vm962 = vcmp.lt.s32.totalorder %v834, 0
      %v963 = vsub.s32 0, %v834
      %v964 = vsel %vm962, %v963, %v834
      %v965 = vmul.u32.u64.compose %v964, 2863311531
      %v966 = vextract.low.u32 %v965
      %v967 = vextract.high.u32 %v965
      %v968 = vshrl.u32 %v967, 4
      %v969 = vmul.u32 %v968, 24
      %v970 = vsub.s32 %v964, %v969
      %v971 = vsub.s32 0, %v970
      %v972 = vsel %vm962, %v971, %v970
      %vm973 = vcmp.lt.s32.totalorder %v835, 0
      %v974 = vsub.s32 0, %v835
      %v975 = vsel %vm973, %v974, %v835
      %v976 = vmul.u32.u64.compose %v975, 2863311531
      %v977 = vextract.low.u32 %v976
      %v978 = vextract.high.u32 %v976
      %v979 = vshrl.u32 %v978, 4
      %v980 = vmul.u32 %v979, 24
      %v981 = vsub.s32 %v975, %v980
      %v982 = vsub.s32 0, %v981
      %v983 = vsel %vm973, %v982, %v981
      %vm984 = vcmp.lt.s32.totalorder %v836, 0
      %v985 = vsub.s32 0, %v836
      %v986 = vsel %vm984, %v985, %v836
      %v987 = vmul.u32.u64.compose %v986, 2863311531
      %v988 = vextract.low.u32 %v987
      %v989 = vextract.high.u32 %v987
      %v990 = vshrl.u32 %v989, 4
      %v991 = vmul.u32 %v990, 24
      %v992 = vsub.s32 %v986, %v991
      %v993 = vsub.s32 0, %v992
      %v994 = vsel %vm984, %v993, %v992
      %vm995 = vcmp.lt.s32.totalorder %v837, 0
      %v996 = vsub.s32 0, %v837
      %v997 = vsel %vm995, %v996, %v837
      %v998 = vmul.u32.u64.compose %v997, 2863311531
      %v999 = vextract.low.u32 %v998
      %v1000 = vextract.high.u32 %v998
      %v1001 = vshrl.u32 %v1000, 4
      %v1002 = vmul.u32 %v1001, 24
      %v1003 = vsub.s32 %v997, %v1002
      %v1004 = vsub.s32 0, %v1003
      %v1005 = vsel %vm995, %v1004, %v1003
      %vm1006 = vcmp.lt.s32.totalorder %v838, 0
      %v1007 = vsub.s32 0, %v838
      %v1008 = vsel %vm1006, %v1007, %v838
      %v1009 = vmul.u32.u64.compose %v1008, 2863311531
      %v1010 = vextract.low.u32 %v1009
      %v1011 = vextract.high.u32 %v1009
      %v1012 = vshrl.u32 %v1011, 4
      %v1013 = vmul.u32 %v1012, 24
      %v1014 = vsub.s32 %v1008, %v1013
      %v1015 = vsub.s32 0, %v1014
      %v1016 = vsel %vm1006, %v1015, %v1014
      %vm1017 = vcmp.lt.s32.totalorder %v839, 0
      %v1018 = vsub.s32 0, %v839
      %v1019 = vsel %vm1017, %v1018, %v839
      %v1020 = vmul.u32.u64.compose %v1019, 2863311531
      %v1021 = vextract.low.u32 %v1020
      %v1022 = vextract.high.u32 %v1020
      %v1023 = vshrl.u32 %v1022, 4
      %v1024 = vmul.u32 %v1023, 24
      %v1025 = vsub.s32 %v1019, %v1024
      %v1026 = vsub.s32 0, %v1025
      %v1027 = vsel %vm1017, %v1026, %v1025
      %vm1028 = vcmp.lt.s32.totalorder %v840, 0
      %v1029 = vsub.s32 0, %v840
      %v1030 = vsel %vm1028, %v1029, %v840
      %v1031 = vmul.u32.u64.compose %v1030, 2863311531
      %v1032 = vextract.low.u32 %v1031
      %v1033 = vextract.high.u32 %v1031
      %v1034 = vshrl.u32 %v1033, 4
      %v1035 = vmul.u32 %v1034, 24
      %v1036 = vsub.s32 %v1030, %v1035
      %v1037 = vsub.s32 0, %v1036
      %v1038 = vsel %vm1028, %v1037, %v1036
      %vm1039 = vcmp.lt.s32.totalorder %v841, 0
      %v1040 = vsub.s32 0, %v841
      %v1041 = vsel %vm1039, %v1040, %v841
      %v1042 = vmul.u32.u64.compose %v1041, 2863311531
      %v1043 = vextract.low.u32 %v1042
      %v1044 = vextract.high.u32 %v1042
      %v1045 = vshrl.u32 %v1044, 4
      %v1046 = vmul.u32 %v1045, 24
      %v1047 = vsub.s32 %v1041, %v1046
      %v1048 = vsub.s32 0, %v1047
      %v1049 = vsel %vm1039, %v1048, %v1047
      %vm1050 = vcmp.lt.s32.totalorder %v842, 0
      %v1051 = vsub.s32 0, %v842
      %v1052 = vsel %vm1050, %v1051, %v842
      %v1053 = vmul.u32.u64.compose %v1052, 2863311531
      %v1054 = vextract.low.u32 %v1053
      %v1055 = vextract.high.u32 %v1053
      %v1056 = vshrl.u32 %v1055, 4
      %v1057 = vmul.u32 %v1056, 24
      %v1058 = vsub.s32 %v1052, %v1057
      %v1059 = vsub.s32 0, %v1058
      %v1060 = vsel %vm1050, %v1059, %v1058
      %vm1061 = vcmp.lt.s32.totalorder %v843, 0
      %v1062 = vsub.s32 0, %v843
      %v1063 = vsel %vm1061, %v1062, %v843
      %v1064 = vmul.u32.u64.compose %v1063, 2863311531
      %v1065 = vextract.low.u32 %v1064
      %v1066 = vextract.high.u32 %v1064
      %v1067 = vshrl.u32 %v1066, 4
      %v1068 = vmul.u32 %v1067, 24
      %v1069 = vsub.s32 %v1063, %v1068
      %v1070 = vsub.s32 0, %v1069
      %v1071 = vsel %vm1061, %v1070, %v1069
      %vm1072 = vcmp.lt.s32.totalorder %v844, 0
      %v1073 = vsub.s32 0, %v844
      %v1074 = vsel %vm1072, %v1073, %v844
      %v1075 = vmul.u32.u64.compose %v1074, 2863311531
      %v1076 = vextract.low.u32 %v1075
      %v1077 = vextract.high.u32 %v1075
      %v1078 = vshrl.u32 %v1077, 4
      %v1079 = vmul.u32 %v1078, 24
      %v1080 = vsub.s32 %v1074, %v1079
      %v1081 = vsub.s32 0, %v1080
      %v1082 = vsel %vm1072, %v1081, %v1080
      %vm1083 = vcmp.lt.s32.totalorder %v845, 0
      %v1084 = vsub.s32 0, %v845
      %v1085 = vsel %vm1083, %v1084, %v845
      %v1086 = vmul.u32.u64.compose %v1085, 2863311531
      %v1087 = vextract.low.u32 %v1086
      %v1088 = vextract.high.u32 %v1086
      %v1089 = vshrl.u32 %v1088, 4
      %v1090 = vmul.u32 %v1089, 24
      %v1091 = vsub.s32 %v1085, %v1090
      %v1092 = vsub.s32 0, %v1091
      %v1093 = vsel %vm1083, %v1092, %v1091
      %vm1094 = vcmp.lt.s32.totalorder %v846, 0
      %v1095 = vsub.s32 0, %v846
      %v1096 = vsel %vm1094, %v1095, %v846
      %v1097 = vmul.u32.u64.compose %v1096, 2863311531
      %v1098 = vextract.low.u32 %v1097
      %v1099 = vextract.high.u32 %v1097
      %v1100 = vshrl.u32 %v1099, 4
      %v1101 = vmul.u32 %v1100, 24
      %v1102 = vsub.s32 %v1096, %v1101
      %v1103 = vsub.s32 0, %v1102
      %v1104 = vsel %vm1094, %v1103, %v1102
      %vm1105 = vcmp.lt.s32.totalorder %v847, 0
      %v1106 = vsub.s32 0, %v847
      %v1107 = vsel %vm1105, %v1106, %v847
      %v1108 = vmul.u32.u64.compose %v1107, 2863311531
      %v1109 = vextract.low.u32 %v1108
      %v1110 = vextract.high.u32 %v1108
      %v1111 = vshrl.u32 %v1110, 4
      %v1112 = vmul.u32 %v1111, 24
      %v1113 = vsub.s32 %v1107, %v1112
      %v1114 = vsub.s32 0, %v1113
      %v1115 = vsel %vm1105, %v1114, %v1113
      %vm1116 = vcmp.lt.s32.totalorder %v848, 0
      %v1117 = vsub.s32 0, %v848
      %v1118 = vsel %vm1116, %v1117, %v848
      %v1119 = vmul.u32.u64.compose %v1118, 2863311531
      %v1120 = vextract.low.u32 %v1119
      %v1121 = vextract.high.u32 %v1119
      %v1122 = vshrl.u32 %v1121, 4
      %v1123 = vmul.u32 %v1122, 24
      %v1124 = vsub.s32 %v1118, %v1123
      %v1125 = vsub.s32 0, %v1124
      %v1126 = vsel %vm1116, %v1125, %v1124
      %vm1127 = vcmp.lt.s32.totalorder %v849, 0
      %v1128 = vsub.s32 0, %v849
      %v1129 = vsel %vm1127, %v1128, %v849
      %v1130 = vmul.u32.u64.compose %v1129, 2863311531
      %v1131 = vextract.low.u32 %v1130
      %v1132 = vextract.high.u32 %v1130
      %v1133 = vshrl.u32 %v1132, 4
      %v1134 = vmul.u32 %v1133, 24
      %v1135 = vsub.s32 %v1129, %v1134
      %v1136 = vsub.s32 0, %v1135
      %v1137 = vsel %vm1127, %v1136, %v1135
      %vm1138 = vcmp.lt.s32.totalorder %v850, 0
      %v1139 = vsub.s32 0, %v850
      %v1140 = vsel %vm1138, %v1139, %v850
      %v1141 = vmul.u32.u64.compose %v1140, 2863311531
      %v1142 = vextract.low.u32 %v1141
      %v1143 = vextract.high.u32 %v1141
      %v1144 = vshrl.u32 %v1143, 4
      %v1145 = vmul.u32 %v1144, 24
      %v1146 = vsub.s32 %v1140, %v1145
      %v1147 = vsub.s32 0, %v1146
      %v1148 = vsel %vm1138, %v1147, %v1146
      %vm1149 = vcmp.lt.s32.totalorder %v851, 0
      %v1150 = vsub.s32 0, %v851
      %v1151 = vsel %vm1149, %v1150, %v851
      %v1152 = vmul.u32.u64.compose %v1151, 2863311531
      %v1153 = vextract.low.u32 %v1152
      %v1154 = vextract.high.u32 %v1152
      %v1155 = vshrl.u32 %v1154, 4
      %v1156 = vmul.u32 %v1155, 24
      %v1157 = vsub.s32 %v1151, %v1156
      %v1158 = vsub.s32 0, %v1157
      %v1159 = vsel %vm1149, %v1158, %v1157
      %vm1160 = vcmp.lt.s32.totalorder %v852, 0
      %v1161 = vsub.s32 0, %v852
      %v1162 = vsel %vm1160, %v1161, %v852
      %v1163 = vmul.u32.u64.compose %v1162, 2863311531
      %v1164 = vextract.low.u32 %v1163
      %v1165 = vextract.high.u32 %v1163
      %v1166 = vshrl.u32 %v1165, 4
      %v1167 = vmul.u32 %v1166, 24
      %v1168 = vsub.s32 %v1162, %v1167
      %v1169 = vsub.s32 0, %v1168
      %v1170 = vsel %vm1160, %v1169, %v1168
      %vm1171 = vcmp.lt.s32.totalorder %v853, 0
      %v1172 = vsub.s32 0, %v853
      %v1173 = vsel %vm1171, %v1172, %v853
      %v1174 = vmul.u32.u64.compose %v1173, 2863311531
      %v1175 = vextract.low.u32 %v1174
      %v1176 = vextract.high.u32 %v1174
      %v1177 = vshrl.u32 %v1176, 4
      %v1178 = vmul.u32 %v1177, 24
      %v1179 = vsub.s32 %v1173, %v1178
      %v1180 = vsub.s32 0, %v1179
      %v1181 = vsel %vm1171, %v1180, %v1179
      %vm1182 = vcmp.lt.s32.totalorder %v854, 0
      %v1183 = vsub.s32 0, %v854
      %v1184 = vsel %vm1182, %v1183, %v854
      %v1185 = vmul.u32.u64.compose %v1184, 2863311531
      %v1186 = vextract.low.u32 %v1185
      %v1187 = vextract.high.u32 %v1185
      %v1188 = vshrl.u32 %v1187, 4
      %v1189 = vmul.u32 %v1188, 24
      %v1190 = vsub.s32 %v1184, %v1189
      %v1191 = vsub.s32 0, %v1190
      %v1192 = vsel %vm1182, %v1191, %v1190
      %vm1193 = vcmp.lt.s32.totalorder %v855, 0
      %v1194 = vsub.s32 0, %v855
      %v1195 = vsel %vm1193, %v1194, %v855
      %v1196 = vmul.u32.u64.compose %v1195, 2863311531
      %v1197 = vextract.low.u32 %v1196
      %v1198 = vextract.high.u32 %v1196
      %v1199 = vshrl.u32 %v1198, 4
      %v1200 = vmul.u32 %v1199, 24
      %v1201 = vsub.s32 %v1195, %v1200
      %v1202 = vsub.s32 0, %v1201
      %v1203 = vsel %vm1193, %v1202, %v1201
      %vm1204 = vcmp.lt.s32.totalorder %v856, 0
      %v1205 = vsub.s32 0, %v856
      %v1206 = vsel %vm1204, %v1205, %v856
      %v1207 = vmul.u32.u64.compose %v1206, 2863311531
      %v1208 = vextract.low.u32 %v1207
      %v1209 = vextract.high.u32 %v1207
      %v1210 = vshrl.u32 %v1209, 4
      %v1211 = vmul.u32 %v1210, 24
      %v1212 = vsub.s32 %v1206, %v1211
      %v1213 = vsub.s32 0, %v1212
      %v1214 = vsel %vm1204, %v1213, %v1212
      %vm1215 = vcmp.lt.s32.totalorder %v857, 0
      %v1216 = vsub.s32 0, %v857
      %v1217 = vsel %vm1215, %v1216, %v857
      %v1218 = vmul.u32.u64.compose %v1217, 2863311531
      %v1219 = vextract.low.u32 %v1218
      %v1220 = vextract.high.u32 %v1218
      %v1221 = vshrl.u32 %v1220, 4
      %v1222 = vmul.u32 %v1221, 24
      %v1223 = vsub.s32 %v1217, %v1222
      %v1224 = vsub.s32 0, %v1223
      %v1225 = vsel %vm1215, %v1224, %v1223
      %vm1226 = vcmp.lt.s32.totalorder %v858, 0
      %v1227 = vsub.s32 0, %v858
      %v1228 = vsel %vm1226, %v1227, %v858
      %v1229 = vmul.u32.u64.compose %v1228, 2863311531
      %v1230 = vextract.low.u32 %v1229
      %v1231 = vextract.high.u32 %v1229
      %v1232 = vshrl.u32 %v1231, 4
      %v1233 = vmul.u32 %v1232, 24
      %v1234 = vsub.s32 %v1228, %v1233
      %v1235 = vsub.s32 0, %v1234
      %v1236 = vsel %vm1226, %v1235, %v1234
      %vm1237 = vcmp.lt.s32.totalorder %v859, 0
      %v1238 = vsub.s32 0, %v859
      %v1239 = vsel %vm1237, %v1238, %v859
      %v1240 = vmul.u32.u64.compose %v1239, 2863311531
      %v1241 = vextract.low.u32 %v1240
      %v1242 = vextract.high.u32 %v1240
      %v1243 = vshrl.u32 %v1242, 4
      %v1244 = vmul.u32 %v1243, 24
      %v1245 = vsub.s32 %v1239, %v1244
      %v1246 = vsub.s32 0, %v1245
      %v1247 = vsel %vm1237, %v1246, %v1245
      %vm1248 = vcmp.lt.s32.totalorder %v860, 0
      %v1249 = vsub.s32 0, %v860
      %v1250 = vsel %vm1248, %v1249, %v860
      %v1251 = vmul.u32.u64.compose %v1250, 2863311531
      %v1252 = vextract.low.u32 %v1251
      %v1253 = vextract.high.u32 %v1251
      %v1254 = vshrl.u32 %v1253, 4
      %v1255 = vmul.u32 %v1254, 24
      %v1256 = vsub.s32 %v1250, %v1255
      %v1257 = vsub.s32 0, %v1256
      %v1258 = vsel %vm1248, %v1257, %v1256
      %vm1259 = vcmp.lt.s32.totalorder %v861, 0
      %v1260 = vsub.s32 0, %v861
      %v1261 = vsel %vm1259, %v1260, %v861
      %v1262 = vmul.u32.u64.compose %v1261, 2863311531
      %v1263 = vextract.low.u32 %v1262
      %v1264 = vextract.high.u32 %v1262
      %v1265 = vshrl.u32 %v1264, 4
      %v1266 = vmul.u32 %v1265, 24
      %v1267 = vsub.s32 %v1261, %v1266
      %v1268 = vsub.s32 0, %v1267
      %v1269 = vsel %vm1259, %v1268, %v1267
      %vm1270 = vcmp.lt.s32.totalorder %v862, 0
      %v1271 = vsub.s32 0, %v862
      %v1272 = vsel %vm1270, %v1271, %v862
      %v1273 = vmul.u32.u64.compose %v1272, 2863311531
      %v1274 = vextract.low.u32 %v1273
      %v1275 = vextract.high.u32 %v1273
      %v1276 = vshrl.u32 %v1275, 4
      %v1277 = vmul.u32 %v1276, 24
      %v1278 = vsub.s32 %v1272, %v1277
      %v1279 = vsub.s32 0, %v1278
      %v1280 = vsel %vm1270, %v1279, %v1278
      %vm1281 = vcmp.lt.s32.totalorder %v863, 0
      %v1282 = vsub.s32 0, %v863
      %v1283 = vsel %vm1281, %v1282, %v863
      %v1284 = vmul.u32.u64.compose %v1283, 2863311531
      %v1285 = vextract.low.u32 %v1284
      %v1286 = vextract.high.u32 %v1284
      %v1287 = vshrl.u32 %v1286, 4
      %v1288 = vmul.u32 %v1287, 24
      %v1289 = vsub.s32 %v1283, %v1288
      %v1290 = vsub.s32 0, %v1289
      %v1291 = vsel %vm1281, %v1290, %v1289
      %vm1292 = vcmp.lt.s32.totalorder %v864, 0
      %v1293 = vsub.s32 0, %v864
      %v1294 = vsel %vm1292, %v1293, %v864
      %v1295 = vmul.u32.u64.compose %v1294, 2863311531
      %v1296 = vextract.low.u32 %v1295
      %v1297 = vextract.high.u32 %v1295
      %v1298 = vshrl.u32 %v1297, 4
      %v1299 = vmul.u32 %v1298, 24
      %v1300 = vsub.s32 %v1294, %v1299
      %v1301 = vsub.s32 0, %v1300
      %v1302 = vsel %vm1292, %v1301, %v1300
      %vm1303 = vcmp.lt.s32.totalorder %v865, 0
      %v1304 = vsub.s32 0, %v865
      %v1305 = vsel %vm1303, %v1304, %v865
      %v1306 = vmul.u32.u64.compose %v1305, 2863311531
      %v1307 = vextract.low.u32 %v1306
      %v1308 = vextract.high.u32 %v1306
      %v1309 = vshrl.u32 %v1308, 4
      %v1310 = vmul.u32 %v1309, 24
      %v1311 = vsub.s32 %v1305, %v1310
      %v1312 = vsub.s32 0, %v1311
      %v1313 = vsel %vm1303, %v1312, %v1311
      %vm1314 = vcmp.lt.s32.totalorder %v866, 0
      %v1315 = vsub.s32 0, %v866
      %v1316 = vsel %vm1314, %v1315, %v866
      %v1317 = vmul.u32.u64.compose %v1316, 2863311531
      %v1318 = vextract.low.u32 %v1317
      %v1319 = vextract.high.u32 %v1317
      %v1320 = vshrl.u32 %v1319, 4
      %v1321 = vmul.u32 %v1320, 24
      %v1322 = vsub.s32 %v1316, %v1321
      %v1323 = vsub.s32 0, %v1322
      %v1324 = vsel %vm1314, %v1323, %v1322
      %vm1325 = vcmp.lt.s32.totalorder %v867, 0
      %v1326 = vsub.s32 0, %v867
      %v1327 = vsel %vm1325, %v1326, %v867
      %v1328 = vmul.u32.u64.compose %v1327, 2863311531
      %v1329 = vextract.low.u32 %v1328
      %v1330 = vextract.high.u32 %v1328
      %v1331 = vshrl.u32 %v1330, 4
      %v1332 = vmul.u32 %v1331, 24
      %v1333 = vsub.s32 %v1327, %v1332
      %v1334 = vsub.s32 0, %v1333
      %v1335 = vsel %vm1325, %v1334, %v1333
      %vm1336 = vcmp.lt.s32.totalorder %v868, 0
      %v1337 = vsub.s32 0, %v868
      %v1338 = vsel %vm1336, %v1337, %v868
      %v1339 = vmul.u32.u64.compose %v1338, 2863311531
      %v1340 = vextract.low.u32 %v1339
      %v1341 = vextract.high.u32 %v1339
      %v1342 = vshrl.u32 %v1341, 4
      %v1343 = vmul.u32 %v1342, 24
      %v1344 = vsub.s32 %v1338, %v1343
      %v1345 = vsub.s32 0, %v1344
      %v1346 = vsel %vm1336, %v1345, %v1344
      %vm1347 = vcmp.lt.s32.totalorder %v869, 0
      %v1348 = vsub.s32 0, %v869
      %v1349 = vsel %vm1347, %v1348, %v869
      %v1350 = vmul.u32.u64.compose %v1349, 2863311531
      %v1351 = vextract.low.u32 %v1350
      %v1352 = vextract.high.u32 %v1350
      %v1353 = vshrl.u32 %v1352, 4
      %v1354 = vmul.u32 %v1353, 24
      %v1355 = vsub.s32 %v1349, %v1354
      %v1356 = vsub.s32 0, %v1355
      %v1357 = vsel %vm1347, %v1356, %v1355
      %vm1358 = vcmp.lt.s32.totalorder %v870, 0
      %v1359 = vsub.s32 0, %v870
      %v1360 = vsel %vm1358, %v1359, %v870
      %v1361 = vmul.u32.u64.compose %v1360, 2863311531
      %v1362 = vextract.low.u32 %v1361
      %v1363 = vextract.high.u32 %v1361
      %v1364 = vshrl.u32 %v1363, 4
      %v1365 = vmul.u32 %v1364, 24
      %v1366 = vsub.s32 %v1360, %v1365
      %v1367 = vsub.s32 0, %v1366
      %v1368 = vsel %vm1358, %v1367, %v1366
      %vm1369 = vcmp.lt.s32.totalorder %v871, 0
      %v1370 = vsub.s32 0, %v871
      %v1371 = vsel %vm1369, %v1370, %v871
      %v1372 = vmul.u32.u64.compose %v1371, 2863311531
      %v1373 = vextract.low.u32 %v1372
      %v1374 = vextract.high.u32 %v1372
      %v1375 = vshrl.u32 %v1374, 4
      %v1376 = vmul.u32 %v1375, 24
      %v1377 = vsub.s32 %v1371, %v1376
      %v1378 = vsub.s32 0, %v1377
      %v1379 = vsel %vm1369, %v1378, %v1377
      %vm1380 = vcmp.lt.s32.totalorder %v872, 0
      %v1381 = vsub.s32 0, %v872
      %v1382 = vsel %vm1380, %v1381, %v872
      %v1383 = vmul.u32.u64.compose %v1382, 2863311531
      %v1384 = vextract.low.u32 %v1383
      %v1385 = vextract.high.u32 %v1383
      %v1386 = vshrl.u32 %v1385, 4
      %v1387 = vmul.u32 %v1386, 24
      %v1388 = vsub.s32 %v1382, %v1387
      %v1389 = vsub.s32 0, %v1388
      %v1390 = vsel %vm1380, %v1389, %v1388
      %vm1391 = vcmp.lt.s32.totalorder %v873, 0
      %v1392 = vsub.s32 0, %v873
      %v1393 = vsel %vm1391, %v1392, %v873
      %v1394 = vmul.u32.u64.compose %v1393, 2863311531
      %v1395 = vextract.low.u32 %v1394
      %v1396 = vextract.high.u32 %v1394
      %v1397 = vshrl.u32 %v1396, 4
      %v1398 = vmul.u32 %v1397, 24
      %v1399 = vsub.s32 %v1393, %v1398
      %v1400 = vsub.s32 0, %v1399
      %v1401 = vsel %vm1391, %v1400, %v1399
      %vm1402 = vcmp.ne.s32.totalorder %v884, 0
      %vm1403 = vcmp.ne.s32.totalorder %v895, 0
      %vm1404 = vcmp.ne.s32.totalorder %v906, 0
      %vm1405 = vcmp.ne.s32.totalorder %v917, 0
      %vm1406 = vcmp.ne.s32.totalorder %v928, 0
      %vm1407 = vcmp.ne.s32.totalorder %v939, 0
      %vm1408 = vcmp.ne.s32.totalorder %v950, 0
      %vm1409 = vcmp.ne.s32.totalorder %v961, 0
      %vm1410 = vcmp.ne.s32.totalorder %v972, 0
      %vm1411 = vcmp.ne.s32.totalorder %v983, 0
      %vm1412 = vcmp.ne.s32.totalorder %v994, 0
      %vm1413 = vcmp.ne.s32.totalorder %v1005, 0
      %vm1414 = vcmp.ne.s32.totalorder %v1016, 0
      %vm1415 = vcmp.ne.s32.totalorder %v1027, 0
      %vm1416 = vcmp.ne.s32.totalorder %v1038, 0
      %vm1417 = vcmp.ne.s32.totalorder %v1049, 0
      %vm1418 = vcmp.ne.s32.totalorder %v1060, 0
      %vm1419 = vcmp.ne.s32.totalorder %v1071, 0
      %vm1420 = vcmp.ne.s32.totalorder %v1082, 0
      %vm1421 = vcmp.ne.s32.totalorder %v1093, 0
      %vm1422 = vcmp.ne.s32.totalorder %v1104, 0
      %vm1423 = vcmp.ne.s32.totalorder %v1115, 0
      %vm1424 = vcmp.ne.s32.totalorder %v1126, 0
      %vm1425 = vcmp.ne.s32.totalorder %v1137, 0
      %vm1426 = vcmp.ne.s32.totalorder %v1148, 0
      %vm1427 = vcmp.ne.s32.totalorder %v1159, 0
      %vm1428 = vcmp.ne.s32.totalorder %v1170, 0
      %vm1429 = vcmp.ne.s32.totalorder %v1181, 0
      %vm1430 = vcmp.ne.s32.totalorder %v1192, 0
      %vm1431 = vcmp.ne.s32.totalorder %v1203, 0
      %vm1432 = vcmp.ne.s32.totalorder %v1214, 0
      %vm1433 = vcmp.ne.s32.totalorder %v1225, 0
      %vm1434 = vcmp.ne.s32.totalorder %v1236, 0
      %vm1435 = vcmp.ne.s32.totalorder %v1247, 0
      %vm1436 = vcmp.ne.s32.totalorder %v1258, 0
      %vm1437 = vcmp.ne.s32.totalorder %v1269, 0
      %vm1438 = vcmp.ne.s32.totalorder %v1280, 0
      %vm1439 = vcmp.ne.s32.totalorder %v1291, 0
      %vm1440 = vcmp.ne.s32.totalorder %v1302, 0
      %vm1441 = vcmp.ne.s32.totalorder %v1313, 0
      %vm1442 = vcmp.ne.s32.totalorder %v1324, 0
      %vm1443 = vcmp.ne.s32.totalorder %v1335, 0
      %vm1444 = vcmp.ne.s32.totalorder %v1346, 0
      %vm1445 = vcmp.ne.s32.totalorder %v1357, 0
      %vm1446 = vcmp.ne.s32.totalorder %v1368, 0
      %vm1447 = vcmp.ne.s32.totalorder %v1379, 0
      %vm1448 = vcmp.ne.s32.totalorder %v1390, 0
      %vm1449 = vcmp.ne.s32.totalorder %v1401, 0
      %vm1450 = vcmp.lt.s32.totalorder %v884, 0
      %vm1451 = vcmp.lt.s32.totalorder %v895, 0
      %vm1452 = vcmp.lt.s32.totalorder %v906, 0
      %vm1453 = vcmp.lt.s32.totalorder %v917, 0
      %vm1454 = vcmp.lt.s32.totalorder %v928, 0
      %vm1455 = vcmp.lt.s32.totalorder %v939, 0
      %vm1456 = vcmp.lt.s32.totalorder %v950, 0
      %vm1457 = vcmp.lt.s32.totalorder %v961, 0
      %vm1458 = vcmp.lt.s32.totalorder %v972, 0
      %vm1459 = vcmp.lt.s32.totalorder %v983, 0
      %vm1460 = vcmp.lt.s32.totalorder %v994, 0
      %vm1461 = vcmp.lt.s32.totalorder %v1005, 0
      %vm1462 = vcmp.lt.s32.totalorder %v1016, 0
      %vm1463 = vcmp.lt.s32.totalorder %v1027, 0
      %vm1464 = vcmp.lt.s32.totalorder %v1038, 0
      %vm1465 = vcmp.lt.s32.totalorder %v1049, 0
      %vm1466 = vcmp.lt.s32.totalorder %v1060, 0
      %vm1467 = vcmp.lt.s32.totalorder %v1071, 0
      %vm1468 = vcmp.lt.s32.totalorder %v1082, 0
      %vm1469 = vcmp.lt.s32.totalorder %v1093, 0
      %vm1470 = vcmp.lt.s32.totalorder %v1104, 0
      %vm1471 = vcmp.lt.s32.totalorder %v1115, 0
      %vm1472 = vcmp.lt.s32.totalorder %v1126, 0
      %vm1473 = vcmp.lt.s32.totalorder %v1137, 0
      %vm1474 = vcmp.lt.s32.totalorder %v1148, 0
      %vm1475 = vcmp.lt.s32.totalorder %v1159, 0
      %vm1476 = vcmp.lt.s32.totalorder %v1170, 0
      %vm1477 = vcmp.lt.s32.totalorder %v1181, 0
      %vm1478 = vcmp.lt.s32.totalorder %v1192, 0
      %vm1479 = vcmp.lt.s32.totalorder %v1203, 0
      %vm1480 = vcmp.lt.s32.totalorder %v1214, 0
      %vm1481 = vcmp.lt.s32.totalorder %v1225, 0
      %vm1482 = vcmp.lt.s32.totalorder %v1236, 0
      %vm1483 = vcmp.lt.s32.totalorder %v1247, 0
      %vm1484 = vcmp.lt.s32.totalorder %v1258, 0
      %vm1485 = vcmp.lt.s32.totalorder %v1269, 0
      %vm1486 = vcmp.lt.s32.totalorder %v1280, 0
      %vm1487 = vcmp.lt.s32.totalorder %v1291, 0
      %vm1488 = vcmp.lt.s32.totalorder %v1302, 0
      %vm1489 = vcmp.lt.s32.totalorder %v1313, 0
      %vm1490 = vcmp.lt.s32.totalorder %v1324, 0
      %vm1491 = vcmp.lt.s32.totalorder %v1335, 0
      %vm1492 = vcmp.lt.s32.totalorder %v1346, 0
      %vm1493 = vcmp.lt.s32.totalorder %v1357, 0
      %vm1494 = vcmp.lt.s32.totalorder %v1368, 0
      %vm1495 = vcmp.lt.s32.totalorder %v1379, 0
      %vm1496 = vcmp.lt.s32.totalorder %v1390, 0
      %vm1497 = vcmp.lt.s32.totalorder %v1401, 0
      %vm1498 = vmand %vm1450, %vm1402
      %vm1499 = vmand %vm1451, %vm1403
      %vm1500 = vmand %vm1452, %vm1404
      %vm1501 = vmand %vm1453, %vm1405
      %vm1502 = vmand %vm1454, %vm1406
      %vm1503 = vmand %vm1455, %vm1407
      %vm1504 = vmand %vm1456, %vm1408
      %vm1505 = vmand %vm1457, %vm1409
      %vm1506 = vmand %vm1458, %vm1410
      %vm1507 = vmand %vm1459, %vm1411
      %vm1508 = vmand %vm1460, %vm1412
      %vm1509 = vmand %vm1461, %vm1413
      %vm1510 = vmand %vm1462, %vm1414
      %vm1511 = vmand %vm1463, %vm1415
      %vm1512 = vmand %vm1464, %vm1416
      %vm1513 = vmand %vm1465, %vm1417
      %vm1514 = vmand %vm1466, %vm1418
      %vm1515 = vmand %vm1467, %vm1419
      %vm1516 = vmand %vm1468, %vm1420
      %vm1517 = vmand %vm1469, %vm1421
      %vm1518 = vmand %vm1470, %vm1422
      %vm1519 = vmand %vm1471, %vm1423
      %vm1520 = vmand %vm1472, %vm1424
      %vm1521 = vmand %vm1473, %vm1425
      %vm1522 = vmand %vm1474, %vm1426
      %vm1523 = vmand %vm1475, %vm1427
      %vm1524 = vmand %vm1476, %vm1428
      %vm1525 = vmand %vm1477, %vm1429
      %vm1526 = vmand %vm1478, %vm1430
      %vm1527 = vmand %vm1479, %vm1431
      %vm1528 = vmand %vm1480, %vm1432
      %vm1529 = vmand %vm1481, %vm1433
      %vm1530 = vmand %vm1482, %vm1434
      %vm1531 = vmand %vm1483, %vm1435
      %vm1532 = vmand %vm1484, %vm1436
      %vm1533 = vmand %vm1485, %vm1437
      %vm1534 = vmand %vm1486, %vm1438
      %vm1535 = vmand %vm1487, %vm1439
      %vm1536 = vmand %vm1488, %vm1440
      %vm1537 = vmand %vm1489, %vm1441
      %vm1538 = vmand %vm1490, %vm1442
      %vm1539 = vmand %vm1491, %vm1443
      %vm1540 = vmand %vm1492, %vm1444
      %vm1541 = vmand %vm1493, %vm1445
      %vm1542 = vmand %vm1494, %vm1446
      %vm1543 = vmand %vm1495, %vm1447
      %vm1544 = vmand %vm1496, %vm1448
      %vm1545 = vmand %vm1497, %vm1449
      %v1546 = vadd.s32 %v884, 24
      %v1547 = vadd.s32 %v895, 24
      %v1548 = vadd.s32 %v906, 24
      %v1549 = vadd.s32 %v917, 24
      %v1550 = vadd.s32 %v928, 24
      %v1551 = vadd.s32 %v939, 24
      %v1552 = vadd.s32 %v950, 24
      %v1553 = vadd.s32 %v961, 24
      %v1554 = vadd.s32 %v972, 24
      %v1555 = vadd.s32 %v983, 24
      %v1556 = vadd.s32 %v994, 24
      %v1557 = vadd.s32 %v1005, 24
      %v1558 = vadd.s32 %v1016, 24
      %v1559 = vadd.s32 %v1027, 24
      %v1560 = vadd.s32 %v1038, 24
      %v1561 = vadd.s32 %v1049, 24
      %v1562 = vadd.s32 %v1060, 24
      %v1563 = vadd.s32 %v1071, 24
      %v1564 = vadd.s32 %v1082, 24
      %v1565 = vadd.s32 %v1093, 24
      %v1566 = vadd.s32 %v1104, 24
      %v1567 = vadd.s32 %v1115, 24
      %v1568 = vadd.s32 %v1126, 24
      %v1569 = vadd.s32 %v1137, 24
      %v1570 = vadd.s32 %v1148, 24
      %v1571 = vadd.s32 %v1159, 24
      %v1572 = vadd.s32 %v1170, 24
      %v1573 = vadd.s32 %v1181, 24
      %v1574 = vadd.s32 %v1192, 24
      %v1575 = vadd.s32 %v1203, 24
      %v1576 = vadd.s32 %v1214, 24
      %v1577 = vadd.s32 %v1225, 24
      %v1578 = vadd.s32 %v1236, 24
      %v1579 = vadd.s32 %v1247, 24
      %v1580 = vadd.s32 %v1258, 24
      %v1581 = vadd.s32 %v1269, 24
      %v1582 = vadd.s32 %v1280, 24
      %v1583 = vadd.s32 %v1291, 24
      %v1584 = vadd.s32 %v1302, 24
      %v1585 = vadd.s32 %v1313, 24
      %v1586 = vadd.s32 %v1324, 24
      %v1587 = vadd.s32 %v1335, 24
      %v1588 = vadd.s32 %v1346, 24
      %v1589 = vadd.s32 %v1357, 24
      %v1590 = vadd.s32 %v1368, 24
      %v1591 = vadd.s32 %v1379, 24
      %v1592 = vadd.s32 %v1390, 24
      %v1593 = vadd.s32 %v1401, 24
      %v1594 = vsel %vm1498, %v1546, %v884
      %v1595 = vsel %vm1499, %v1547, %v895
      %v1596 = vsel %vm1500, %v1548, %v906
      %v1597 = vsel %vm1501, %v1549, %v917
      %v1598 = vsel %vm1502, %v1550, %v928
      %v1599 = vsel %vm1503, %v1551, %v939
      %v1600 = vsel %vm1504, %v1552, %v950
      %v1601 = vsel %vm1505, %v1553, %v961
      %v1602 = vsel %vm1506, %v1554, %v972
      %v1603 = vsel %vm1507, %v1555, %v983
      %v1604 = vsel %vm1508, %v1556, %v994
      %v1605 = vsel %vm1509, %v1557, %v1005
      %v1606 = vsel %vm1510, %v1558, %v1016
      %v1607 = vsel %vm1511, %v1559, %v1027
      %v1608 = vsel %vm1512, %v1560, %v1038
      %v1609 = vsel %vm1513, %v1561, %v1049
      %v1610 = vsel %vm1514, %v1562, %v1060
      %v1611 = vsel %vm1515, %v1563, %v1071
      %v1612 = vsel %vm1516, %v1564, %v1082
      %v1613 = vsel %vm1517, %v1565, %v1093
      %v1614 = vsel %vm1518, %v1566, %v1104
      %v1615 = vsel %vm1519, %v1567, %v1115
      %v1616 = vsel %vm1520, %v1568, %v1126
      %v1617 = vsel %vm1521, %v1569, %v1137
      %v1618 = vsel %vm1522, %v1570, %v1148
      %v1619 = vsel %vm1523, %v1571, %v1159
      %v1620 = vsel %vm1524, %v1572, %v1170
      %v1621 = vsel %vm1525, %v1573, %v1181
      %v1622 = vsel %vm1526, %v1574, %v1192
      %v1623 = vsel %vm1527, %v1575, %v1203
      %v1624 = vsel %vm1528, %v1576, %v1214
      %v1625 = vsel %vm1529, %v1577, %v1225
      %v1626 = vsel %vm1530, %v1578, %v1236
      %v1627 = vsel %vm1531, %v1579, %v1247
      %v1628 = vsel %vm1532, %v1580, %v1258
      %v1629 = vsel %vm1533, %v1581, %v1269
      %v1630 = vsel %vm1534, %v1582, %v1280
      %v1631 = vsel %vm1535, %v1583, %v1291
      %v1632 = vsel %vm1536, %v1584, %v1302
      %v1633 = vsel %vm1537, %v1585, %v1313
      %v1634 = vsel %vm1538, %v1586, %v1324
      %v1635 = vsel %vm1539, %v1587, %v1335
      %v1636 = vsel %vm1540, %v1588, %v1346
      %v1637 = vsel %vm1541, %v1589, %v1357
      %v1638 = vsel %vm1542, %v1590, %v1368
      %v1639 = vsel %vm1543, %v1591, %v1379
      %v1640 = vsel %vm1544, %v1592, %v1390
      %v1641 = vsel %vm1545, %v1593, %v1401
      %vm1642 = vcmp.lt.s32.totalorder %v1594, 16
      %vm1643 = vcmp.lt.s32.totalorder %v1595, 16
      %vm1644 = vcmp.lt.s32.totalorder %v1596, 16
      %vm1645 = vcmp.lt.s32.totalorder %v1597, 16
      %vm1646 = vcmp.lt.s32.totalorder %v1598, 16
      %vm1647 = vcmp.lt.s32.totalorder %v1599, 16
      %vm1648 = vcmp.lt.s32.totalorder %v1600, 16
      %vm1649 = vcmp.lt.s32.totalorder %v1601, 16
      %vm1650 = vcmp.lt.s32.totalorder %v1602, 16
      %vm1651 = vcmp.lt.s32.totalorder %v1603, 16
      %vm1652 = vcmp.lt.s32.totalorder %v1604, 16
      %vm1653 = vcmp.lt.s32.totalorder %v1605, 16
      %vm1654 = vcmp.lt.s32.totalorder %v1606, 16
      %vm1655 = vcmp.lt.s32.totalorder %v1607, 16
      %vm1656 = vcmp.lt.s32.totalorder %v1608, 16
      %vm1657 = vcmp.lt.s32.totalorder %v1609, 16
      %vm1658 = vcmp.lt.s32.totalorder %v1610, 16
      %vm1659 = vcmp.lt.s32.totalorder %v1611, 16
      %vm1660 = vcmp.lt.s32.totalorder %v1612, 16
      %vm1661 = vcmp.lt.s32.totalorder %v1613, 16
      %vm1662 = vcmp.lt.s32.totalorder %v1614, 16
      %vm1663 = vcmp.lt.s32.totalorder %v1615, 16
      %vm1664 = vcmp.lt.s32.totalorder %v1616, 16
      %vm1665 = vcmp.lt.s32.totalorder %v1617, 16
      %vm1666 = vcmp.lt.s32.totalorder %v1618, 16
      %vm1667 = vcmp.lt.s32.totalorder %v1619, 16
      %vm1668 = vcmp.lt.s32.totalorder %v1620, 16
      %vm1669 = vcmp.lt.s32.totalorder %v1621, 16
      %vm1670 = vcmp.lt.s32.totalorder %v1622, 16
      %vm1671 = vcmp.lt.s32.totalorder %v1623, 16
      %vm1672 = vcmp.lt.s32.totalorder %v1624, 16
      %vm1673 = vcmp.lt.s32.totalorder %v1625, 16
      %vm1674 = vcmp.lt.s32.totalorder %v1626, 16
      %vm1675 = vcmp.lt.s32.totalorder %v1627, 16
      %vm1676 = vcmp.lt.s32.totalorder %v1628, 16
      %vm1677 = vcmp.lt.s32.totalorder %v1629, 16
      %vm1678 = vcmp.lt.s32.totalorder %v1630, 16
      %vm1679 = vcmp.lt.s32.totalorder %v1631, 16
      %vm1680 = vcmp.lt.s32.totalorder %v1632, 16
      %vm1681 = vcmp.lt.s32.totalorder %v1633, 16
      %vm1682 = vcmp.lt.s32.totalorder %v1634, 16
      %vm1683 = vcmp.lt.s32.totalorder %v1635, 16
      %vm1684 = vcmp.lt.s32.totalorder %v1636, 16
      %vm1685 = vcmp.lt.s32.totalorder %v1637, 16
      %vm1686 = vcmp.lt.s32.totalorder %v1638, 16
      %vm1687 = vcmp.lt.s32.totalorder %v1639, 16
      %vm1688 = vcmp.lt.s32.totalorder %v1640, 16
      %vm1689 = vcmp.lt.s32.totalorder %v1641, 16
      %v1690 = vsel %vm1642, 1, 0
      %v1691 = vsel %vm1643, 1, 0
      %v1692 = vsel %vm1644, 1, 0
      %v1693 = vsel %vm1645, 1, 0
      %v1694 = vsel %vm1646, 1, 0
      %v1695 = vsel %vm1647, 1, 0
      %v1696 = vsel %vm1648, 1, 0
      %v1697 = vsel %vm1649, 1, 0
      %v1698 = vsel %vm1650, 1, 0
      %v1699 = vsel %vm1651, 1, 0
      %v1700 = vsel %vm1652, 1, 0
      %v1701 = vsel %vm1653, 1, 0
      %v1702 = vsel %vm1654, 1, 0
      %v1703 = vsel %vm1655, 1, 0
      %v1704 = vsel %vm1656, 1, 0
      %v1705 = vsel %vm1657, 1, 0
      %v1706 = vsel %vm1658, 1, 0
      %v1707 = vsel %vm1659, 1, 0
      %v1708 = vsel %vm1660, 1, 0
      %v1709 = vsel %vm1661, 1, 0
      %v1710 = vsel %vm1662, 1, 0
      %v1711 = vsel %vm1663, 1, 0
      %v1712 = vsel %vm1664, 1, 0
      %v1713 = vsel %vm1665, 1, 0
      %v1714 = vsel %vm1666, 1, 0
      %v1715 = vsel %vm1667, 1, 0
      %v1716 = vsel %vm1668, 1, 0
      %v1717 = vsel %vm1669, 1, 0
      %v1718 = vsel %vm1670, 1, 0
      %v1719 = vsel %vm1671, 1, 0
      %v1720 = vsel %vm1672, 1, 0
      %v1721 = vsel %vm1673, 1, 0
      %v1722 = vsel %vm1674, 1, 0
      %v1723 = vsel %vm1675, 1, 0
      %v1724 = vsel %vm1676, 1, 0
      %v1725 = vsel %vm1677, 1, 0
      %v1726 = vsel %vm1678, 1, 0
      %v1727 = vsel %vm1679, 1, 0
      %v1728 = vsel %vm1680, 1, 0
      %v1729 = vsel %vm1681, 1, 0
      %v1730 = vsel %vm1682, 1, 0
      %v1731 = vsel %vm1683, 1, 0
      %v1732 = vsel %vm1684, 1, 0
      %v1733 = vsel %vm1685, 1, 0
      %v1734 = vsel %vm1686, 1, 0
      %v1735 = vsel %vm1687, 1, 0
      %v1736 = vsel %vm1688, 1, 0
      %v1737 = vsel %vm1689, 1, 0
      %vm1738 = vcmp.eq.s32.totalorder %v1690, 1
      %vm1739 = vcmp.eq.s32.totalorder %v1691, 1
      %vm1740 = vcmp.eq.s32.totalorder %v1692, 1
      %vm1741 = vcmp.eq.s32.totalorder %v1693, 1
      %vm1742 = vcmp.eq.s32.totalorder %v1694, 1
      %vm1743 = vcmp.eq.s32.totalorder %v1695, 1
      %vm1744 = vcmp.eq.s32.totalorder %v1696, 1
      %vm1745 = vcmp.eq.s32.totalorder %v1697, 1
      %vm1746 = vcmp.eq.s32.totalorder %v1698, 1
      %vm1747 = vcmp.eq.s32.totalorder %v1699, 1
      %vm1748 = vcmp.eq.s32.totalorder %v1700, 1
      %vm1749 = vcmp.eq.s32.totalorder %v1701, 1
      %vm1750 = vcmp.eq.s32.totalorder %v1702, 1
      %vm1751 = vcmp.eq.s32.totalorder %v1703, 1
      %vm1752 = vcmp.eq.s32.totalorder %v1704, 1
      %vm1753 = vcmp.eq.s32.totalorder %v1705, 1
      %vm1754 = vcmp.eq.s32.totalorder %v1706, 1
      %vm1755 = vcmp.eq.s32.totalorder %v1707, 1
      %vm1756 = vcmp.eq.s32.totalorder %v1708, 1
      %vm1757 = vcmp.eq.s32.totalorder %v1709, 1
      %vm1758 = vcmp.eq.s32.totalorder %v1710, 1
      %vm1759 = vcmp.eq.s32.totalorder %v1711, 1
      %vm1760 = vcmp.eq.s32.totalorder %v1712, 1
      %vm1761 = vcmp.eq.s32.totalorder %v1713, 1
      %vm1762 = vcmp.eq.s32.totalorder %v1714, 1
      %vm1763 = vcmp.eq.s32.totalorder %v1715, 1
      %vm1764 = vcmp.eq.s32.totalorder %v1716, 1
      %vm1765 = vcmp.eq.s32.totalorder %v1717, 1
      %vm1766 = vcmp.eq.s32.totalorder %v1718, 1
      %vm1767 = vcmp.eq.s32.totalorder %v1719, 1
      %vm1768 = vcmp.eq.s32.totalorder %v1720, 1
      %vm1769 = vcmp.eq.s32.totalorder %v1721, 1
      %vm1770 = vcmp.eq.s32.totalorder %v1722, 1
      %vm1771 = vcmp.eq.s32.totalorder %v1723, 1
      %vm1772 = vcmp.eq.s32.totalorder %v1724, 1
      %vm1773 = vcmp.eq.s32.totalorder %v1725, 1
      %vm1774 = vcmp.eq.s32.totalorder %v1726, 1
      %vm1775 = vcmp.eq.s32.totalorder %v1727, 1
      %vm1776 = vcmp.eq.s32.totalorder %v1728, 1
      %vm1777 = vcmp.eq.s32.totalorder %v1729, 1
      %vm1778 = vcmp.eq.s32.totalorder %v1730, 1
      %vm1779 = vcmp.eq.s32.totalorder %v1731, 1
      %vm1780 = vcmp.eq.s32.totalorder %v1732, 1
      %vm1781 = vcmp.eq.s32.totalorder %v1733, 1
      %vm1782 = vcmp.eq.s32.totalorder %v1734, 1
      %vm1783 = vcmp.eq.s32.totalorder %v1735, 1
      %vm1784 = vcmp.eq.s32.totalorder %v1736, 1
      %vm1785 = vcmp.eq.s32.totalorder %v1737, 1
      %v1786 = vsel %vm1738, %v777, 0.0
      %v1787 = vsel %vm1739, %v778, 0.0
      %v1788 = vsel %vm1740, %v779, 0.0
      %v1789 = vsel %vm1741, %v780, 0.0
      %v1790 = vsel %vm1742, %v781, 0.0
      %v1791 = vsel %vm1743, %v782, 0.0
      %v1792 = vsel %vm1744, %v783, 0.0
      %v1793 = vsel %vm1745, %v784, 0.0
      %v1794 = vsel %vm1746, %v785, 0.0
      %v1795 = vsel %vm1747, %v786, 0.0
      %v1796 = vsel %vm1748, %v787, 0.0
      %v1797 = vsel %vm1749, %v788, 0.0
      %v1798 = vsel %vm1750, %v789, 0.0
      %v1799 = vsel %vm1751, %v790, 0.0
      %v1800 = vsel %vm1752, %v791, 0.0
      %v1801 = vsel %vm1753, %v792, 0.0
      %v1802 = vsel %vm1754, %v793, 0.0
      %v1803 = vsel %vm1755, %v794, 0.0
      %v1804 = vsel %vm1756, %v795, 0.0
      %v1805 = vsel %vm1757, %v796, 0.0
      %v1806 = vsel %vm1758, %v797, 0.0
      %v1807 = vsel %vm1759, %v798, 0.0
      %v1808 = vsel %vm1760, %v799, 0.0
      %v1809 = vsel %vm1761, %v800, 0.0
      %v1810 = vsel %vm1762, %v801, 0.0
      %v1811 = vsel %vm1763, %v802, 0.0
      %v1812 = vsel %vm1764, %v803, 0.0
      %v1813 = vsel %vm1765, %v804, 0.0
      %v1814 = vsel %vm1766, %v805, 0.0
      %v1815 = vsel %vm1767, %v806, 0.0
      %v1816 = vsel %vm1768, %v807, 0.0
      %v1817 = vsel %vm1769, %v808, 0.0
      %v1818 = vsel %vm1770, %v809, 0.0
      %v1819 = vsel %vm1771, %v810, 0.0
      %v1820 = vsel %vm1772, %v811, 0.0
      %v1821 = vsel %vm1773, %v812, 0.0
      %v1822 = vsel %vm1774, %v813, 0.0
      %v1823 = vsel %vm1775, %v814, 0.0
      %v1824 = vsel %vm1776, %v815, 0.0
      %v1825 = vsel %vm1777, %v816, 0.0
      %v1826 = vsel %vm1778, %v817, 0.0
      %v1827 = vsel %vm1779, %v818, 0.0
      %v1828 = vsel %vm1780, %v819, 0.0
      %v1829 = vsel %vm1781, %v820, 0.0
      %v1830 = vsel %vm1782, %v821, 0.0
      %v1831 = vsel %vm1783, %v822, 0.0
      %v1832 = vsel %vm1784, %v823, 0.0
      %v1833 = vsel %vm1785, %v824, 0.0
      %v1834 = vpack.c.bf16 %v1787, %v1786
      %v1835 = vpack.c.bf16 %v1789, %v1788
      %v1836 = vpack.c.bf16 %v1791, %v1790
      %v1837 = vpack.c.bf16 %v1793, %v1792
      %v1838 = vpack.c.bf16 %v1795, %v1794
      %v1839 = vpack.c.bf16 %v1797, %v1796
      %v1840 = vpack.c.bf16 %v1799, %v1798
      %v1841 = vpack.c.bf16 %v1801, %v1800
      %v1842 = vpack.c.bf16 %v1803, %v1802
      %v1843 = vpack.c.bf16 %v1805, %v1804
      %v1844 = vpack.c.bf16 %v1807, %v1806
      %v1845 = vpack.c.bf16 %v1809, %v1808
      %v1846 = vpack.c.bf16 %v1811, %v1810
      %v1847 = vpack.c.bf16 %v1813, %v1812
      %v1848 = vpack.c.bf16 %v1815, %v1814
      %v1849 = vpack.c.bf16 %v1817, %v1816
      %v1850 = vpack.c.bf16 %v1819, %v1818
      %v1851 = vpack.c.bf16 %v1821, %v1820
      %v1852 = vpack.c.bf16 %v1823, %v1822
      %v1853 = vpack.c.bf16 %v1825, %v1824
      %v1854 = vpack.c.bf16 %v1827, %v1826
      %v1855 = vpack.c.bf16 %v1829, %v1828
      %v1856 = vpack.c.bf16 %v1831, %v1830
      %v1857 = vpack.c.bf16 %v1833, %v1832
      %vm1858 = vcmask 519168
      %1859 = vst.msk [vmem:[#allocation2] sm:$0xf] %vm1858, 0
      %1860 = vst.msk [vmem:[#allocation2 + $0x4] sm:$0xf] %vm1858, 0
      %1861 = vst.msk [vmem:[#allocation2 + $0x8] sm:$0xf] %vm1858, 0
      %vm1862 = vcmask 516096
      %vm1863 = vsmask.f32 256
      %vm1864 = vmand %vm1862, %vm1863
      %v1865 = vld [vmem:[#allocation2 + $0xc] sm:$0x1]
      %v1866 = vsel %vm1864, 0, %v1865
      %1867 = vst [vmem:[#allocation2 + $0xc] sm:$0x1] %v1866
      %vm1868 = vcmask 519168
      %vm1869 = vsmask.f32 7938
      %vm1870 = vmand %vm1868, %vm1869
      %v1871 = vld [vmem:[#allocation2 + $0xcc] sm:$0xf]
      %v1872 = vsel %vm1870, 0, %v1871
      %1873 = vst [vmem:[#allocation2 + $0xcc] sm:$0xf] %v1872
      %1874 = vst.msk [vmem:[#allocation2 + $0xd0] sm:$0xf] %vm1858, 0
      %1875 = vst.msk [vmem:[#allocation2 + $0xd4] sm:$0xf] %vm1858, 0
      %vm1876 = vcmask 516096
      %1877 = vst.msk [vmem:[#allocation2 + $0xd8] sm:$0x1] %vm1876, 0
      %v1902 = vunpack.c.l.b16 %v1834
      %v1903 = vunpack.c.h.b16 %v1834
      %v1904 = vunpack.c.l.b16 %v1835
      %v1905 = vunpack.c.h.b16 %v1835
      %v1906 = vunpack.c.l.b16 %v1836
      %v1907 = vunpack.c.h.b16 %v1836
      %v1908 = vunpack.c.l.b16 %v1837
      %v1909 = vunpack.c.h.b16 %v1837
      %v1910 = vunpack.c.l.b16 %v1838
      %v1911 = vunpack.c.h.b16 %v1838
      %v1912 = vunpack.c.l.b16 %v1839
      %v1913 = vunpack.c.h.b16 %v1839
      %v1914 = vunpack.c.l.b16 %v1840
      %v1915 = vunpack.c.h.b16 %v1840
      %v1916 = vunpack.c.l.b16 %v1841
      %v1917 = vunpack.c.h.b16 %v1841
      %v1918 = vunpack.c.l.b16 %v1842
      %v1919 = vunpack.c.h.b16 %v1842
      %v1920 = vunpack.c.l.b16 %v1843
      %v1921 = vunpack.c.h.b16 %v1843
      %v1922 = vunpack.c.l.b16 %v1844
      %v1923 = vunpack.c.h.b16 %v1844
      %v1924 = vunpack.c.l.b16 %v1845
      %v1925 = vunpack.c.h.b16 %v1845
      %v1926 = vunpack.c.l.b16 %v1846
      %v1927 = vunpack.c.h.b16 %v1846
      %v1928 = vunpack.c.l.b16 %v1847
      %v1929 = vunpack.c.h.b16 %v1847
      %v1930 = vunpack.c.l.b16 %v1848
      %v1931 = vunpack.c.h.b16 %v1848
      %v1932 = vunpack.c.l.b16 %v1849
      %v1933 = vunpack.c.h.b16 %v1849
      %v1934 = vunpack.c.l.b16 %v1850
      %v1935 = vunpack.c.h.b16 %v1850
      %v1936 = vunpack.c.l.b16 %v1851
      %v1937 = vunpack.c.h.b16 %v1851
      %v1938 = vunpack.c.l.b16 %v1852
      %v1939 = vunpack.c.h.b16 %v1852
      %v1940 = vunpack.c.l.b16 %v1853
      %v1941 = vunpack.c.h.b16 %v1853
      %v1942 = vunpack.c.l.b16 %v1854
      %v1943 = vunpack.c.h.b16 %v1854
      %v1944 = vunpack.c.l.b16 %v1855
      %v1945 = vunpack.c.h.b16 %v1855
      %v1946 = vunpack.c.l.b16 %v1856
      %v1947 = vunpack.c.h.b16 %v1856
      %v1948 = vunpack.c.l.b16 %v1857
      %v1949 = vunpack.c.h.b16 %v1857
      %v1950 = vpack.c.b16 %v1902, %v1902
      %v1951 = vpack.c.b16 %v1903, %v1903
      %v1952 = vpack.c.b16 %v1904, %v1904
      %v1953 = vpack.c.b16 %v1905, %v1905
      %v1954 = vpack.c.b16 %v1906, %v1906
      %v1955 = vpack.c.b16 %v1907, %v1907
      %v1956 = vpack.c.b16 %v1908, %v1908
      %v1957 = vpack.c.b16 %v1909, %v1909
      %v1958 = vpack.c.b16 %v1910, %v1910
      %v1959 = vpack.c.b16 %v1911, %v1911
      %v1960 = vpack.c.b16 %v1912, %v1912
      %v1961 = vpack.c.b16 %v1913, %v1913
      %v1962 = vpack.c.b16 %v1914, %v1914
      %v1963 = vpack.c.b16 %v1915, %v1915
      %v1964 = vpack.c.b16 %v1916, %v1916
      %v1965 = vpack.c.b16 %v1917, %v1917
      %v1966 = vpack.c.b16 %v1918, %v1918
      %v1967 = vpack.c.b16 %v1919, %v1919
      %v1968 = vpack.c.b16 %v1920, %v1920
      %v1969 = vpack.c.b16 %v1921, %v1921
      %v1970 = vpack.c.b16 %v1922, %v1922
      %v1971 = vpack.c.b16 %v1923, %v1923
      %v1972 = vpack.c.b16 %v1924, %v1924
      %v1973 = vpack.c.b16 %v1925, %v1925
      %v1974 = vpack.c.b16 %v1926, %v1926
      %v1975 = vpack.c.b16 %v1927, %v1927
      %v1976 = vpack.c.b16 %v1928, %v1928
      %v1977 = vpack.c.b16 %v1929, %v1929
      %v1978 = vpack.c.b16 %v1930, %v1930
      %v1979 = vpack.c.b16 %v1931, %v1931
      %v1980 = vpack.c.b16 %v1932, %v1932
      %v1981 = vpack.c.b16 %v1933, %v1933
      %v1982 = vpack.c.b16 %v1934, %v1934
      %v1983 = vpack.c.b16 %v1935, %v1935
      %v1984 = vpack.c.b16 %v1936, %v1936
      %v1985 = vpack.c.b16 %v1937, %v1937
      %v1986 = vpack.c.b16 %v1938, %v1938
      %v1987 = vpack.c.b16 %v1939, %v1939
      %v1988 = vpack.c.b16 %v1940, %v1940
      %v1989 = vpack.c.b16 %v1941, %v1941
      %v1990 = vpack.c.b16 %v1942, %v1942
      %v1991 = vpack.c.b16 %v1943, %v1943
      %v1992 = vpack.c.b16 %v1944, %v1944
      %v1993 = vpack.c.b16 %v1945, %v1945
      %v1994 = vpack.c.b16 %v1946, %v1946
      %v1995 = vpack.c.b16 %v1947, %v1947
      %v1996 = vpack.c.b16 %v1948, %v1948
      %v1997 = vpack.c.b16 %v1949, %v1949
      %vm1998 = vsmask.f32 4368
      %vm1999 = vmor %vm1863, %vm1998
      %v2001 = vshrl.u32 %v1950, 16
      %v2003 = vrot.slane %v2001, 7
      %v2004 = vshll.u32 %v1950, 16
      %v2006 = vor.u32 %v2003, %v2004
      %v2007 = vrot.slane %v2003, 4
      %v2009 = vshrl.u32 %v1951, 16
      %v2011 = vrot.slane %v2009, 7
      %v2012 = vshll.u32 %v1951, 16
      %v2014 = vor.u32 %v2011, %v2012
      %v2015 = vsel %vm1999, %v2007, %v2014
      %v2016 = vrot.slane %v2011, 4
      %v2018 = vshrl.u32 %v1952, 16
      %v2020 = vrot.slane %v2018, 7
      %v2021 = vshll.u32 %v1952, 16
      %v2023 = vor.u32 %v2020, %v2021
      %v2024 = vsel %vm1999, %v2016, %v2023
      %v2025 = vrot.slane %v2020, 4
      %v2027 = vshrl.u32 %v1953, 16
      %v2029 = vrot.slane %v2027, 7
      %v2030 = vshll.u32 %v1953, 16
      %v2032 = vor.u32 %v2029, %v2030
      %v2033 = vsel %vm1999, %v2025, %v2032
      %v2034 = vrot.slane %v2029, 4
      %v2036 = vshrl.u32 %v1954, 16
      %v2038 = vrot.slane %v2036, 7
      %v2039 = vshll.u32 %v1954, 16
      %v2041 = vor.u32 %v2038, %v2039
      %v2042 = vsel %vm1999, %v2034, %v2041
      %v2043 = vrot.slane %v2038, 4
      %v2045 = vshrl.u32 %v1955, 16
      %v2047 = vrot.slane %v2045, 7
      %v2048 = vshll.u32 %v1955, 16
      %v2050 = vor.u32 %v2047, %v2048
      %v2051 = vsel %vm1999, %v2043, %v2050
      %v2052 = vrot.slane %v2047, 4
      %v2054 = vshrl.u32 %v1956, 16
      %v2056 = vrot.slane %v2054, 7
      %v2057 = vshll.u32 %v1956, 16
      %v2059 = vor.u32 %v2056, %v2057
      %v2060 = vsel %vm1999, %v2052, %v2059
      %v2061 = vrot.slane %v2056, 4
      %v2063 = vshrl.u32 %v1957, 16
      %v2065 = vrot.slane %v2063, 7
      %v2066 = vshll.u32 %v1957, 16
      %v2068 = vor.u32 %v2065, %v2066
      %v2069 = vsel %vm1999, %v2061, %v2068
      %v2070 = vrot.slane %v2065, 4
      %v2072 = vshrl.u32 %v1958, 16
      %v2074 = vrot.slane %v2072, 7
      %v2075 = vshll.u32 %v1958, 16
      %v2077 = vor.u32 %v2074, %v2075
      %v2078 = vsel %vm1999, %v2070, %v2077
      %v2079 = vrot.slane %v2074, 4
      %v2081 = vshrl.u32 %v1959, 16
      %v2083 = vrot.slane %v2081, 7
      %v2084 = vshll.u32 %v1959, 16
      %v2086 = vor.u32 %v2083, %v2084
      %v2087 = vsel %vm1999, %v2079, %v2086
      %v2088 = vrot.slane %v2083, 4
      %v2090 = vshrl.u32 %v1960, 16
      %v2092 = vrot.slane %v2090, 7
      %v2093 = vshll.u32 %v1960, 16
      %v2095 = vor.u32 %v2092, %v2093
      %v2096 = vsel %vm1999, %v2088, %v2095
      %v2097 = vrot.slane %v2092, 4
      %v2099 = vshrl.u32 %v1961, 16
      %v2101 = vrot.slane %v2099, 7
      %v2102 = vshll.u32 %v1961, 16
      %v2104 = vor.u32 %v2101, %v2102
      %v2105 = vsel %vm1999, %v2097, %v2104
      %v2106 = vrot.slane %v2101, 4
      %v2108 = vshrl.u32 %v1962, 16
      %v2110 = vrot.slane %v2108, 7
      %v2111 = vshll.u32 %v1962, 16
      %v2113 = vor.u32 %v2110, %v2111
      %v2114 = vsel %vm1999, %v2106, %v2113
      %v2115 = vrot.slane %v2110, 4
      %v2117 = vshrl.u32 %v1963, 16
      %v2119 = vrot.slane %v2117, 7
      %v2120 = vshll.u32 %v1963, 16
      %v2122 = vor.u32 %v2119, %v2120
      %v2123 = vsel %vm1999, %v2115, %v2122
      %v2124 = vrot.slane %v2119, 4
      %v2126 = vshrl.u32 %v1964, 16
      %v2128 = vrot.slane %v2126, 7
      %v2129 = vshll.u32 %v1964, 16
      %v2131 = vor.u32 %v2128, %v2129
      %v2132 = vsel %vm1999, %v2124, %v2131
      %v2133 = vrot.slane %v2128, 4
      %v2135 = vshrl.u32 %v1965, 16
      %v2137 = vrot.slane %v2135, 7
      %v2138 = vshll.u32 %v1965, 16
      %v2140 = vor.u32 %v2137, %v2138
      %v2141 = vsel %vm1999, %v2133, %v2140
      %v2142 = vrot.slane %v2137, 4
      %v2144 = vshrl.u32 %v1966, 16
      %v2146 = vrot.slane %v2144, 7
      %v2147 = vshll.u32 %v1966, 16
      %v2149 = vor.u32 %v2146, %v2147
      %v2150 = vsel %vm1999, %v2142, %v2149
      %v2151 = vrot.slane %v2146, 4
      %v2153 = vshrl.u32 %v1967, 16
      %v2155 = vrot.slane %v2153, 7
      %v2156 = vshll.u32 %v1967, 16
      %v2158 = vor.u32 %v2155, %v2156
      %v2159 = vsel %vm1999, %v2151, %v2158
      %v2160 = vrot.slane %v2155, 4
      %v2162 = vshrl.u32 %v1968, 16
      %v2164 = vrot.slane %v2162, 7
      %v2165 = vshll.u32 %v1968, 16
      %v2167 = vor.u32 %v2164, %v2165
      %v2168 = vsel %vm1999, %v2160, %v2167
      %v2169 = vrot.slane %v2164, 4
      %v2171 = vshrl.u32 %v1969, 16
      %v2173 = vrot.slane %v2171, 7
      %v2174 = vshll.u32 %v1969, 16
      %v2176 = vor.u32 %v2173, %v2174
      %v2177 = vsel %vm1999, %v2169, %v2176
      %v2178 = vrot.slane %v2173, 4
      %v2180 = vshrl.u32 %v1970, 16
      %v2182 = vrot.slane %v2180, 7
      %v2183 = vshll.u32 %v1970, 16
      %v2185 = vor.u32 %v2182, %v2183
      %v2186 = vsel %vm1999, %v2178, %v2185
      %v2187 = vrot.slane %v2182, 4
      %v2189 = vshrl.u32 %v1971, 16
      %v2191 = vrot.slane %v2189, 7
      %v2192 = vshll.u32 %v1971, 16
      %v2194 = vor.u32 %v2191, %v2192
      %v2195 = vsel %vm1999, %v2187, %v2194
      %v2196 = vrot.slane %v2191, 4
      %v2198 = vshrl.u32 %v1972, 16
      %v2200 = vrot.slane %v2198, 7
      %v2201 = vshll.u32 %v1972, 16
      %v2203 = vor.u32 %v2200, %v2201
      %v2204 = vsel %vm1999, %v2196, %v2203
      %v2205 = vrot.slane %v2200, 4
      %v2207 = vshrl.u32 %v1973, 16
      %v2209 = vrot.slane %v2207, 7
      %v2210 = vshll.u32 %v1973, 16
      %v2212 = vor.u32 %v2209, %v2210
      %v2213 = vsel %vm1999, %v2205, %v2212
      %v2214 = vrot.slane %v2209, 4
      %v2216 = vshrl.u32 %v1974, 16
      %v2218 = vrot.slane %v2216, 7
      %v2219 = vshll.u32 %v1974, 16
      %v2221 = vor.u32 %v2218, %v2219
      %v2222 = vsel %vm1999, %v2214, %v2221
      %v2223 = vrot.slane %v2218, 4
      %v2225 = vshrl.u32 %v1975, 16
      %v2227 = vrot.slane %v2225, 7
      %v2228 = vshll.u32 %v1975, 16
      %v2230 = vor.u32 %v2227, %v2228
      %v2231 = vsel %vm1999, %v2223, %v2230
      %v2232 = vrot.slane %v2227, 4
      %v2234 = vshrl.u32 %v1976, 16
      %v2236 = vrot.slane %v2234, 7
      %v2237 = vshll.u32 %v1976, 16
      %v2239 = vor.u32 %v2236, %v2237
      %v2240 = vsel %vm1999, %v2232, %v2239
      %v2241 = vrot.slane %v2236, 4
      %v2243 = vshrl.u32 %v1977, 16
      %v2245 = vrot.slane %v2243, 7
      %v2246 = vshll.u32 %v1977, 16
      %v2248 = vor.u32 %v2245, %v2246
      %v2249 = vsel %vm1999, %v2241, %v2248
      %v2250 = vrot.slane %v2245, 4
      %v2252 = vshrl.u32 %v1978, 16
      %v2254 = vrot.slane %v2252, 7
      %v2255 = vshll.u32 %v1978, 16
      %v2257 = vor.u32 %v2254, %v2255
      %v2258 = vsel %vm1999, %v2250, %v2257
      %v2259 = vrot.slane %v2254, 4
      %v2261 = vshrl.u32 %v1979, 16
      %v2263 = vrot.slane %v2261, 7
      %v2264 = vshll.u32 %v1979, 16
      %v2266 = vor.u32 %v2263, %v2264
      %v2267 = vsel %vm1999, %v2259, %v2266
      %v2268 = vrot.slane %v2263, 4
      %v2270 = vshrl.u32 %v1980, 16
      %v2272 = vrot.slane %v2270, 7
      %v2273 = vshll.u32 %v1980, 16
      %v2275 = vor.u32 %v2272, %v2273
      %v2276 = vsel %vm1999, %v2268, %v2275
      %v2277 = vrot.slane %v2272, 4
      %v2279 = vshrl.u32 %v1981, 16
      %v2281 = vrot.slane %v2279, 7
      %v2282 = vshll.u32 %v1981, 16
      %v2284 = vor.u32 %v2281, %v2282
      %v2285 = vsel %vm1999, %v2277, %v2284
      %v2286 = vrot.slane %v2281, 4
      %v2288 = vshrl.u32 %v1982, 16
      %v2290 = vrot.slane %v2288, 7
      %v2291 = vshll.u32 %v1982, 16
      %v2293 = vor.u32 %v2290, %v2291
      %v2294 = vsel %vm1999, %v2286, %v2293
      %v2295 = vrot.slane %v2290, 4
      %v2297 = vshrl.u32 %v1983, 16
      %v2299 = vrot.slane %v2297, 7
      %v2300 = vshll.u32 %v1983, 16
      %v2302 = vor.u32 %v2299, %v2300
      %v2303 = vsel %vm1999, %v2295, %v2302
      %v2304 = vrot.slane %v2299, 4
      %v2306 = vshrl.u32 %v1984, 16
      %v2308 = vrot.slane %v2306, 7
      %v2309 = vshll.u32 %v1984, 16
      %v2311 = vor.u32 %v2308, %v2309
      %v2312 = vsel %vm1999, %v2304, %v2311
      %v2313 = vrot.slane %v2308, 4
      %v2315 = vshrl.u32 %v1985, 16
      %v2317 = vrot.slane %v2315, 7
      %v2318 = vshll.u32 %v1985, 16
      %v2320 = vor.u32 %v2317, %v2318
      %v2321 = vsel %vm1999, %v2313, %v2320
      %v2322 = vrot.slane %v2317, 4
      %v2324 = vshrl.u32 %v1986, 16
      %v2326 = vrot.slane %v2324, 7
      %v2327 = vshll.u32 %v1986, 16
      %v2329 = vor.u32 %v2326, %v2327
      %v2330 = vsel %vm1999, %v2322, %v2329
      %v2331 = vrot.slane %v2326, 4
      %v2333 = vshrl.u32 %v1987, 16
      %v2335 = vrot.slane %v2333, 7
      %v2336 = vshll.u32 %v1987, 16
      %v2338 = vor.u32 %v2335, %v2336
      %v2339 = vsel %vm1999, %v2331, %v2338
      %v2340 = vrot.slane %v2335, 4
      %v2342 = vshrl.u32 %v1988, 16
      %v2344 = vrot.slane %v2342, 7
      %v2345 = vshll.u32 %v1988, 16
      %v2347 = vor.u32 %v2344, %v2345
      %v2348 = vsel %vm1999, %v2340, %v2347
      %v2349 = vrot.slane %v2344, 4
      %v2351 = vshrl.u32 %v1989, 16
      %v2353 = vrot.slane %v2351, 7
      %v2354 = vshll.u32 %v1989, 16
      %v2356 = vor.u32 %v2353, %v2354
      %v2357 = vsel %vm1999, %v2349, %v2356
      %v2358 = vrot.slane %v2353, 4
      %v2360 = vshrl.u32 %v1990, 16
      %v2362 = vrot.slane %v2360, 7
      %v2363 = vshll.u32 %v1990, 16
      %v2365 = vor.u32 %v2362, %v2363
      %v2366 = vsel %vm1999, %v2358, %v2365
      %v2367 = vrot.slane %v2362, 4
      %v2369 = vshrl.u32 %v1991, 16
      %v2371 = vrot.slane %v2369, 7
      %v2372 = vshll.u32 %v1991, 16
      %v2374 = vor.u32 %v2371, %v2372
      %v2375 = vsel %vm1999, %v2367, %v2374
      %v2376 = vrot.slane %v2371, 4
      %v2378 = vshrl.u32 %v1992, 16
      %v2380 = vrot.slane %v2378, 7
      %v2381 = vshll.u32 %v1992, 16
      %v2383 = vor.u32 %v2380, %v2381
      %v2384 = vsel %vm1999, %v2376, %v2383
      %v2385 = vrot.slane %v2380, 4
      %v2387 = vshrl.u32 %v1993, 16
      %v2389 = vrot.slane %v2387, 7
      %v2390 = vshll.u32 %v1993, 16
      %v2392 = vor.u32 %v2389, %v2390
      %v2393 = vsel %vm1999, %v2385, %v2392
      %v2394 = vrot.slane %v2389, 4
      %v2396 = vshrl.u32 %v1994, 16
      %v2398 = vrot.slane %v2396, 7
      %v2399 = vshll.u32 %v1994, 16
      %v2401 = vor.u32 %v2398, %v2399
      %v2402 = vsel %vm1999, %v2394, %v2401
      %v2403 = vrot.slane %v2398, 4
      %v2405 = vshrl.u32 %v1995, 16
      %v2407 = vrot.slane %v2405, 7
      %v2408 = vshll.u32 %v1995, 16
      %v2410 = vor.u32 %v2407, %v2408
      %v2411 = vsel %vm1999, %v2403, %v2410
      %v2412 = vrot.slane %v2407, 4
      %v2414 = vshrl.u32 %v1996, 16
      %v2416 = vrot.slane %v2414, 7
      %v2417 = vshll.u32 %v1996, 16
      %v2419 = vor.u32 %v2416, %v2417
      %v2420 = vsel %vm1999, %v2412, %v2419
      %v2421 = vrot.slane %v2416, 4
      %v2423 = vshrl.u32 %v1997, 16
      %v2425 = vrot.slane %v2423, 7
      %v2426 = vshll.u32 %v1997, 16
      %v2428 = vor.u32 %v2425, %v2426
      %v2429 = vsel %vm1999, %v2421, %v2428
      %v2430 = vrot.slane %v2425, 4
      %v2480 = vld [vmem:[#allocation2 + $0xc] sm:$0xf]
      %v2481 = vsel %vm1870, %v2006, %v2480
      %2482 = vst [vmem:[#allocation2 + $0xc] sm:$0xf] %v2481
      %2483 = vst.msk [vmem:[#allocation2 + $0x10] sm:$0xf] %vm1858, %v2015
      %2484 = vst.msk [vmem:[#allocation2 + $0x14] sm:$0xf] %vm1858, %v2024
      %2485 = vst.msk [vmem:[#allocation2 + $0x18] sm:$0xf] %vm1858, %v2033
      %2486 = vst.msk [vmem:[#allocation2 + $0x1c] sm:$0xf] %vm1858, %v2042
      %2487 = vst.msk [vmem:[#allocation2 + $0x20] sm:$0xf] %vm1858, %v2051
      %2488 = vst.msk [vmem:[#allocation2 + $0x24] sm:$0xf] %vm1858, %v2060
      %2489 = vst.msk [vmem:[#allocation2 + $0x28] sm:$0xf] %vm1858, %v2069
      %2490 = vst.msk [vmem:[#allocation2 + $0x2c] sm:$0xf] %vm1858, %v2078
      %2491 = vst.msk [vmem:[#allocation2 + $0x30] sm:$0xf] %vm1858, %v2087
      %2492 = vst.msk [vmem:[#allocation2 + $0x34] sm:$0xf] %vm1858, %v2096
      %2493 = vst.msk [vmem:[#allocation2 + $0x38] sm:$0xf] %vm1858, %v2105
      %2494 = vst.msk [vmem:[#allocation2 + $0x3c] sm:$0xf] %vm1858, %v2114
      %2495 = vst.msk [vmem:[#allocation2 + $0x40] sm:$0xf] %vm1858, %v2123
      %2496 = vst.msk [vmem:[#allocation2 + $0x44] sm:$0xf] %vm1858, %v2132
      %2497 = vst.msk [vmem:[#allocation2 + $0x48] sm:$0xf] %vm1858, %v2141
      %2498 = vst.msk [vmem:[#allocation2 + $0x4c] sm:$0xf] %vm1858, %v2150
      %2499 = vst.msk [vmem:[#allocation2 + $0x50] sm:$0xf] %vm1858, %v2159
      %2500 = vst.msk [vmem:[#allocation2 + $0x54] sm:$0xf] %vm1858, %v2168
      %2501 = vst.msk [vmem:[#allocation2 + $0x58] sm:$0xf] %vm1858, %v2177
      %2502 = vst.msk [vmem:[#allocation2 + $0x5c] sm:$0xf] %vm1858, %v2186
      %2503 = vst.msk [vmem:[#allocation2 + $0x60] sm:$0xf] %vm1858, %v2195
      %2504 = vst.msk [vmem:[#allocation2 + $0x64] sm:$0xf] %vm1858, %v2204
      %2505 = vst.msk [vmem:[#allocation2 + $0x68] sm:$0xf] %vm1858, %v2213
      %2506 = vst.msk [vmem:[#allocation2 + $0x6c] sm:$0xf] %vm1858, %v2222
      %2507 = vst.msk [vmem:[#allocation2 + $0x70] sm:$0xf] %vm1858, %v2231
      %2508 = vst.msk [vmem:[#allocation2 + $0x74] sm:$0xf] %vm1858, %v2240
      %2509 = vst.msk [vmem:[#allocation2 + $0x78] sm:$0xf] %vm1858, %v2249
      %2510 = vst.msk [vmem:[#allocation2 + $0x7c] sm:$0xf] %vm1858, %v2258
      %2511 = vst.msk [vmem:[#allocation2 + $0x80] sm:$0xf] %vm1858, %v2267
      %2512 = vst.msk [vmem:[#allocation2 + $0x84] sm:$0xf] %vm1858, %v2276
      %2513 = vst.msk [vmem:[#allocation2 + $0x88] sm:$0xf] %vm1858, %v2285
      %2514 = vst.msk [vmem:[#allocation2 + $0x8c] sm:$0xf] %vm1858, %v2294
      %2515 = vst.msk [vmem:[#allocation2 + $0x90] sm:$0xf] %vm1858, %v2303
      %2516 = vst.msk [vmem:[#allocation2 + $0x94] sm:$0xf] %vm1858, %v2312
      %2517 = vst.msk [vmem:[#allocation2 + $0x98] sm:$0xf] %vm1858, %v2321
      %2518 = vst.msk [vmem:[#allocation2 + $0x9c] sm:$0xf] %vm1858, %v2330
      %2519 = vst.msk [vmem:[#allocation2 + $0xa0] sm:$0xf] %vm1858, %v2339
      %2520 = vst.msk [vmem:[#allocation2 + $0xa4] sm:$0xf] %vm1858, %v2348
      %2521 = vst.msk [vmem:[#allocation2 + $0xa8] sm:$0xf] %vm1858, %v2357
      %2522 = vst.msk [vmem:[#allocation2 + $0xac] sm:$0xf] %vm1858, %v2366
      %2523 = vst.msk [vmem:[#allocation2 + $0xb0] sm:$0xf] %vm1858, %v2375
      %2524 = vst.msk [vmem:[#allocation2 + $0xb4] sm:$0xf] %vm1858, %v2384
      %2525 = vst.msk [vmem:[#allocation2 + $0xb8] sm:$0xf] %vm1858, %v2393
      %2526 = vst.msk [vmem:[#allocation2 + $0xbc] sm:$0xf] %vm1858, %v2402
      %2527 = vst.msk [vmem:[#allocation2 + $0xc0] sm:$0xf] %vm1858, %v2411
      %2528 = vst.msk [vmem:[#allocation2 + $0xc4] sm:$0xf] %vm1858, %v2420
      %2529 = vst.msk [vmem:[#allocation2 + $0xc8] sm:$0xf] %vm1858, %v2429
      %v2530 = vld [vmem:[#allocation2 + $0xcc] sm:$0x1]
      %v2531 = vsel %vm1864, %v2430, %v2530
      %2532 = vst [vmem:[#allocation2 + $0xcc] sm:$0x1] %v2531
      %v2533 = vld [vmem:[#allocation2] sm:$0xf]
      %v2534 = vld [vmem:[#allocation2 + $0x4] sm:$0xf]
      %v2535 = vld [vmem:[#allocation2 + $0x8] sm:$0xf]
      %v2536 = vld [vmem:[#allocation2 + $0xc] sm:$0xf]
      %v2537 = vld [vmem:[#allocation2 + $0x10] sm:$0xf]
      %v2538 = vld [vmem:[#allocation2 + $0x14] sm:$0xf]
      %v2539 = vld [vmem:[#allocation2 + $0x18] sm:$0xf]
      %v2540 = vld [vmem:[#allocation2 + $0x1c] sm:$0xf]
      %v2541 = vld [vmem:[#allocation2 + $0x20] sm:$0xf]
      %v2542 = vld [vmem:[#allocation2 + $0x24] sm:$0xf]
      %v2543 = vld [vmem:[#allocation2 + $0x28] sm:$0xf]
      %v2544 = vld [vmem:[#allocation2 + $0x2c] sm:$0xf]
      %v2545 = vld [vmem:[#allocation2 + $0x30] sm:$0xf]
      %v2546 = vld [vmem:[#allocation2 + $0x34] sm:$0xf]
      %v2547 = vld [vmem:[#allocation2 + $0x38] sm:$0xf]
      %v2548 = vld [vmem:[#allocation2 + $0x3c] sm:$0xf]
      %v2549 = vld [vmem:[#allocation2 + $0x40] sm:$0xf]
      %v2550 = vld [vmem:[#allocation2 + $0x44] sm:$0xf]
      %v2551 = vld [vmem:[#allocation2 + $0x48] sm:$0xf]
      %v2552 = vld [vmem:[#allocation2 + $0x4c] sm:$0xf]
      %v2553 = vld [vmem:[#allocation2 + $0x50] sm:$0xf]
      %v2554 = vld [vmem:[#allocation2 + $0x54] sm:$0xf]
      %v2555 = vld [vmem:[#allocation2 + $0x58] sm:$0xf]
      %v2556 = vld [vmem:[#allocation2 + $0x5c] sm:$0xf]
      %v2557 = vld [vmem:[#allocation2 + $0x60] sm:$0xf]
      %v2558 = vld [vmem:[#allocation2 + $0x64] sm:$0xf]
      %v2559 = vld [vmem:[#allocation2 + $0x68] sm:$0xf]
      %v2560 = vld [vmem:[#allocation2 + $0x6c] sm:$0xf]
      %v2561 = vld [vmem:[#allocation2 + $0x70] sm:$0xf]
      %v2562 = vld [vmem:[#allocation2 + $0x74] sm:$0xf]
      %v2563 = vld [vmem:[#allocation2 + $0x78] sm:$0xf]
      %v2564 = vld [vmem:[#allocation2 + $0x7c] sm:$0xf]
      %v2565 = vld [vmem:[#allocation2 + $0x80] sm:$0xf]
      %v2566 = vld [vmem:[#allocation2 + $0x84] sm:$0xf]
      %v2567 = vld [vmem:[#allocation2 + $0x88] sm:$0xf]
      %v2568 = vld [vmem:[#allocation2 + $0x8c] sm:$0xf]
      %v2569 = vld [vmem:[#allocation2 + $0x90] sm:$0xf]
      %v2570 = vld [vmem:[#allocation2 + $0x94] sm:$0xf]
      %v2571 = vld [vmem:[#allocation2 + $0x98] sm:$0xf]
      %v2572 = vld [vmem:[#allocation2 + $0x9c] sm:$0xf]
      %v2573 = vld [vmem:[#allocation2 + $0xa0] sm:$0xf]
      %v2574 = vld [vmem:[#allocation2 + $0xa4] sm:$0xf]
      %v2575 = vld [vmem:[#allocation2 + $0xa8] sm:$0xf]
      %v2576 = vld [vmem:[#allocation2 + $0xac] sm:$0xf]
      %v2577 = vld [vmem:[#allocation2 + $0xb0] sm:$0xf]
      %v2578 = vld [vmem:[#allocation2 + $0xb4] sm:$0xf]
      %v2579 = vld [vmem:[#allocation2 + $0xb8] sm:$0xf]
      %v2580 = vld [vmem:[#allocation2 + $0xbc] sm:$0xf]
      %v2629 = vunpack.c.l.b16 %v2533
      %v2630 = vunpack.c.l.b16 %v2534
      %v2631 = vunpack.c.l.b16 %v2535
      %v2632 = vunpack.c.l.b16 %v2536
      %v2633 = vunpack.c.l.b16 %v2537
      %v2634 = vunpack.c.l.b16 %v2538
      %v2635 = vunpack.c.l.b16 %v2539
      %v2636 = vunpack.c.l.b16 %v2540
      %v2637 = vunpack.c.l.b16 %v2541
      %v2638 = vunpack.c.l.b16 %v2542
      %v2639 = vunpack.c.l.b16 %v2543
      %v2640 = vunpack.c.l.b16 %v2544
      %v2641 = vunpack.c.l.b16 %v2545
      %v2642 = vunpack.c.l.b16 %v2546
      %v2643 = vunpack.c.l.b16 %v2547
      %v2644 = vunpack.c.l.b16 %v2548
      %v2645 = vunpack.c.l.b16 %v2549
      %v2646 = vunpack.c.l.b16 %v2550
      %v2647 = vunpack.c.l.b16 %v2551
      %v2648 = vunpack.c.l.b16 %v2552
      %v2649 = vunpack.c.l.b16 %v2553
      %v2650 = vunpack.c.l.b16 %v2554
      %v2651 = vunpack.c.l.b16 %v2555
      %v2652 = vunpack.c.l.b16 %v2556
      %v2653 = vunpack.c.l.b16 %v2557
      %v2654 = vunpack.c.l.b16 %v2558
      %v2655 = vunpack.c.l.b16 %v2559
      %v2656 = vunpack.c.l.b16 %v2560
      %v2657 = vunpack.c.l.b16 %v2561
      %v2658 = vunpack.c.l.b16 %v2562
      %v2659 = vunpack.c.l.b16 %v2563
      %v2660 = vunpack.c.l.b16 %v2564
      %v2661 = vunpack.c.l.b16 %v2565
      %v2662 = vunpack.c.l.b16 %v2566
      %v2663 = vunpack.c.l.b16 %v2567
      %v2664 = vunpack.c.l.b16 %v2568
      %v2665 = vunpack.c.l.b16 %v2569
      %v2666 = vunpack.c.l.b16 %v2570
      %v2667 = vunpack.c.l.b16 %v2571
      %v2668 = vunpack.c.l.b16 %v2572
      %v2669 = vunpack.c.l.b16 %v2573
      %v2670 = vunpack.c.l.b16 %v2574
      %v2671 = vunpack.c.l.b16 %v2575
      %v2672 = vunpack.c.l.b16 %v2576
      %v2673 = vunpack.c.l.b16 %v2577
      %v2674 = vunpack.c.l.b16 %v2578
      %v2675 = vunpack.c.l.b16 %v2579
      %v2676 = vunpack.c.l.b16 %v2580
      %v2677 = vpack.c.b16 %v2630, %v2629
      %v2678 = vpack.c.b16 %v2632, %v2631
      %v2679 = vpack.c.b16 %v2634, %v2633
      %v2680 = vpack.c.b16 %v2636, %v2635
      %v2681 = vpack.c.b16 %v2638, %v2637
      %v2682 = vpack.c.b16 %v2640, %v2639
      %v2683 = vpack.c.b16 %v2642, %v2641
      %v2684 = vpack.c.b16 %v2644, %v2643
      %v2685 = vpack.c.b16 %v2646, %v2645
      %v2686 = vpack.c.b16 %v2648, %v2647
      %v2687 = vpack.c.b16 %v2650, %v2649
      %v2688 = vpack.c.b16 %v2652, %v2651
      %v2689 = vpack.c.b16 %v2654, %v2653
      %v2690 = vpack.c.b16 %v2656, %v2655
      %v2691 = vpack.c.b16 %v2658, %v2657
      %v2692 = vpack.c.b16 %v2660, %v2659
      %v2693 = vpack.c.b16 %v2662, %v2661
      %v2694 = vpack.c.b16 %v2664, %v2663
      %v2695 = vpack.c.b16 %v2666, %v2665
      %v2696 = vpack.c.b16 %v2668, %v2667
      %v2697 = vpack.c.b16 %v2670, %v2669
      %v2698 = vpack.c.b16 %v2672, %v2671
      %v2699 = vpack.c.b16 %v2674, %v2673
      %v2700 = vpack.c.b16 %v2676, %v2675
      %vm2725 = vcmask 523264
      %2726 = vst.msk [vmem:[#allocation3] sm:$0xff] %vm2725, %v2677
      %2727 = vst.msk [vmem:[#allocation3 + $0x28] sm:$0xff] %vm2725, %v2678
      %2728 = vst.msk [vmem:[#allocation3 + $0x50] sm:$0xff] %vm2725, %v2679
      %2729 = vst.msk [vmem:[#allocation3 + $0x78] sm:$0xff] %vm2725, %v2680
      %2730 = vst.msk [vmem:[#allocation3 + $0xa0] sm:$0xff] %vm2725, %v2681
      %2731 = vst.msk [vmem:[#allocation3 + $0xc8] sm:$0xff] %vm2725, %v2682
      %2732 = vst.msk [vmem:[#allocation3 + $0xf0] sm:$0xff] %vm2725, %v2683
      %2733 = vst.msk [vmem:[#allocation3 + $0x118] sm:$0xff] %vm2725, %v2684
      %2734 = vst.msk [vmem:[#allocation3 + $0x140] sm:$0xff] %vm2725, %v2685
      %2735 = vst.msk [vmem:[#allocation3 + $0x168] sm:$0xff] %vm2725, %v2686
      %2736 = vst.msk [vmem:[#allocation3 + $0x190] sm:$0xff] %vm2725, %v2687
      %2737 = vst.msk [vmem:[#allocation3 + $0x1b8] sm:$0xff] %vm2725, %v2688
      %2738 = vst.msk [vmem:[#allocation3 + $0x1e0] sm:$0xff] %vm2725, %v2689
      %2739 = vst.msk [vmem:[#allocation3 + $0x208] sm:$0xff] %vm2725, %v2690
      %2740 = vst.msk [vmem:[#allocation3 + $0x230] sm:$0xff] %vm2725, %v2691
      %2741 = vst.msk [vmem:[#allocation3 + $0x258] sm:$0xff] %vm2725, %v2692
      %2742 = vst.msk [vmem:[#allocation3 + $0x280] sm:$0xff] %vm2725, %v2693
      %2743 = vst.msk [vmem:[#allocation3 + $0x2a8] sm:$0xff] %vm2725, %v2694
      %2744 = vst.msk [vmem:[#allocation3 + $0x2d0] sm:$0xff] %vm2725, %v2695
      %2745 = vst.msk [vmem:[#allocation3 + $0x2f8] sm:$0xff] %vm2725, %v2696
      %2746 = vst.msk [vmem:[#allocation3 + $0x320] sm:$0xff] %vm2725, %v2697
      %2747 = vst.msk [vmem:[#allocation3 + $0x348] sm:$0xff] %vm2725, %v2698
      %2748 = vst.msk [vmem:[#allocation3 + $0x370] sm:$0xff] %vm2725, %v2699
      %2749 = vst.msk [vmem:[#allocation3 + $0x398] sm:$0xff] %vm2725, %v2700
      %v2750 = vld [vmem:[#allocation2] sm:$0xf]
      %v2751 = vld [vmem:[#allocation2 + $0x4] sm:$0xf]
      %v2752 = vld [vmem:[#allocation2 + $0x8] sm:$0xf]
      %v2753 = vld [vmem:[#allocation2 + $0xc] sm:$0xf]
      %v2754 = vld [vmem:[#allocation2 + $0x10] sm:$0xf]
      %v2755 = vld [vmem:[#allocation2 + $0x14] sm:$0xf]
      %v2756 = vld [vmem:[#allocation2 + $0x18] sm:$0xf]
      %v2757 = vld [vmem:[#allocation2 + $0x1c] sm:$0xf]
      %v2758 = vld [vmem:[#allocation2 + $0x20] sm:$0xf]
      %v2759 = vld [vmem:[#allocation2 + $0x24] sm:$0xf]
      %v2760 = vld [vmem:[#allocation2 + $0x28] sm:$0xf]
      %v2761 = vld [vmem:[#allocation2 + $0x2c] sm:$0xf]
      %v2762 = vld [vmem:[#allocation2 + $0x30] sm:$0xf]
      %v2763 = vld [vmem:[#allocation2 + $0x34] sm:$0xf]
      %v2764 = vld [vmem:[#allocation2 + $0x38] sm:$0xf]
      %v2765 = vld [vmem:[#allocation2 + $0x3c] sm:$0xf]
      %v2766 = vld [vmem:[#allocation2 + $0x40] sm:$0xf]
      %v2767 = vld [vmem:[#allocation2 + $0x44] sm:$0xf]
      %v2768 = vld [vmem:[#allocation2 + $0x48] sm:$0xf]
      %v2769 = vld [vmem:[#allocation2 + $0x4c] sm:$0xf]
      %v2770 = vld [vmem:[#allocation2 + $0x50] sm:$0xf]
      %v2771 = vld [vmem:[#allocation2 + $0x54] sm:$0xf]
      %v2772 = vld [vmem:[#allocation2 + $0x58] sm:$0xf]
      %v2773 = vld [vmem:[#allocation2 + $0x5c] sm:$0xf]
      %v2774 = vld [vmem:[#allocation2 + $0x60] sm:$0xf]
      %v2775 = vld [vmem:[#allocation2 + $0x64] sm:$0xf]
      %v2776 = vld [vmem:[#allocation2 + $0x68] sm:$0xf]
      %v2777 = vld [vmem:[#allocation2 + $0x6c] sm:$0xf]
      %v2778 = vld [vmem:[#allocation2 + $0x70] sm:$0xf]
      %v2779 = vld [vmem:[#allocation2 + $0x74] sm:$0xf]
      %v2780 = vld [vmem:[#allocation2 + $0x78] sm:$0xf]
      %v2781 = vld [vmem:[#allocation2 + $0x7c] sm:$0xf]
      %v2782 = vld [vmem:[#allocation2 + $0x80] sm:$0xf]
      %v2783 = vld [vmem:[#allocation2 + $0x84] sm:$0xf]
      %v2784 = vld [vmem:[#allocation2 + $0x88] sm:$0xf]
      %v2785 = vld [vmem:[#allocation2 + $0x8c] sm:$0xf]
      %v2786 = vld [vmem:[#allocation2 + $0x90] sm:$0xf]
      %v2787 = vld [vmem:[#allocation2 + $0x94] sm:$0xf]
      %v2788 = vld [vmem:[#allocation2 + $0x98] sm:$0xf]
      %v2789 = vld [vmem:[#allocation2 + $0x9c] sm:$0xf]
      %v2790 = vld [vmem:[#allocation2 + $0xa0] sm:$0xf]
      %v2791 = vld [vmem:[#allocation2 + $0xa4] sm:$0xf]
      %v2792 = vld [vmem:[#allocation2 + $0xa8] sm:$0xf]
      %v2793 = vld [vmem:[#allocation2 + $0xac] sm:$0xf]
      %v2794 = vld [vmem:[#allocation2 + $0xb0] sm:$0xf]
      %v2795 = vld [vmem:[#allocation2 + $0xb4] sm:$0xf]
      %v2796 = vld [vmem:[#allocation2 + $0xb8] sm:$0xf]
      %v2797 = vld [vmem:[#allocation2 + $0xbc] sm:$0xf]
      %v2798 = vld [vmem:[#allocation2 + $0xc0] sm:$0x1]
      %v2848 = vunpack.c.l.b16 %v2750
      %v2849 = vunpack.c.l.b16 %v2751
      %v2850 = vunpack.c.l.b16 %v2752
      %v2851 = vunpack.c.l.b16 %v2753
      %v2852 = vunpack.c.l.b16 %v2754
      %v2853 = vunpack.c.l.b16 %v2755
      %v2854 = vunpack.c.l.b16 %v2756
      %v2855 = vunpack.c.l.b16 %v2757
      %v2856 = vunpack.c.l.b16 %v2758
      %v2857 = vunpack.c.l.b16 %v2759
      %v2858 = vunpack.c.l.b16 %v2760
      %v2859 = vunpack.c.l.b16 %v2761
      %v2860 = vunpack.c.l.b16 %v2762
      %v2861 = vunpack.c.l.b16 %v2763
      %v2862 = vunpack.c.l.b16 %v2764
      %v2863 = vunpack.c.l.b16 %v2765
      %v2864 = vunpack.c.l.b16 %v2766
      %v2865 = vunpack.c.l.b16 %v2767
      %v2866 = vunpack.c.l.b16 %v2768
      %v2867 = vunpack.c.l.b16 %v2769
      %v2868 = vunpack.c.l.b16 %v2770
      %v2869 = vunpack.c.l.b16 %v2771
      %v2870 = vunpack.c.l.b16 %v2772
      %v2871 = vunpack.c.l.b16 %v2773
      %v2872 = vunpack.c.l.b16 %v2774
      %v2873 = vunpack.c.l.b16 %v2775
      %v2874 = vunpack.c.l.b16 %v2776
      %v2875 = vunpack.c.l.b16 %v2777
      %v2876 = vunpack.c.l.b16 %v2778
      %v2877 = vunpack.c.l.b16 %v2779
      %v2878 = vunpack.c.l.b16 %v2780
      %v2879 = vunpack.c.l.b16 %v2781
      %v2880 = vunpack.c.l.b16 %v2782
      %v2881 = vunpack.c.l.b16 %v2783
      %v2882 = vunpack.c.l.b16 %v2784
      %v2883 = vunpack.c.l.b16 %v2785
      %v2884 = vunpack.c.l.b16 %v2786
      %v2885 = vunpack.c.l.b16 %v2787
      %v2886 = vunpack.c.l.b16 %v2788
      %v2887 = vunpack.c.l.b16 %v2789
      %v2888 = vunpack.c.l.b16 %v2790
      %v2889 = vunpack.c.l.b16 %v2791
      %v2890 = vunpack.c.l.b16 %v2792
      %v2891 = vunpack.c.l.b16 %v2793
      %v2892 = vunpack.c.l.b16 %v2794
      %v2893 = vunpack.c.l.b16 %v2795
      %v2894 = vunpack.c.l.b16 %v2796
      %v2895 = vunpack.c.l.b16 %v2797
      %v2896 = vunpack.c.l.b16 %v2798
      %v2897 = vpack.c.b16 %v2849, %v2848
      %v2898 = vpack.c.b16 %v2851, %v2850
      %v2899 = vpack.c.b16 %v2853, %v2852
      %v2900 = vpack.c.b16 %v2855, %v2854
      %v2901 = vpack.c.b16 %v2857, %v2856
      %v2902 = vpack.c.b16 %v2859, %v2858
      %v2903 = vpack.c.b16 %v2861, %v2860
      %v2904 = vpack.c.b16 %v2863, %v2862
      %v2905 = vpack.c.b16 %v2865, %v2864
      %v2906 = vpack.c.b16 %v2867, %v2866
      %v2907 = vpack.c.b16 %v2869, %v2868
      %v2908 = vpack.c.b16 %v2871, %v2870
      %v2909 = vpack.c.b16 %v2873, %v2872
      %v2910 = vpack.c.b16 %v2875, %v2874
      %v2911 = vpack.c.b16 %v2877, %v2876
      %v2912 = vpack.c.b16 %v2879, %v2878
      %v2913 = vpack.c.b16 %v2881, %v2880
      %v2914 = vpack.c.b16 %v2883, %v2882
      %v2915 = vpack.c.b16 %v2885, %v2884
      %v2916 = vpack.c.b16 %v2887, %v2886
      %v2917 = vpack.c.b16 %v2889, %v2888
      %v2918 = vpack.c.b16 %v2891, %v2890
      %v2919 = vpack.c.b16 %v2893, %v2892
      %v2920 = vpack.c.b16 %v2895, %v2894
      %v2921 = vpack.c.b16 %v2896, %v2896
      %vm2922 = vsmask.f32 7424
      %v2924 = vshrl.u32 %v2897, 16
      %v2926 = vshll.u32 %v2897, 16
      %v2928 = vrot.slane %v2926, 1
      %v2929 = vor.u32 %v2924, %v2928
      %v2931 = vshll.u32 %v2898, 16
      %v2933 = vrot.slane %v2931, 1
      %v2934 = vsel %vm2922, %v2929, %v2933
      %v2935 = vshrl.u32 %v2898, 16
      %v2937 = vor.u32 %v2935, %v2933
      %v2939 = vshll.u32 %v2899, 16
      %v2941 = vrot.slane %v2939, 1
      %v2942 = vsel %vm2922, %v2937, %v2941
      %v2943 = vshrl.u32 %v2899, 16
      %v2945 = vor.u32 %v2943, %v2941
      %v2947 = vshll.u32 %v2900, 16
      %v2949 = vrot.slane %v2947, 1
      %v2950 = vsel %vm2922, %v2945, %v2949
      %v2951 = vshrl.u32 %v2900, 16
      %v2953 = vor.u32 %v2951, %v2949
      %v2955 = vshll.u32 %v2901, 16
      %v2957 = vrot.slane %v2955, 1
      %v2958 = vsel %vm2922, %v2953, %v2957
      %v2959 = vshrl.u32 %v2901, 16
      %v2961 = vor.u32 %v2959, %v2957
      %v2963 = vshll.u32 %v2902, 16
      %v2965 = vrot.slane %v2963, 1
      %v2966 = vsel %vm2922, %v2961, %v2965
      %v2967 = vshrl.u32 %v2902, 16
      %v2969 = vor.u32 %v2967, %v2965
      %v2971 = vshll.u32 %v2903, 16
      %v2973 = vrot.slane %v2971, 1
      %v2974 = vsel %vm2922, %v2969, %v2973
      %v2975 = vshrl.u32 %v2903, 16
      %v2977 = vor.u32 %v2975, %v2973
      %v2979 = vshll.u32 %v2904, 16
      %v2981 = vrot.slane %v2979, 1
      %v2982 = vsel %vm2922, %v2977, %v2981
      %v2983 = vshrl.u32 %v2904, 16
      %v2985 = vor.u32 %v2983, %v2981
      %v2987 = vshll.u32 %v2905, 16
      %v2989 = vrot.slane %v2987, 1
      %v2990 = vsel %vm2922, %v2985, %v2989
      %v2991 = vshrl.u32 %v2905, 16
      %v2993 = vor.u32 %v2991, %v2989
      %v2995 = vshll.u32 %v2906, 16
      %v2997 = vrot.slane %v2995, 1
      %v2998 = vsel %vm2922, %v2993, %v2997
      %v2999 = vshrl.u32 %v2906, 16
      %v3001 = vor.u32 %v2999, %v2997
      %v3003 = vshll.u32 %v2907, 16
      %v3005 = vrot.slane %v3003, 1
      %v3006 = vsel %vm2922, %v3001, %v3005
      %v3007 = vshrl.u32 %v2907, 16
      %v3009 = vor.u32 %v3007, %v3005
      %v3011 = vshll.u32 %v2908, 16
      %v3013 = vrot.slane %v3011, 1
      %v3014 = vsel %vm2922, %v3009, %v3013
      %v3015 = vshrl.u32 %v2908, 16
      %v3017 = vor.u32 %v3015, %v3013
      %v3019 = vshll.u32 %v2909, 16
      %v3021 = vrot.slane %v3019, 1
      %v3022 = vsel %vm2922, %v3017, %v3021
      %v3023 = vshrl.u32 %v2909, 16
      %v3025 = vor.u32 %v3023, %v3021
      %v3027 = vshll.u32 %v2910, 16
      %v3029 = vrot.slane %v3027, 1
      %v3030 = vsel %vm2922, %v3025, %v3029
      %v3031 = vshrl.u32 %v2910, 16
      %v3033 = vor.u32 %v3031, %v3029
      %v3035 = vshll.u32 %v2911, 16
      %v3037 = vrot.slane %v3035, 1
      %v3038 = vsel %vm2922, %v3033, %v3037
      %v3039 = vshrl.u32 %v2911, 16
      %v3041 = vor.u32 %v3039, %v3037
      %v3043 = vshll.u32 %v2912, 16
      %v3045 = vrot.slane %v3043, 1
      %v3046 = vsel %vm2922, %v3041, %v3045
      %v3047 = vshrl.u32 %v2912, 16
      %v3049 = vor.u32 %v3047, %v3045
      %v3051 = vshll.u32 %v2913, 16
      %v3053 = vrot.slane %v3051, 1
      %v3054 = vsel %vm2922, %v3049, %v3053
      %v3055 = vshrl.u32 %v2913, 16
      %v3057 = vor.u32 %v3055, %v3053
      %v3059 = vshll.u32 %v2914, 16
      %v3061 = vrot.slane %v3059, 1
      %v3062 = vsel %vm2922, %v3057, %v3061
      %v3063 = vshrl.u32 %v2914, 16
      %v3065 = vor.u32 %v3063, %v3061
      %v3067 = vshll.u32 %v2915, 16
      %v3069 = vrot.slane %v3067, 1
      %v3070 = vsel %vm2922, %v3065, %v3069
      %v3071 = vshrl.u32 %v2915, 16
      %v3073 = vor.u32 %v3071, %v3069
      %v3075 = vshll.u32 %v2916, 16
      %v3077 = vrot.slane %v3075, 1
      %v3078 = vsel %vm2922, %v3073, %v3077
      %v3079 = vshrl.u32 %v2916, 16
      %v3081 = vor.u32 %v3079, %v3077
      %v3083 = vshll.u32 %v2917, 16
      %v3085 = vrot.slane %v3083, 1
      %v3086 = vsel %vm2922, %v3081, %v3085
      %v3087 = vshrl.u32 %v2917, 16
      %v3089 = vor.u32 %v3087, %v3085
      %v3091 = vshll.u32 %v2918, 16
      %v3093 = vrot.slane %v3091, 1
      %v3094 = vsel %vm2922, %v3089, %v3093
      %v3095 = vshrl.u32 %v2918, 16
      %v3097 = vor.u32 %v3095, %v3093
      %v3099 = vshll.u32 %v2919, 16
      %v3101 = vrot.slane %v3099, 1
      %v3102 = vsel %vm2922, %v3097, %v3101
      %v3103 = vshrl.u32 %v2919, 16
      %v3105 = vor.u32 %v3103, %v3101
      %v3107 = vshll.u32 %v2920, 16
      %v3109 = vrot.slane %v3107, 1
      %v3110 = vsel %vm2922, %v3105, %v3109
      %v3111 = vshrl.u32 %v2920, 16
      %v3113 = vor.u32 %v3111, %v3109
      %v3115 = vshll.u32 %v2921, 16
      %v3117 = vrot.slane %v3115, 1
      %v3118 = vsel %vm2922, %v3113, %v3117
      %3119 = vrot.lane.b32.xlu0 %v2934, 64
      %v3120 = vpop.permute.xlu0 %3119
      %3121 = vrot.lane.b32.xlu0 %v2942, 64
      %v3122 = vpop.permute.xlu0 %3121
      %3123 = vrot.lane.b32.xlu0 %v2950, 64
      %v3124 = vpop.permute.xlu0 %3123
      %3125 = vrot.lane.b32.xlu0 %v2958, 64
      %v3126 = vpop.permute.xlu0 %3125
      %3127 = vrot.lane.b32.xlu0 %v2966, 64
      %v3128 = vpop.permute.xlu0 %3127
      %3129 = vrot.lane.b32.xlu0 %v2974, 64
      %v3130 = vpop.permute.xlu0 %3129
      %3131 = vrot.lane.b32.xlu0 %v2982, 64
      %v3132 = vpop.permute.xlu0 %3131
      %3133 = vrot.lane.b32.xlu0 %v2990, 64
      %v3134 = vpop.permute.xlu0 %3133
      %3135 = vrot.lane.b32.xlu0 %v2998, 64
      %v3136 = vpop.permute.xlu0 %3135
      %3137 = vrot.lane.b32.xlu0 %v3006, 64
      %v3138 = vpop.permute.xlu0 %3137
      %3139 = vrot.lane.b32.xlu0 %v3014, 64
      %v3140 = vpop.permute.xlu0 %3139
      %3141 = vrot.lane.b32.xlu0 %v3022, 64
      %v3142 = vpop.permute.xlu0 %3141
      %3143 = vrot.lane.b32.xlu0 %v3030, 64
      %v3144 = vpop.permute.xlu0 %3143
      %3145 = vrot.lane.b32.xlu0 %v3038, 64
      %v3146 = vpop.permute.xlu0 %3145
      %3147 = vrot.lane.b32.xlu0 %v3046, 64
      %v3148 = vpop.permute.xlu0 %3147
      %3149 = vrot.lane.b32.xlu0 %v3054, 64
      %v3150 = vpop.permute.xlu0 %3149
      %3151 = vrot.lane.b32.xlu0 %v3062, 64
      %v3152 = vpop.permute.xlu0 %3151
      %3153 = vrot.lane.b32.xlu0 %v3070, 64
      %v3154 = vpop.permute.xlu0 %3153
      %3155 = vrot.lane.b32.xlu0 %v3078, 64
      %v3156 = vpop.permute.xlu0 %3155
      %3157 = vrot.lane.b32.xlu0 %v3086, 64
      %v3158 = vpop.permute.xlu0 %3157
      %3159 = vrot.lane.b32.xlu0 %v3094, 64
      %v3160 = vpop.permute.xlu0 %3159
      %3161 = vrot.lane.b32.xlu0 %v3102, 64
      %v3162 = vpop.permute.xlu0 %3161
      %3163 = vrot.lane.b32.xlu0 %v3110, 64
      %v3164 = vpop.permute.xlu0 %3163
      %3165 = vrot.lane.b32.xlu0 %v3118, 64
      %v3166 = vpop.permute.xlu0 %3165
      %vm3191 = vcmask 1048064
      %3192 = vst.msk [vmem:[#allocation3] sm:$0xff] %vm3191, %v3120
      %3193 = vst.msk [vmem:[#allocation3 + $0x28] sm:$0xff] %vm3191, %v3122
      %3194 = vst.msk [vmem:[#allocation3 + $0x50] sm:$0xff] %vm3191, %v3124
      %3195 = vst.msk [vmem:[#allocation3 + $0x78] sm:$0xff] %vm3191, %v3126
      %3196 = vst.msk [vmem:[#allocation3 + $0xa0] sm:$0xff] %vm3191, %v3128
      %3197 = vst.msk [vmem:[#allocation3 + $0xc8] sm:$0xff] %vm3191, %v3130
      %3198 = vst.msk [vmem:[#allocation3 + $0xf0] sm:$0xff] %vm3191, %v3132
      %3199 = vst.msk [vmem:[#allocation3 + $0x118] sm:$0xff] %vm3191, %v3134
      %3200 = vst.msk [vmem:[#allocation3 + $0x140] sm:$0xff] %vm3191, %v3136
      %3201 = vst.msk [vmem:[#allocation3 + $0x168] sm:$0xff] %vm3191, %v3138
      %3202 = vst.msk [vmem:[#allocation3 + $0x190] sm:$0xff] %vm3191, %v3140
      %3203 = vst.msk [vmem:[#allocation3 + $0x1b8] sm:$0xff] %vm3191, %v3142
      %3204 = vst.msk [vmem:[#allocation3 + $0x1e0] sm:$0xff] %vm3191, %v3144
      %3205 = vst.msk [vmem:[#allocation3 + $0x208] sm:$0xff] %vm3191, %v3146
      %3206 = vst.msk [vmem:[#allocation3 + $0x230] sm:$0xff] %vm3191, %v3148
      %3207 = vst.msk [vmem:[#allocation3 + $0x258] sm:$0xff] %vm3191, %v3150
      %3208 = vst.msk [vmem:[#allocation3 + $0x280] sm:$0xff] %vm3191, %v3152
      %3209 = vst.msk [vmem:[#allocation3 + $0x2a8] sm:$0xff] %vm3191, %v3154
      %3210 = vst.msk [vmem:[#allocation3 + $0x2d0] sm:$0xff] %vm3191, %v3156
      %3211 = vst.msk [vmem:[#allocation3 + $0x2f8] sm:$0xff] %vm3191, %v3158
      %3212 = vst.msk [vmem:[#allocation3 + $0x320] sm:$0xff] %vm3191, %v3160
      %3213 = vst.msk [vmem:[#allocation3 + $0x348] sm:$0xff] %vm3191, %v3162
      %3214 = vst.msk [vmem:[#allocation3 + $0x370] sm:$0xff] %vm3191, %v3164
      %3215 = vst.msk [vmem:[#allocation3 + $0x398] sm:$0xff] %vm3191, %v3166
      %v3216 = vld [vmem:[#allocation2] sm:$0xe]
      %v3217 = vld [vmem:[#allocation2 + $0x4] sm:$0xf]
      %v3218 = vld [vmem:[#allocation2 + $0x8] sm:$0xf]
      %v3219 = vld [vmem:[#allocation2 + $0xc] sm:$0xf]
      %v3220 = vld [vmem:[#allocation2 + $0x10] sm:$0xf]
      %v3221 = vld [vmem:[#allocation2 + $0x14] sm:$0xf]
      %v3222 = vld [vmem:[#allocation2 + $0x18] sm:$0xf]
      %v3223 = vld [vmem:[#allocation2 + $0x1c] sm:$0xf]
      %v3224 = vld [vmem:[#allocation2 + $0x20] sm:$0xf]
      %v3225 = vld [vmem:[#allocation2 + $0x24] sm:$0xf]
      %v3226 = vld [vmem:[#allocation2 + $0x28] sm:$0xf]
      %v3227 = vld [vmem:[#allocation2 + $0x2c] sm:$0xf]
      %v3228 = vld [vmem:[#allocation2 + $0x30] sm:$0xf]
      %v3229 = vld [vmem:[#allocation2 + $0x34] sm:$0xf]
      %v3230 = vld [vmem:[#allocation2 + $0x38] sm:$0xf]
      %v3231 = vld [vmem:[#allocation2 + $0x3c] sm:$0xf]
      %v3232 = vld [vmem:[#allocation2 + $0x40] sm:$0xf]
      %v3233 = vld [vmem:[#allocation2 + $0x44] sm:$0xf]
      %v3234 = vld [vmem:[#allocation2 + $0x48] sm:$0xf]
      %v3235 = vld [vmem:[#allocation2 + $0x4c] sm:$0xf]
      %v3236 = vld [vmem:[#allocation2 + $0x50] sm:$0xf]
      %v3237 = vld [vmem:[#allocation2 + $0x54] sm:$0xf]
      %v3238 = vld [vmem:[#allocation2 + $0x58] sm:$0xf]
      %v3239 = vld [vmem:[#allocation2 + $0x5c] sm:$0xf]
      %v3240 = vld [vmem:[#allocation2 + $0x60] sm:$0xf]
      %v3241 = vld [vmem:[#allocation2 + $0x64] sm:$0xf]
      %v3242 = vld [vmem:[#allocation2 + $0x68] sm:$0xf]
      %v3243 = vld [vmem:[#allocation2 + $0x6c] sm:$0xf]
      %v3244 = vld [vmem:[#allocation2 + $0x70] sm:$0xf]
      %v3245 = vld [vmem:[#allocation2 + $0x74] sm:$0xf]
      %v3246 = vld [vmem:[#allocation2 + $0x78] sm:$0xf]
      %v3247 = vld [vmem:[#allocation2 + $0x7c] sm:$0xf]
      %v3248 = vld [vmem:[#allocation2 + $0x80] sm:$0xf]
      %v3249 = vld [vmem:[#allocation2 + $0x84] sm:$0xf]
      %v3250 = vld [vmem:[#allocation2 + $0x88] sm:$0xf]
      %v3251 = vld [vmem:[#allocation2 + $0x8c] sm:$0xf]
      %v3252 = vld [vmem:[#allocation2 + $0x90] sm:$0xf]
      %v3253 = vld [vmem:[#allocation2 + $0x94] sm:$0xf]
      %v3254 = vld [vmem:[#allocation2 + $0x98] sm:$0xf]
      %v3255 = vld [vmem:[#allocation2 + $0x9c] sm:$0xf]
      %v3256 = vld [vmem:[#allocation2 + $0xa0] sm:$0xf]
      %v3257 = vld [vmem:[#allocation2 + $0xa4] sm:$0xf]
      %v3258 = vld [vmem:[#allocation2 + $0xa8] sm:$0xf]
      %v3259 = vld [vmem:[#allocation2 + $0xac] sm:$0xf]
      %v3260 = vld [vmem:[#allocation2 + $0xb0] sm:$0xf]
      %v3261 = vld [vmem:[#allocation2 + $0xb4] sm:$0xf]
      %v3262 = vld [vmem:[#allocation2 + $0xb8] sm:$0xf]
      %v3263 = vld [vmem:[#allocation2 + $0xbc] sm:$0xf]
      %v3264 = vld [vmem:[#allocation2 + $0xc0] sm:$0x1]
      %v3314 = vunpack.c.l.b16 %v3216
      %v3315 = vunpack.c.l.b16 %v3217
      %v3316 = vunpack.c.l.b16 %v3218
      %v3317 = vunpack.c.l.b16 %v3219
      %v3318 = vunpack.c.l.b16 %v3220
      %v3319 = vunpack.c.l.b16 %v3221
      %v3320 = vunpack.c.l.b16 %v3222
      %v3321 = vunpack.c.l.b16 %v3223
      %v3322 = vunpack.c.l.b16 %v3224
      %v3323 = vunpack.c.l.b16 %v3225
      %v3324 = vunpack.c.l.b16 %v3226
      %v3325 = vunpack.c.l.b16 %v3227
      %v3326 = vunpack.c.l.b16 %v3228
      %v3327 = vunpack.c.l.b16 %v3229
      %v3328 = vunpack.c.l.b16 %v3230
      %v3329 = vunpack.c.l.b16 %v3231
      %v3330 = vunpack.c.l.b16 %v3232
      %v3331 = vunpack.c.l.b16 %v3233
      %v3332 = vunpack.c.l.b16 %v3234
      %v3333 = vunpack.c.l.b16 %v3235
      %v3334 = vunpack.c.l.b16 %v3236
      %v3335 = vunpack.c.l.b16 %v3237
      %v3336 = vunpack.c.l.b16 %v3238
      %v3337 = vunpack.c.l.b16 %v3239
      %v3338 = vunpack.c.l.b16 %v3240
      %v3339 = vunpack.c.l.b16 %v3241
      %v3340 = vunpack.c.l.b16 %v3242
      %v3341 = vunpack.c.l.b16 %v3243
      %v3342 = vunpack.c.l.b16 %v3244
      %v3343 = vunpack.c.l.b16 %v3245
      %v3344 = vunpack.c.l.b16 %v3246
      %v3345 = vunpack.c.l.b16 %v3247
      %v3346 = vunpack.c.l.b16 %v3248
      %v3347 = vunpack.c.l.b16 %v3249
      %v3348 = vunpack.c.l.b16 %v3250
      %v3349 = vunpack.c.l.b16 %v3251
      %v3350 = vunpack.c.l.b16 %v3252
      %v3351 = vunpack.c.l.b16 %v3253
      %v3352 = vunpack.c.l.b16 %v3254
      %v3353 = vunpack.c.l.b16 %v3255
      %v3354 = vunpack.c.l.b16 %v3256
      %v3355 = vunpack.c.l.b16 %v3257
      %v3356 = vunpack.c.l.b16 %v3258
      %v3357 = vunpack.c.l.b16 %v3259
      %v3358 = vunpack.c.l.b16 %v3260
      %v3359 = vunpack.c.l.b16 %v3261
      %v3360 = vunpack.c.l.b16 %v3262
      %v3361 = vunpack.c.l.b16 %v3263
      %v3362 = vunpack.c.l.b16 %v3264
      %v3363 = vpack.c.b16 %v3315, %v3314
      %v3364 = vpack.c.b16 %v3317, %v3316
      %v3365 = vpack.c.b16 %v3319, %v3318
      %v3366 = vpack.c.b16 %v3321, %v3320
      %v3367 = vpack.c.b16 %v3323, %v3322
      %v3368 = vpack.c.b16 %v3325, %v3324
      %v3369 = vpack.c.b16 %v3327, %v3326
      %v3370 = vpack.c.b16 %v3329, %v3328
      %v3371 = vpack.c.b16 %v3331, %v3330
      %v3372 = vpack.c.b16 %v3333, %v3332
      %v3373 = vpack.c.b16 %v3335, %v3334
      %v3374 = vpack.c.b16 %v3337, %v3336
      %v3375 = vpack.c.b16 %v3339, %v3338
      %v3376 = vpack.c.b16 %v3341, %v3340
      %v3377 = vpack.c.b16 %v3343, %v3342
      %v3378 = vpack.c.b16 %v3345, %v3344
      %v3379 = vpack.c.b16 %v3347, %v3346
      %v3380 = vpack.c.b16 %v3349, %v3348
      %v3381 = vpack.c.b16 %v3351, %v3350
      %v3382 = vpack.c.b16 %v3353, %v3352
      %v3383 = vpack.c.b16 %v3355, %v3354
      %v3384 = vpack.c.b16 %v3357, %v3356
      %v3385 = vpack.c.b16 %v3359, %v3358
      %v3386 = vpack.c.b16 %v3361, %v3360
      %v3387 = vpack.c.b16 %v3362, %v3362
      %vm3388 = vcmask 1046528
      %v3389 = vrot.slane %v3363, 1
      %v3390 = vrot.slane %v3364, 1
      %v3391 = vsel %vm3388, %v3389, %v3390
      %v3392 = vrot.slane %v3365, 1
      %v3393 = vsel %vm3388, %v3390, %v3392
      %v3394 = vrot.slane %v3366, 1
      %v3395 = vsel %vm3388, %v3392, %v3394
      %v3396 = vrot.slane %v3367, 1
      %v3397 = vsel %vm3388, %v3394, %v3396
      %v3398 = vrot.slane %v3368, 1
      %v3399 = vsel %vm3388, %v3396, %v3398
      %v3400 = vrot.slane %v3369, 1
      %v3401 = vsel %vm3388, %v3398, %v3400
      %v3402 = vrot.slane %v3370, 1
      %v3403 = vsel %vm3388, %v3400, %v3402
      %v3404 = vrot.slane %v3371, 1
      %v3405 = vsel %vm3388, %v3402, %v3404
      %v3406 = vrot.slane %v3372, 1
      %v3407 = vsel %vm3388, %v3404, %v3406
      %v3408 = vrot.slane %v3373, 1
      %v3409 = vsel %vm3388, %v3406, %v3408
      %v3410 = vrot.slane %v3374, 1
      %v3411 = vsel %vm3388, %v3408, %v3410
      %v3412 = vrot.slane %v3375, 1
      %v3413 = vsel %vm3388, %v3410, %v3412
      %v3414 = vrot.slane %v3376, 1
      %v3415 = vsel %vm3388, %v3412, %v3414
      %v3416 = vrot.slane %v3377, 1
      %v3417 = vsel %vm3388, %v3414, %v3416
      %v3418 = vrot.slane %v3378, 1
      %v3419 = vsel %vm3388, %v3416, %v3418
      %v3420 = vrot.slane %v3379, 1
      %v3421 = vsel %vm3388, %v3418, %v3420
      %v3422 = vrot.slane %v3380, 1
      %v3423 = vsel %vm3388, %v3420, %v3422
      %v3424 = vrot.slane %v3381, 1
      %v3425 = vsel %vm3388, %v3422, %v3424
      %v3426 = vrot.slane %v3382, 1
      %v3427 = vsel %vm3388, %v3424, %v3426
      %v3428 = vrot.slane %v3383, 1
      %v3429 = vsel %vm3388, %v3426, %v3428
      %v3430 = vrot.slane %v3384, 1
      %v3431 = vsel %vm3388, %v3428, %v3430
      %v3432 = vrot.slane %v3385, 1
      %v3433 = vsel %vm3388, %v3430, %v3432
      %v3434 = vrot.slane %v3386, 1
      %v3435 = vsel %vm3388, %v3432, %v3434
      %v3436 = vrot.slane %v3387, 1
      %v3437 = vsel %vm3388, %v3434, %v3436
      %3462 = vst.msk [vmem:[#allocation3 + $0x8] sm:$0xff] %vm2725, %v3391
      %3463 = vst.msk [vmem:[#allocation3 + $0x30] sm:$0xff] %vm2725, %v3393
      %3464 = vst.msk [vmem:[#allocation3 + $0x58] sm:$0xff] %vm2725, %v3395
      %3465 = vst.msk [vmem:[#allocation3 + $0x80] sm:$0xff] %vm2725, %v3397
      %3466 = vst.msk [vmem:[#allocation3 + $0xa8] sm:$0xff] %vm2725, %v3399
      %3467 = vst.msk [vmem:[#allocation3 + $0xd0] sm:$0xff] %vm2725, %v3401
      %3468 = vst.msk [vmem:[#allocation3 + $0xf8] sm:$0xff] %vm2725, %v3403
      %3469 = vst.msk [vmem:[#allocation3 + $0x120] sm:$0xff] %vm2725, %v3405
      %3470 = vst.msk [vmem:[#allocation3 + $0x148] sm:$0xff] %vm2725, %v3407
      %3471 = vst.msk [vmem:[#allocation3 + $0x170] sm:$0xff] %vm2725, %v3409
      %3472 = vst.msk [vmem:[#allocation3 + $0x198] sm:$0xff] %vm2725, %v3411
      %3473 = vst.msk [vmem:[#allocation3 + $0x1c0] sm:$0xff] %vm2725, %v3413
      %3474 = vst.msk [vmem:[#allocation3 + $0x1e8] sm:$0xff] %vm2725, %v3415
      %3475 = vst.msk [vmem:[#allocation3 + $0x210] sm:$0xff] %vm2725, %v3417
      %3476 = vst.msk [vmem:[#allocation3 + $0x238] sm:$0xff] %vm2725, %v3419
      %3477 = vst.msk [vmem:[#allocation3 + $0x260] sm:$0xff] %vm2725, %v3421
      %3478 = vst.msk [vmem:[#allocation3 + $0x288] sm:$0xff] %vm2725, %v3423
      %3479 = vst.msk [vmem:[#allocation3 + $0x2b0] sm:$0xff] %vm2725, %v3425
      %3480 = vst.msk [vmem:[#allocation3 + $0x2d8] sm:$0xff] %vm2725, %v3427
      %3481 = vst.msk [vmem:[#allocation3 + $0x300] sm:$0xff] %vm2725, %v3429
      %3482 = vst.msk [vmem:[#allocation3 + $0x328] sm:$0xff] %vm2725, %v3431
      %3483 = vst.msk [vmem:[#allocation3 + $0x350] sm:$0xff] %vm2725, %v3433
      %3484 = vst.msk [vmem:[#allocation3 + $0x378] sm:$0xff] %vm2725, %v3435
      %3485 = vst.msk [vmem:[#allocation3 + $0x3a0] sm:$0xff] %vm2725, %v3437
      %v3486 = vld [vmem:[#allocation2 + $0xc] sm:$0xf]
      %v3487 = vld [vmem:[#allocation2 + $0x10] sm:$0xf]
      %v3488 = vld [vmem:[#allocation2 + $0x14] sm:$0xf]
      %v3489 = vld [vmem:[#allocation2 + $0x18] sm:$0xf]
      %v3490 = vld [vmem:[#allocation2 + $0x1c] sm:$0xf]
      %v3491 = vld [vmem:[#allocation2 + $0x20] sm:$0xf]
      %v3492 = vld [vmem:[#allocation2 + $0x24] sm:$0xf]
      %v3493 = vld [vmem:[#allocation2 + $0x28] sm:$0xf]
      %v3494 = vld [vmem:[#allocation2 + $0x2c] sm:$0xf]
      %v3495 = vld [vmem:[#allocation2 + $0x30] sm:$0xf]
      %v3496 = vld [vmem:[#allocation2 + $0x34] sm:$0xf]
      %v3497 = vld [vmem:[#allocation2 + $0x38] sm:$0xf]
      %v3498 = vld [vmem:[#allocation2 + $0x3c] sm:$0xf]
      %v3499 = vld [vmem:[#allocation2 + $0x40] sm:$0xf]
      %v3500 = vld [vmem:[#allocation2 + $0x44] sm:$0xf]
      %v3501 = vld [vmem:[#allocation2 + $0x48] sm:$0xf]
      %v3502 = vld [vmem:[#allocation2 + $0x4c] sm:$0xf]
      %v3503 = vld [vmem:[#allocation2 + $0x50] sm:$0xf]
      %v3504 = vld [vmem:[#allocation2 + $0x54] sm:$0xf]
      %v3505 = vld [vmem:[#allocation2 + $0x58] sm:$0xf]
      %v3506 = vld [vmem:[#allocation2 + $0x5c] sm:$0xf]
      %v3507 = vld [vmem:[#allocation2 + $0x60] sm:$0xf]
      %v3508 = vld [vmem:[#allocation2 + $0x64] sm:$0xf]
      %v3509 = vld [vmem:[#allocation2 + $0x68] sm:$0xf]
      %v3510 = vld [vmem:[#allocation2 + $0x6c] sm:$0xf]
      %v3511 = vld [vmem:[#allocation2 + $0x70] sm:$0xf]
      %v3512 = vld [vmem:[#allocation2 + $0x74] sm:$0xf]
      %v3513 = vld [vmem:[#allocation2 + $0x78] sm:$0xf]
      %v3514 = vld [vmem:[#allocation2 + $0x7c] sm:$0xf]
      %v3515 = vld [vmem:[#allocation2 + $0x80] sm:$0xf]
      %v3516 = vld [vmem:[#allocation2 + $0x84] sm:$0xf]
      %v3517 = vld [vmem:[#allocation2 + $0x88] sm:$0xf]
      %v3518 = vld [vmem:[#allocation2 + $0x8c] sm:$0xf]
      %v3519 = vld [vmem:[#allocation2 + $0x90] sm:$0xf]
      %v3520 = vld [vmem:[#allocation2 + $0x94] sm:$0xf]
      %v3521 = vld [vmem:[#allocation2 + $0x98] sm:$0xf]
      %v3522 = vld [vmem:[#allocation2 + $0x9c] sm:$0xf]
      %v3523 = vld [vmem:[#allocation2 + $0xa0] sm:$0xf]
      %v3524 = vld [vmem:[#allocation2 + $0xa4] sm:$0xf]
      %v3525 = vld [vmem:[#allocation2 + $0xa8] sm:$0xf]
      %v3526 = vld [vmem:[#allocation2 + $0xac] sm:$0xf]
      %v3527 = vld [vmem:[#allocation2 + $0xb0] sm:$0xf]
      %v3528 = vld [vmem:[#allocation2 + $0xb4] sm:$0xf]
      %v3529 = vld [vmem:[#allocation2 + $0xb8] sm:$0xf]
      %v3530 = vld [vmem:[#allocation2 + $0xbc] sm:$0xf]
      %v3531 = vld [vmem:[#allocation2 + $0xc0] sm:$0xf]
      %v3532 = vld [vmem:[#allocation2 + $0xc4] sm:$0xf]
      %v3533 = vld [vmem:[#allocation2 + $0xc8] sm:$0xf]
      %v3582 = vunpack.c.l.b16 %v3486
      %v3583 = vunpack.c.l.b16 %v3487
      %v3584 = vunpack.c.l.b16 %v3488
      %v3585 = vunpack.c.l.b16 %v3489
      %v3586 = vunpack.c.l.b16 %v3490
      %v3587 = vunpack.c.l.b16 %v3491
      %v3588 = vunpack.c.l.b16 %v3492
      %v3589 = vunpack.c.l.b16 %v3493
      %v3590 = vunpack.c.l.b16 %v3494
      %v3591 = vunpack.c.l.b16 %v3495
      %v3592 = vunpack.c.l.b16 %v3496
      %v3593 = vunpack.c.l.b16 %v3497
      %v3594 = vunpack.c.l.b16 %v3498
      %v3595 = vunpack.c.l.b16 %v3499
      %v3596 = vunpack.c.l.b16 %v3500
      %v3597 = vunpack.c.l.b16 %v3501
      %v3598 = vunpack.c.l.b16 %v3502
      %v3599 = vunpack.c.l.b16 %v3503
      %v3600 = vunpack.c.l.b16 %v3504
      %v3601 = vunpack.c.l.b16 %v3505
      %v3602 = vunpack.c.l.b16 %v3506
      %v3603 = vunpack.c.l.b16 %v3507
      %v3604 = vunpack.c.l.b16 %v3508
      %v3605 = vunpack.c.l.b16 %v3509
      %v3606 = vunpack.c.l.b16 %v3510
      %v3607 = vunpack.c.l.b16 %v3511
      %v3608 = vunpack.c.l.b16 %v3512
      %v3609 = vunpack.c.l.b16 %v3513
      %v3610 = vunpack.c.l.b16 %v3514
      %v3611 = vunpack.c.l.b16 %v3515
      %v3612 = vunpack.c.l.b16 %v3516
      %v3613 = vunpack.c.l.b16 %v3517
      %v3614 = vunpack.c.l.b16 %v3518
      %v3615 = vunpack.c.l.b16 %v3519
      %v3616 = vunpack.c.l.b16 %v3520
      %v3617 = vunpack.c.l.b16 %v3521
      %v3618 = vunpack.c.l.b16 %v3522
      %v3619 = vunpack.c.l.b16 %v3523
      %v3620 = vunpack.c.l.b16 %v3524
      %v3621 = vunpack.c.l.b16 %v3525
      %v3622 = vunpack.c.l.b16 %v3526
      %v3623 = vunpack.c.l.b16 %v3527
      %v3624 = vunpack.c.l.b16 %v3528
      %v3625 = vunpack.c.l.b16 %v3529
      %v3626 = vunpack.c.l.b16 %v3530
      %v3627 = vunpack.c.l.b16 %v3531
      %v3628 = vunpack.c.l.b16 %v3532
      %v3629 = vunpack.c.l.b16 %v3533
      %v3630 = vpack.c.b16 %v3583, %v3582
      %v3631 = vpack.c.b16 %v3585, %v3584
      %v3632 = vpack.c.b16 %v3587, %v3586
      %v3633 = vpack.c.b16 %v3589, %v3588
      %v3634 = vpack.c.b16 %v3591, %v3590
      %v3635 = vpack.c.b16 %v3593, %v3592
      %v3636 = vpack.c.b16 %v3595, %v3594
      %v3637 = vpack.c.b16 %v3597, %v3596
      %v3638 = vpack.c.b16 %v3599, %v3598
      %v3639 = vpack.c.b16 %v3601, %v3600
      %v3640 = vpack.c.b16 %v3603, %v3602
      %v3641 = vpack.c.b16 %v3605, %v3604
      %v3642 = vpack.c.b16 %v3607, %v3606
      %v3643 = vpack.c.b16 %v3609, %v3608
      %v3644 = vpack.c.b16 %v3611, %v3610
      %v3645 = vpack.c.b16 %v3613, %v3612
      %v3646 = vpack.c.b16 %v3615, %v3614
      %v3647 = vpack.c.b16 %v3617, %v3616
      %v3648 = vpack.c.b16 %v3619, %v3618
      %v3649 = vpack.c.b16 %v3621, %v3620
      %v3650 = vpack.c.b16 %v3623, %v3622
      %v3651 = vpack.c.b16 %v3625, %v3624
      %v3652 = vpack.c.b16 %v3627, %v3626
      %v3653 = vpack.c.b16 %v3629, %v3628
      %3654 = vrot.lane.b32.xlu0 %v3630, 64
      %v3655 = vpop.permute.xlu0 %3654
      %3656 = vrot.lane.b32.xlu0 %v3631, 64
      %v3657 = vpop.permute.xlu0 %3656
      %3658 = vrot.lane.b32.xlu0 %v3632, 64
      %v3659 = vpop.permute.xlu0 %3658
      %3660 = vrot.lane.b32.xlu0 %v3633, 64
      %v3661 = vpop.permute.xlu0 %3660
      %3662 = vrot.lane.b32.xlu0 %v3634, 64
      %v3663 = vpop.permute.xlu0 %3662
      %3664 = vrot.lane.b32.xlu0 %v3635, 64
      %v3665 = vpop.permute.xlu0 %3664
      %3666 = vrot.lane.b32.xlu0 %v3636, 64
      %v3667 = vpop.permute.xlu0 %3666
      %3668 = vrot.lane.b32.xlu0 %v3637, 64
      %v3669 = vpop.permute.xlu0 %3668
      %3670 = vrot.lane.b32.xlu0 %v3638, 64
      %v3671 = vpop.permute.xlu0 %3670
      %3672 = vrot.lane.b32.xlu0 %v3639, 64
      %v3673 = vpop.permute.xlu0 %3672
      %3674 = vrot.lane.b32.xlu0 %v3640, 64
      %v3675 = vpop.permute.xlu0 %3674
      %3676 = vrot.lane.b32.xlu0 %v3641, 64
      %v3677 = vpop.permute.xlu0 %3676
      %3678 = vrot.lane.b32.xlu0 %v3642, 64
      %v3679 = vpop.permute.xlu0 %3678
      %3680 = vrot.lane.b32.xlu0 %v3643, 64
      %v3681 = vpop.permute.xlu0 %3680
      %3682 = vrot.lane.b32.xlu0 %v3644, 64
      %v3683 = vpop.permute.xlu0 %3682
      %3684 = vrot.lane.b32.xlu0 %v3645, 64
      %v3685 = vpop.permute.xlu0 %3684
      %3686 = vrot.lane.b32.xlu0 %v3646, 64
      %v3687 = vpop.permute.xlu0 %3686
      %3688 = vrot.lane.b32.xlu0 %v3647, 64
      %v3689 = vpop.permute.xlu0 %3688
      %3690 = vrot.lane.b32.xlu0 %v3648, 64
      %v3691 = vpop.permute.xlu0 %3690
      %3692 = vrot.lane.b32.xlu0 %v3649, 64
      %v3693 = vpop.permute.xlu0 %3692
      %3694 = vrot.lane.b32.xlu0 %v3650, 64
      %v3695 = vpop.permute.xlu0 %3694
      %3696 = vrot.lane.b32.xlu0 %v3651, 64
      %v3697 = vpop.permute.xlu0 %3696
      %3698 = vrot.lane.b32.xlu0 %v3652, 64
      %v3699 = vpop.permute.xlu0 %3698
      %3700 = vrot.lane.b32.xlu0 %v3653, 64
      %v3701 = vpop.permute.xlu0 %3700
      %3726 = vst.msk [vmem:[#allocation3 + $0x8] sm:$0xff] %vm3191, %v3655
      %3727 = vst.msk [vmem:[#allocation3 + $0x30] sm:$0xff] %vm3191, %v3657
      %3728 = vst.msk [vmem:[#allocation3 + $0x58] sm:$0xff] %vm3191, %v3659
      %3729 = vst.msk [vmem:[#allocation3 + $0x80] sm:$0xff] %vm3191, %v3661
      %3730 = vst.msk [vmem:[#allocation3 + $0xa8] sm:$0xff] %vm3191, %v3663
      %3731 = vst.msk [vmem:[#allocation3 + $0xd0] sm:$0xff] %vm3191, %v3665
      %3732 = vst.msk [vmem:[#allocation3 + $0xf8] sm:$0xff] %vm3191, %v3667
      %3733 = vst.msk [vmem:[#allocation3 + $0x120] sm:$0xff] %vm3191, %v3669
      %3734 = vst.msk [vmem:[#allocation3 + $0x148] sm:$0xff] %vm3191, %v3671
      %3735 = vst.msk [vmem:[#allocation3 + $0x170] sm:$0xff] %vm3191, %v3673
      %3736 = vst.msk [vmem:[#allocation3 + $0x198] sm:$0xff] %vm3191, %v3675
      %3737 = vst.msk [vmem:[#allocation3 + $0x1c0] sm:$0xff] %vm3191, %v3677
      %3738 = vst.msk [vmem:[#allocation3 + $0x1e8] sm:$0xff] %vm3191, %v3679
      %3739 = vst.msk [vmem:[#allocation3 + $0x210] sm:$0xff] %vm3191, %v3681
      %3740 = vst.msk [vmem:[#allocation3 + $0x238] sm:$0xff] %vm3191, %v3683
      %3741 = vst.msk [vmem:[#allocation3 + $0x260] sm:$0xff] %vm3191, %v3685
      %3742 = vst.msk [vmem:[#allocation3 + $0x288] sm:$0xff] %vm3191, %v3687
      %3743 = vst.msk [vmem:[#allocation3 + $0x2b0] sm:$0xff] %vm3191, %v3689
      %3744 = vst.msk [vmem:[#allocation3 + $0x2d8] sm:$0xff] %vm3191, %v3691
      %3745 = vst.msk [vmem:[#allocation3 + $0x300] sm:$0xff] %vm3191, %v3693
      %3746 = vst.msk [vmem:[#allocation3 + $0x328] sm:$0xff] %vm3191, %v3695
      %3747 = vst.msk [vmem:[#allocation3 + $0x350] sm:$0xff] %vm3191, %v3697
      %3748 = vst.msk [vmem:[#allocation3 + $0x378] sm:$0xff] %vm3191, %v3699
      %3749 = vst.msk [vmem:[#allocation3 + $0x3a0] sm:$0xff] %vm3191, %v3701
      %v3750 = vld [vmem:[#allocation2 + $0xc] sm:$0xf]
      %v3751 = vld [vmem:[#allocation2 + $0x10] sm:$0xf]
      %v3752 = vld [vmem:[#allocation2 + $0x14] sm:$0xf]
      %v3753 = vld [vmem:[#allocation2 + $0x18] sm:$0xf]
      %v3754 = vld [vmem:[#allocation2 + $0x1c] sm:$0xf]
      %v3755 = vld [vmem:[#allocation2 + $0x20] sm:$0xf]
      %v3756 = vld [vmem:[#allocation2 + $0x24] sm:$0xf]
      %v3757 = vld [vmem:[#allocation2 + $0x28] sm:$0xf]
      %v3758 = vld [vmem:[#allocation2 + $0x2c] sm:$0xf]
      %v3759 = vld [vmem:[#allocation2 + $0x30] sm:$0xf]
      %v3760 = vld [vmem:[#allocation2 + $0x34] sm:$0xf]
      %v3761 = vld [vmem:[#allocation2 + $0x38] sm:$0xf]
      %v3762 = vld [vmem:[#allocation2 + $0x3c] sm:$0xf]
      %v3763 = vld [vmem:[#allocation2 + $0x40] sm:$0xf]
      %v3764 = vld [vmem:[#allocation2 + $0x44] sm:$0xf]
      %v3765 = vld [vmem:[#allocation2 + $0x48] sm:$0xf]
      %v3766 = vld [vmem:[#allocation2 + $0x4c] sm:$0xf]
      %v3767 = vld [vmem:[#allocation2 + $0x50] sm:$0xf]
      %v3768 = vld [vmem:[#allocation2 + $0x54] sm:$0xf]
      %v3769 = vld [vmem:[#allocation2 + $0x58] sm:$0xf]
      %v3770 = vld [vmem:[#allocation2 + $0x5c] sm:$0xf]
      %v3771 = vld [vmem:[#allocation2 + $0x60] sm:$0xf]
      %v3772 = vld [vmem:[#allocation2 + $0x64] sm:$0xf]
      %v3773 = vld [vmem:[#allocation2 + $0x68] sm:$0xf]
      %v3774 = vld [vmem:[#allocation2 + $0x6c] sm:$0xf]
      %v3775 = vld [vmem:[#allocation2 + $0x70] sm:$0xf]
      %v3776 = vld [vmem:[#allocation2 + $0x74] sm:$0xf]
      %v3777 = vld [vmem:[#allocation2 + $0x78] sm:$0xf]
      %v3778 = vld [vmem:[#allocation2 + $0x7c] sm:$0xf]
      %v3779 = vld [vmem:[#allocation2 + $0x80] sm:$0xf]
      %v3780 = vld [vmem:[#allocation2 + $0x84] sm:$0xf]
      %v3781 = vld [vmem:[#allocation2 + $0x88] sm:$0xf]
      %v3782 = vld [vmem:[#allocation2 + $0x8c] sm:$0xf]
      %v3783 = vld [vmem:[#allocation2 + $0x90] sm:$0xf]
      %v3784 = vld [vmem:[#allocation2 + $0x94] sm:$0xf]
      %v3785 = vld [vmem:[#allocation2 + $0x98] sm:$0xf]
      %v3786 = vld [vmem:[#allocation2 + $0x9c] sm:$0xf]
      %v3787 = vld [vmem:[#allocation2 + $0xa0] sm:$0xf]
      %v3788 = vld [vmem:[#allocation2 + $0xa4] sm:$0xf]
      %v3789 = vld [vmem:[#allocation2 + $0xa8] sm:$0xf]
      %v3790 = vld [vmem:[#allocation2 + $0xac] sm:$0xf]
      %v3791 = vld [vmem:[#allocation2 + $0xb0] sm:$0xf]
      %v3792 = vld [vmem:[#allocation2 + $0xb4] sm:$0xf]
      %v3793 = vld [vmem:[#allocation2 + $0xb8] sm:$0xf]
      %v3794 = vld [vmem:[#allocation2 + $0xbc] sm:$0xf]
      %v3795 = vld [vmem:[#allocation2 + $0xc0] sm:$0xf]
      %v3796 = vld [vmem:[#allocation2 + $0xc4] sm:$0xf]
      %v3797 = vld [vmem:[#allocation2 + $0xc8] sm:$0xf]
      %v3798 = vld [vmem:[#allocation2 + $0xcc] sm:$0x1]
      %v3848 = vunpack.c.l.b16 %v3750
      %v3849 = vunpack.c.l.b16 %v3751
      %v3850 = vunpack.c.l.b16 %v3752
      %v3851 = vunpack.c.l.b16 %v3753
      %v3852 = vunpack.c.l.b16 %v3754
      %v3853 = vunpack.c.l.b16 %v3755
      %v3854 = vunpack.c.l.b16 %v3756
      %v3855 = vunpack.c.l.b16 %v3757
      %v3856 = vunpack.c.l.b16 %v3758
      %v3857 = vunpack.c.l.b16 %v3759
      %v3858 = vunpack.c.l.b16 %v3760
      %v3859 = vunpack.c.l.b16 %v3761
      %v3860 = vunpack.c.l.b16 %v3762
      %v3861 = vunpack.c.l.b16 %v3763
      %v3862 = vunpack.c.l.b16 %v3764
      %v3863 = vunpack.c.l.b16 %v3765
      %v3864 = vunpack.c.l.b16 %v3766
      %v3865 = vunpack.c.l.b16 %v3767
      %v3866 = vunpack.c.l.b16 %v3768
      %v3867 = vunpack.c.l.b16 %v3769
      %v3868 = vunpack.c.l.b16 %v3770
      %v3869 = vunpack.c.l.b16 %v3771
      %v3870 = vunpack.c.l.b16 %v3772
      %v3871 = vunpack.c.l.b16 %v3773
      %v3872 = vunpack.c.l.b16 %v3774
      %v3873 = vunpack.c.l.b16 %v3775
      %v3874 = vunpack.c.l.b16 %v3776
      %v3875 = vunpack.c.l.b16 %v3777
      %v3876 = vunpack.c.l.b16 %v3778
      %v3877 = vunpack.c.l.b16 %v3779
      %v3878 = vunpack.c.l.b16 %v3780
      %v3879 = vunpack.c.l.b16 %v3781
      %v3880 = vunpack.c.l.b16 %v3782
      %v3881 = vunpack.c.l.b16 %v3783
      %v3882 = vunpack.c.l.b16 %v3784
      %v3883 = vunpack.c.l.b16 %v3785
      %v3884 = vunpack.c.l.b16 %v3786
      %v3885 = vunpack.c.l.b16 %v3787
      %v3886 = vunpack.c.l.b16 %v3788
      %v3887 = vunpack.c.l.b16 %v3789
      %v3888 = vunpack.c.l.b16 %v3790
      %v3889 = vunpack.c.l.b16 %v3791
      %v3890 = vunpack.c.l.b16 %v3792
      %v3891 = vunpack.c.l.b16 %v3793
      %v3892 = vunpack.c.l.b16 %v3794
      %v3893 = vunpack.c.l.b16 %v3795
      %v3894 = vunpack.c.l.b16 %v3796
      %v3895 = vunpack.c.l.b16 %v3797
      %v3896 = vunpack.c.l.b16 %v3798
      %v3897 = vpack.c.b16 %v3849, %v3848
      %v3898 = vpack.c.b16 %v3851, %v3850
      %v3899 = vpack.c.b16 %v3853, %v3852
      %v3900 = vpack.c.b16 %v3855, %v3854
      %v3901 = vpack.c.b16 %v3857, %v3856
      %v3902 = vpack.c.b16 %v3859, %v3858
      %v3903 = vpack.c.b16 %v3861, %v3860
      %v3904 = vpack.c.b16 %v3863, %v3862
      %v3905 = vpack.c.b16 %v3865, %v3864
      %v3906 = vpack.c.b16 %v3867, %v3866
      %v3907 = vpack.c.b16 %v3869, %v3868
      %v3908 = vpack.c.b16 %v3871, %v3870
      %v3909 = vpack.c.b16 %v3873, %v3872
      %v3910 = vpack.c.b16 %v3875, %v3874
      %v3911 = vpack.c.b16 %v3877, %v3876
      %v3912 = vpack.c.b16 %v3879, %v3878
      %v3913 = vpack.c.b16 %v3881, %v3880
      %v3914 = vpack.c.b16 %v3883, %v3882
      %v3915 = vpack.c.b16 %v3885, %v3884
      %v3916 = vpack.c.b16 %v3887, %v3886
      %v3917 = vpack.c.b16 %v3889, %v3888
      %v3918 = vpack.c.b16 %v3891, %v3890
      %v3919 = vpack.c.b16 %v3893, %v3892
      %v3920 = vpack.c.b16 %v3895, %v3894
      %v3921 = vpack.c.b16 %v3896, %v3896
      %v3923 = vshrl.u32 %v3897, 16
      %v3925 = vshll.u32 %v3897, 16
      %v3927 = vrot.slane %v3925, 1
      %v3928 = vor.u32 %v3923, %v3927
      %v3930 = vshll.u32 %v3898, 16
      %v3932 = vrot.slane %v3930, 1
      %v3933 = vsel %vm2922, %v3928, %v3932
      %v3934 = vshrl.u32 %v3898, 16
      %v3936 = vor.u32 %v3934, %v3932
      %v3938 = vshll.u32 %v3899, 16
      %v3940 = vrot.slane %v3938, 1
      %v3941 = vsel %vm2922, %v3936, %v3940
      %v3942 = vshrl.u32 %v3899, 16
      %v3944 = vor.u32 %v3942, %v3940
      %v3946 = vshll.u32 %v3900, 16
      %v3948 = vrot.slane %v3946, 1
      %v3949 = vsel %vm2922, %v3944, %v3948
      %v3950 = vshrl.u32 %v3900, 16
      %v3952 = vor.u32 %v3950, %v3948
      %v3954 = vshll.u32 %v3901, 16
      %v3956 = vrot.slane %v3954, 1
      %v3957 = vsel %vm2922, %v3952, %v3956
      %v3958 = vshrl.u32 %v3901, 16
      %v3960 = vor.u32 %v3958, %v3956
      %v3962 = vshll.u32 %v3902, 16
      %v3964 = vrot.slane %v3962, 1
      %v3965 = vsel %vm2922, %v3960, %v3964
      %v3966 = vshrl.u32 %v3902, 16
      %v3968 = vor.u32 %v3966, %v3964
      %v3970 = vshll.u32 %v3903, 16
      %v3972 = vrot.slane %v3970, 1
      %v3973 = vsel %vm2922, %v3968, %v3972
      %v3974 = vshrl.u32 %v3903, 16
      %v3976 = vor.u32 %v3974, %v3972
      %v3978 = vshll.u32 %v3904, 16
      %v3980 = vrot.slane %v3978, 1
      %v3981 = vsel %vm2922, %v3976, %v3980
      %v3982 = vshrl.u32 %v3904, 16
      %v3984 = vor.u32 %v3982, %v3980
      %v3986 = vshll.u32 %v3905, 16
      %v3988 = vrot.slane %v3986, 1
      %v3989 = vsel %vm2922, %v3984, %v3988
      %v3990 = vshrl.u32 %v3905, 16
      %v3992 = vor.u32 %v3990, %v3988
      %v3994 = vshll.u32 %v3906, 16
      %v3996 = vrot.slane %v3994, 1
      %v3997 = vsel %vm2922, %v3992, %v3996
      %v3998 = vshrl.u32 %v3906, 16
      %v4000 = vor.u32 %v3998, %v3996
      %v4002 = vshll.u32 %v3907, 16
      %v4004 = vrot.slane %v4002, 1
      %v4005 = vsel %vm2922, %v4000, %v4004
      %v4006 = vshrl.u32 %v3907, 16
      %v4008 = vor.u32 %v4006, %v4004
      %v4010 = vshll.u32 %v3908, 16
      %v4012 = vrot.slane %v4010, 1
      %v4013 = vsel %vm2922, %v4008, %v4012
      %v4014 = vshrl.u32 %v3908, 16
      %v4016 = vor.u32 %v4014, %v4012
      %v4018 = vshll.u32 %v3909, 16
      %v4020 = vrot.slane %v4018, 1
      %v4021 = vsel %vm2922, %v4016, %v4020
      %v4022 = vshrl.u32 %v3909, 16
      %v4024 = vor.u32 %v4022, %v4020
      %v4026 = vshll.u32 %v3910, 16
      %v4028 = vrot.slane %v4026, 1
      %v4029 = vsel %vm2922, %v4024, %v4028
      %v4030 = vshrl.u32 %v3910, 16
      %v4032 = vor.u32 %v4030, %v4028
      %v4034 = vshll.u32 %v3911, 16
      %v4036 = vrot.slane %v4034, 1
      %v4037 = vsel %vm2922, %v4032, %v4036
      %v4038 = vshrl.u32 %v3911, 16
      %v4040 = vor.u32 %v4038, %v4036
      %v4042 = vshll.u32 %v3912, 16
      %v4044 = vrot.slane %v4042, 1
      %v4045 = vsel %vm2922, %v4040, %v4044
      %v4046 = vshrl.u32 %v3912, 16
      %v4048 = vor.u32 %v4046, %v4044
      %v4050 = vshll.u32 %v3913, 16
      %v4052 = vrot.slane %v4050, 1
      %v4053 = vsel %vm2922, %v4048, %v4052
      %v4054 = vshrl.u32 %v3913, 16
      %v4056 = vor.u32 %v4054, %v4052
      %v4058 = vshll.u32 %v3914, 16
      %v4060 = vrot.slane %v4058, 1
      %v4061 = vsel %vm2922, %v4056, %v4060
      %v4062 = vshrl.u32 %v3914, 16
      %v4064 = vor.u32 %v4062, %v4060
      %v4066 = vshll.u32 %v3915, 16
      %v4068 = vrot.slane %v4066, 1
      %v4069 = vsel %vm2922, %v4064, %v4068
      %v4070 = vshrl.u32 %v3915, 16
      %v4072 = vor.u32 %v4070, %v4068
      %v4074 = vshll.u32 %v3916, 16
      %v4076 = vrot.slane %v4074, 1
      %v4077 = vsel %vm2922, %v4072, %v4076
      %v4078 = vshrl.u32 %v3916, 16
      %v4080 = vor.u32 %v4078, %v4076
      %v4082 = vshll.u32 %v3917, 16
      %v4084 = vrot.slane %v4082, 1
      %v4085 = vsel %vm2922, %v4080, %v4084
      %v4086 = vshrl.u32 %v3917, 16
      %v4088 = vor.u32 %v4086, %v4084
      %v4090 = vshll.u32 %v3918, 16
      %v4092 = vrot.slane %v4090, 1
      %v4093 = vsel %vm2922, %v4088, %v4092
      %v4094 = vshrl.u32 %v3918, 16
      %v4096 = vor.u32 %v4094, %v4092
      %v4098 = vshll.u32 %v3919, 16
      %v4100 = vrot.slane %v4098, 1
      %v4101 = vsel %vm2922, %v4096, %v4100
      %v4102 = vshrl.u32 %v3919, 16
      %v4104 = vor.u32 %v4102, %v4100
      %v4106 = vshll.u32 %v3920, 16
      %v4108 = vrot.slane %v4106, 1
      %v4109 = vsel %vm2922, %v4104, %v4108
      %v4110 = vshrl.u32 %v3920, 16
      %v4112 = vor.u32 %v4110, %v4108
      %v4114 = vshll.u32 %v3921, 16
      %v4116 = vrot.slane %v4114, 1
      %v4117 = vsel %vm2922, %v4112, %v4116
      %4142 = vst.msk [vmem:[#allocation3 + $0x10] sm:$0xff] %vm2725, %v3933
      %4143 = vst.msk [vmem:[#allocation3 + $0x38] sm:$0xff] %vm2725, %v3941
      %4144 = vst.msk [vmem:[#allocation3 + $0x60] sm:$0xff] %vm2725, %v3949
      %4145 = vst.msk [vmem:[#allocation3 + $0x88] sm:$0xff] %vm2725, %v3957
      %4146 = vst.msk [vmem:[#allocation3 + $0xb0] sm:$0xff] %vm2725, %v3965
      %4147 = vst.msk [vmem:[#allocation3 + $0xd8] sm:$0xff] %vm2725, %v3973
      %4148 = vst.msk [vmem:[#allocation3 + $0x100] sm:$0xff] %vm2725, %v3981
      %4149 = vst.msk [vmem:[#allocation3 + $0x128] sm:$0xff] %vm2725, %v3989
      %4150 = vst.msk [vmem:[#allocation3 + $0x150] sm:$0xff] %vm2725, %v3997
      %4151 = vst.msk [vmem:[#allocation3 + $0x178] sm:$0xff] %vm2725, %v4005
      %4152 = vst.msk [vmem:[#allocation3 + $0x1a0] sm:$0xff] %vm2725, %v4013
      %4153 = vst.msk [vmem:[#allocation3 + $0x1c8] sm:$0xff] %vm2725, %v4021
      %4154 = vst.msk [vmem:[#allocation3 + $0x1f0] sm:$0xff] %vm2725, %v4029
      %4155 = vst.msk [vmem:[#allocation3 + $0x218] sm:$0xff] %vm2725, %v4037
      %4156 = vst.msk [vmem:[#allocation3 + $0x240] sm:$0xff] %vm2725, %v4045
      %4157 = vst.msk [vmem:[#allocation3 + $0x268] sm:$0xff] %vm2725, %v4053
      %4158 = vst.msk [vmem:[#allocation3 + $0x290] sm:$0xff] %vm2725, %v4061
      %4159 = vst.msk [vmem:[#allocation3 + $0x2b8] sm:$0xff] %vm2725, %v4069
      %4160 = vst.msk [vmem:[#allocation3 + $0x2e0] sm:$0xff] %vm2725, %v4077
      %4161 = vst.msk [vmem:[#allocation3 + $0x308] sm:$0xff] %vm2725, %v4085
      %4162 = vst.msk [vmem:[#allocation3 + $0x330] sm:$0xff] %vm2725, %v4093
      %4163 = vst.msk [vmem:[#allocation3 + $0x358] sm:$0xff] %vm2725, %v4101
      %4164 = vst.msk [vmem:[#allocation3 + $0x380] sm:$0xff] %vm2725, %v4109
      %4165 = vst.msk [vmem:[#allocation3 + $0x3a8] sm:$0xff] %vm2725, %v4117
      %v4166 = vld [vmem:[#allocation2 + $0xc] sm:$0xe]
      %v4167 = vld [vmem:[#allocation2 + $0x10] sm:$0xf]
      %v4168 = vld [vmem:[#allocation2 + $0x14] sm:$0xf]
      %v4169 = vld [vmem:[#allocation2 + $0x18] sm:$0xf]
      %v4170 = vld [vmem:[#allocation2 + $0x1c] sm:$0xf]
      %v4171 = vld [vmem:[#allocation2 + $0x20] sm:$0xf]
      %v4172 = vld [vmem:[#allocation2 + $0x24] sm:$0xf]
      %v4173 = vld [vmem:[#allocation2 + $0x28] sm:$0xf]
      %v4174 = vld [vmem:[#allocation2 + $0x2c] sm:$0xf]
      %v4175 = vld [vmem:[#allocation2 + $0x30] sm:$0xf]
      %v4176 = vld [vmem:[#allocation2 + $0x34] sm:$0xf]
      %v4177 = vld [vmem:[#allocation2 + $0x38] sm:$0xf]
      %v4178 = vld [vmem:[#allocation2 + $0x3c] sm:$0xf]
      %v4179 = vld [vmem:[#allocation2 + $0x40] sm:$0xf]
      %v4180 = vld [vmem:[#allocation2 + $0x44] sm:$0xf]
      %v4181 = vld [vmem:[#allocation2 + $0x48] sm:$0xf]
      %v4182 = vld [vmem:[#allocation2 + $0x4c] sm:$0xf]
      %v4183 = vld [vmem:[#allocation2 + $0x50] sm:$0xf]
      %v4184 = vld [vmem:[#allocation2 + $0x54] sm:$0xf]
      %v4185 = vld [vmem:[#allocation2 + $0x58] sm:$0xf]
      %v4186 = vld [vmem:[#allocation2 + $0x5c] sm:$0xf]
      %v4187 = vld [vmem:[#allocation2 + $0x60] sm:$0xf]
      %v4188 = vld [vmem:[#allocation2 + $0x64] sm:$0xf]
      %v4189 = vld [vmem:[#allocation2 + $0x68] sm:$0xf]
      %v4190 = vld [vmem:[#allocation2 + $0x6c] sm:$0xf]
      %v4191 = vld [vmem:[#allocation2 + $0x70] sm:$0xf]
      %v4192 = vld [vmem:[#allocation2 + $0x74] sm:$0xf]
      %v4193 = vld [vmem:[#allocation2 + $0x78] sm:$0xf]
      %v4194 = vld [vmem:[#allocation2 + $0x7c] sm:$0xf]
      %v4195 = vld [vmem:[#allocation2 + $0x80] sm:$0xf]
      %v4196 = vld [vmem:[#allocation2 + $0x84] sm:$0xf]
      %v4197 = vld [vmem:[#allocation2 + $0x88] sm:$0xf]
      %v4198 = vld [vmem:[#allocation2 + $0x8c] sm:$0xf]
      %v4199 = vld [vmem:[#allocation2 + $0x90] sm:$0xf]
      %v4200 = vld [vmem:[#allocation2 + $0x94] sm:$0xf]
      %v4201 = vld [vmem:[#allocation2 + $0x98] sm:$0xf]
      %v4202 = vld [vmem:[#allocation2 + $0x9c] sm:$0xf]
      %v4203 = vld [vmem:[#allocation2 + $0xa0] sm:$0xf]
      %v4204 = vld [vmem:[#allocation2 + $0xa4] sm:$0xf]
      %v4205 = vld [vmem:[#allocation2 + $0xa8] sm:$0xf]
      %v4206 = vld [vmem:[#allocation2 + $0xac] sm:$0xf]
      %v4207 = vld [vmem:[#allocation2 + $0xb0] sm:$0xf]
      %v4208 = vld [vmem:[#allocation2 + $0xb4] sm:$0xf]
      %v4209 = vld [vmem:[#allocation2 + $0xb8] sm:$0xf]
      %v4210 = vld [vmem:[#allocation2 + $0xbc] sm:$0xf]
      %v4211 = vld [vmem:[#allocation2 + $0xc0] sm:$0xf]
      %v4212 = vld [vmem:[#allocation2 + $0xc4] sm:$0xf]
      %v4213 = vld [vmem:[#allocation2 + $0xc8] sm:$0xf]
      %v4214 = vld [vmem:[#allocation2 + $0xcc] sm:$0x1]
      %v4264 = vunpack.c.l.b16 %v4166
      %v4265 = vunpack.c.l.b16 %v4167
      %v4266 = vunpack.c.l.b16 %v4168
      %v4267 = vunpack.c.l.b16 %v4169
      %v4268 = vunpack.c.l.b16 %v4170
      %v4269 = vunpack.c.l.b16 %v4171
      %v4270 = vunpack.c.l.b16 %v4172
      %v4271 = vunpack.c.l.b16 %v4173
      %v4272 = vunpack.c.l.b16 %v4174
      %v4273 = vunpack.c.l.b16 %v4175
      %v4274 = vunpack.c.l.b16 %v4176
      %v4275 = vunpack.c.l.b16 %v4177
      %v4276 = vunpack.c.l.b16 %v4178
      %v4277 = vunpack.c.l.b16 %v4179
      %v4278 = vunpack.c.l.b16 %v4180
      %v4279 = vunpack.c.l.b16 %v4181
      %v4280 = vunpack.c.l.b16 %v4182
      %v4281 = vunpack.c.l.b16 %v4183
      %v4282 = vunpack.c.l.b16 %v4184
      %v4283 = vunpack.c.l.b16 %v4185
      %v4284 = vunpack.c.l.b16 %v4186
      %v4285 = vunpack.c.l.b16 %v4187
      %v4286 = vunpack.c.l.b16 %v4188
      %v4287 = vunpack.c.l.b16 %v4189
      %v4288 = vunpack.c.l.b16 %v4190
      %v4289 = vunpack.c.l.b16 %v4191
      %v4290 = vunpack.c.l.b16 %v4192
      %v4291 = vunpack.c.l.b16 %v4193
      %v4292 = vunpack.c.l.b16 %v4194
      %v4293 = vunpack.c.l.b16 %v4195
      %v4294 = vunpack.c.l.b16 %v4196
      %v4295 = vunpack.c.l.b16 %v4197
      %v4296 = vunpack.c.l.b16 %v4198
      %v4297 = vunpack.c.l.b16 %v4199
      %v4298 = vunpack.c.l.b16 %v4200
      %v4299 = vunpack.c.l.b16 %v4201
      %v4300 = vunpack.c.l.b16 %v4202
      %v4301 = vunpack.c.l.b16 %v4203
      %v4302 = vunpack.c.l.b16 %v4204
      %v4303 = vunpack.c.l.b16 %v4205
      %v4304 = vunpack.c.l.b16 %v4206
      %v4305 = vunpack.c.l.b16 %v4207
      %v4306 = vunpack.c.l.b16 %v4208
      %v4307 = vunpack.c.l.b16 %v4209
      %v4308 = vunpack.c.l.b16 %v4210
      %v4309 = vunpack.c.l.b16 %v4211
      %v4310 = vunpack.c.l.b16 %v4212
      %v4311 = vunpack.c.l.b16 %v4213
      %v4312 = vunpack.c.l.b16 %v4214
      %v4313 = vpack.c.b16 %v4265, %v4264
      %v4314 = vpack.c.b16 %v4267, %v4266
      %v4315 = vpack.c.b16 %v4269, %v4268
      %v4316 = vpack.c.b16 %v4271, %v4270
      %v4317 = vpack.c.b16 %v4273, %v4272
      %v4318 = vpack.c.b16 %v4275, %v4274
      %v4319 = vpack.c.b16 %v4277, %v4276
      %v4320 = vpack.c.b16 %v4279, %v4278
      %v4321 = vpack.c.b16 %v4281, %v4280
      %v4322 = vpack.c.b16 %v4283, %v4282
      %v4323 = vpack.c.b16 %v4285, %v4284
      %v4324 = vpack.c.b16 %v4287, %v4286
      %v4325 = vpack.c.b16 %v4289, %v4288
      %v4326 = vpack.c.b16 %v4291, %v4290
      %v4327 = vpack.c.b16 %v4293, %v4292
      %v4328 = vpack.c.b16 %v4295, %v4294
      %v4329 = vpack.c.b16 %v4297, %v4296
      %v4330 = vpack.c.b16 %v4299, %v4298
      %v4331 = vpack.c.b16 %v4301, %v4300
      %v4332 = vpack.c.b16 %v4303, %v4302
      %v4333 = vpack.c.b16 %v4305, %v4304
      %v4334 = vpack.c.b16 %v4307, %v4306
      %v4335 = vpack.c.b16 %v4309, %v4308
      %v4336 = vpack.c.b16 %v4311, %v4310
      %v4337 = vpack.c.b16 %v4312, %v4312
      %v4338 = vrot.slane %v4313, 1
      %v4339 = vrot.slane %v4314, 1
      %v4340 = vsel %vm3388, %v4338, %v4339
      %v4341 = vrot.slane %v4315, 1
      %v4342 = vsel %vm3388, %v4339, %v4341
      %v4343 = vrot.slane %v4316, 1
      %v4344 = vsel %vm3388, %v4341, %v4343
      %v4345 = vrot.slane %v4317, 1
      %v4346 = vsel %vm3388, %v4343, %v4345
      %v4347 = vrot.slane %v4318, 1
      %v4348 = vsel %vm3388, %v4345, %v4347
      %v4349 = vrot.slane %v4319, 1
      %v4350 = vsel %vm3388, %v4347, %v4349
      %v4351 = vrot.slane %v4320, 1
      %v4352 = vsel %vm3388, %v4349, %v4351
      %v4353 = vrot.slane %v4321, 1
      %v4354 = vsel %vm3388, %v4351, %v4353
      %v4355 = vrot.slane %v4322, 1
      %v4356 = vsel %vm3388, %v4353, %v4355
      %v4357 = vrot.slane %v4323, 1
      %v4358 = vsel %vm3388, %v4355, %v4357
      %v4359 = vrot.slane %v4324, 1
      %v4360 = vsel %vm3388, %v4357, %v4359
      %v4361 = vrot.slane %v4325, 1
      %v4362 = vsel %vm3388, %v4359, %v4361
      %v4363 = vrot.slane %v4326, 1
      %v4364 = vsel %vm3388, %v4361, %v4363
      %v4365 = vrot.slane %v4327, 1
      %v4366 = vsel %vm3388, %v4363, %v4365
      %v4367 = vrot.slane %v4328, 1
      %v4368 = vsel %vm3388, %v4365, %v4367
      %v4369 = vrot.slane %v4329, 1
      %v4370 = vsel %vm3388, %v4367, %v4369
      %v4371 = vrot.slane %v4330, 1
      %v4372 = vsel %vm3388, %v4369, %v4371
      %v4373 = vrot.slane %v4331, 1
      %v4374 = vsel %vm3388, %v4371, %v4373
      %v4375 = vrot.slane %v4332, 1
      %v4376 = vsel %vm3388, %v4373, %v4375
      %v4377 = vrot.slane %v4333, 1
      %v4378 = vsel %vm3388, %v4375, %v4377
      %v4379 = vrot.slane %v4334, 1
      %v4380 = vsel %vm3388, %v4377, %v4379
      %v4381 = vrot.slane %v4335, 1
      %v4382 = vsel %vm3388, %v4379, %v4381
      %v4383 = vrot.slane %v4336, 1
      %v4384 = vsel %vm3388, %v4381, %v4383
      %v4385 = vrot.slane %v4337, 1
      %v4386 = vsel %vm3388, %v4383, %v4385
      %4387 = vrot.lane.b32.xlu0 %v4340, 64
      %v4388 = vpop.permute.xlu0 %4387
      %4389 = vrot.lane.b32.xlu0 %v4342, 64
      %v4390 = vpop.permute.xlu0 %4389
      %4391 = vrot.lane.b32.xlu0 %v4344, 64
      %v4392 = vpop.permute.xlu0 %4391
      %4393 = vrot.lane.b32.xlu0 %v4346, 64
      %v4394 = vpop.permute.xlu0 %4393
      %4395 = vrot.lane.b32.xlu0 %v4348, 64
      %v4396 = vpop.permute.xlu0 %4395
      %4397 = vrot.lane.b32.xlu0 %v4350, 64
      %v4398 = vpop.permute.xlu0 %4397
      %4399 = vrot.lane.b32.xlu0 %v4352, 64
      %v4400 = vpop.permute.xlu0 %4399
      %4401 = vrot.lane.b32.xlu0 %v4354, 64
      %v4402 = vpop.permute.xlu0 %4401
      %4403 = vrot.lane.b32.xlu0 %v4356, 64
      %v4404 = vpop.permute.xlu0 %4403
      %4405 = vrot.lane.b32.xlu0 %v4358, 64
      %v4406 = vpop.permute.xlu0 %4405
      %4407 = vrot.lane.b32.xlu0 %v4360, 64
      %v4408 = vpop.permute.xlu0 %4407
      %4409 = vrot.lane.b32.xlu0 %v4362, 64
      %v4410 = vpop.permute.xlu0 %4409
      %4411 = vrot.lane.b32.xlu0 %v4364, 64
      %v4412 = vpop.permute.xlu0 %4411
      %4413 = vrot.lane.b32.xlu0 %v4366, 64
      %v4414 = vpop.permute.xlu0 %4413
      %4415 = vrot.lane.b32.xlu0 %v4368, 64
      %v4416 = vpop.permute.xlu0 %4415
      %4417 = vrot.lane.b32.xlu0 %v4370, 64
      %v4418 = vpop.permute.xlu0 %4417
      %4419 = vrot.lane.b32.xlu0 %v4372, 64
      %v4420 = vpop.permute.xlu0 %4419
      %4421 = vrot.lane.b32.xlu0 %v4374, 64
      %v4422 = vpop.permute.xlu0 %4421
      %4423 = vrot.lane.b32.xlu0 %v4376, 64
      %v4424 = vpop.permute.xlu0 %4423
      %4425 = vrot.lane.b32.xlu0 %v4378, 64
      %v4426 = vpop.permute.xlu0 %4425
      %4427 = vrot.lane.b32.xlu0 %v4380, 64
      %v4428 = vpop.permute.xlu0 %4427
      %4429 = vrot.lane.b32.xlu0 %v4382, 64
      %v4430 = vpop.permute.xlu0 %4429
      %4431 = vrot.lane.b32.xlu0 %v4384, 64
      %v4432 = vpop.permute.xlu0 %4431
      %4433 = vrot.lane.b32.xlu0 %v4386, 64
      %v4434 = vpop.permute.xlu0 %4433
      %4459 = vst.msk [vmem:[#allocation3 + $0x10] sm:$0xff] %vm3191, %v4388
      %4460 = vst.msk [vmem:[#allocation3 + $0x38] sm:$0xff] %vm3191, %v4390
      %4461 = vst.msk [vmem:[#allocation3 + $0x60] sm:$0xff] %vm3191, %v4392
      %4462 = vst.msk [vmem:[#allocation3 + $0x88] sm:$0xff] %vm3191, %v4394
      %4463 = vst.msk [vmem:[#allocation3 + $0xb0] sm:$0xff] %vm3191, %v4396
      %4464 = vst.msk [vmem:[#allocation3 + $0xd8] sm:$0xff] %vm3191, %v4398
      %4465 = vst.msk [vmem:[#allocation3 + $0x100] sm:$0xff] %vm3191, %v4400
      %4466 = vst.msk [vmem:[#allocation3 + $0x128] sm:$0xff] %vm3191, %v4402
      %4467 = vst.msk [vmem:[#allocation3 + $0x150] sm:$0xff] %vm3191, %v4404
      %4468 = vst.msk [vmem:[#allocation3 + $0x178] sm:$0xff] %vm3191, %v4406
      %4469 = vst.msk [vmem:[#allocation3 + $0x1a0] sm:$0xff] %vm3191, %v4408
      %4470 = vst.msk [vmem:[#allocation3 + $0x1c8] sm:$0xff] %vm3191, %v4410
      %4471 = vst.msk [vmem:[#allocation3 + $0x1f0] sm:$0xff] %vm3191, %v4412
      %4472 = vst.msk [vmem:[#allocation3 + $0x218] sm:$0xff] %vm3191, %v4414
      %4473 = vst.msk [vmem:[#allocation3 + $0x240] sm:$0xff] %vm3191, %v4416
      %4474 = vst.msk [vmem:[#allocation3 + $0x268] sm:$0xff] %vm3191, %v4418
      %4475 = vst.msk [vmem:[#allocation3 + $0x290] sm:$0xff] %vm3191, %v4420
      %4476 = vst.msk [vmem:[#allocation3 + $0x2b8] sm:$0xff] %vm3191, %v4422
      %4477 = vst.msk [vmem:[#allocation3 + $0x2e0] sm:$0xff] %vm3191, %v4424
      %4478 = vst.msk [vmem:[#allocation3 + $0x308] sm:$0xff] %vm3191, %v4426
      %4479 = vst.msk [vmem:[#allocation3 + $0x330] sm:$0xff] %vm3191, %v4428
      %4480 = vst.msk [vmem:[#allocation3 + $0x358] sm:$0xff] %vm3191, %v4430
      %4481 = vst.msk [vmem:[#allocation3 + $0x380] sm:$0xff] %vm3191, %v4432
      %4482 = vst.msk [vmem:[#allocation3 + $0x3a8] sm:$0xff] %vm3191, %v4434
      %v4483 = vld [vmem:[#allocation2 + $0x18] sm:$0xf]
      %v4484 = vld [vmem:[#allocation2 + $0x1c] sm:$0xf]
      %v4485 = vld [vmem:[#allocation2 + $0x20] sm:$0xf]
      %v4486 = vld [vmem:[#allocation2 + $0x24] sm:$0xf]
      %v4487 = vld [vmem:[#allocation2 + $0x28] sm:$0xf]
      %v4488 = vld [vmem:[#allocation2 + $0x2c] sm:$0xf]
      %v4489 = vld [vmem:[#allocation2 + $0x30] sm:$0xf]
      %v4490 = vld [vmem:[#allocation2 + $0x34] sm:$0xf]
      %v4491 = vld [vmem:[#allocation2 + $0x38] sm:$0xf]
      %v4492 = vld [vmem:[#allocation2 + $0x3c] sm:$0xf]
      %v4493 = vld [vmem:[#allocation2 + $0x40] sm:$0xf]
      %v4494 = vld [vmem:[#allocation2 + $0x44] sm:$0xf]
      %v4495 = vld [vmem:[#allocation2 + $0x48] sm:$0xf]
      %v4496 = vld [vmem:[#allocation2 + $0x4c] sm:$0xf]
      %v4497 = vld [vmem:[#allocation2 + $0x50] sm:$0xf]
      %v4498 = vld [vmem:[#allocation2 + $0x54] sm:$0xf]
      %v4499 = vld [vmem:[#allocation2 + $0x58] sm:$0xf]
      %v4500 = vld [vmem:[#allocation2 + $0x5c] sm:$0xf]
      %v4501 = vld [vmem:[#allocation2 + $0x60] sm:$0xf]
      %v4502 = vld [vmem:[#allocation2 + $0x64] sm:$0xf]
      %v4503 = vld [vmem:[#allocation2 + $0x68] sm:$0xf]
      %v4504 = vld [vmem:[#allocation2 + $0x6c] sm:$0xf]
      %v4505 = vld [vmem:[#allocation2 + $0x70] sm:$0xf]
      %v4506 = vld [vmem:[#allocation2 + $0x74] sm:$0xf]
      %v4507 = vld [vmem:[#allocation2 + $0x78] sm:$0xf]
      %v4508 = vld [vmem:[#allocation2 + $0x7c] sm:$0xf]
      %v4509 = vld [vmem:[#allocation2 + $0x80] sm:$0xf]
      %v4510 = vld [vmem:[#allocation2 + $0x84] sm:$0xf]
      %v4511 = vld [vmem:[#allocation2 + $0x88] sm:$0xf]
      %v4512 = vld [vmem:[#allocation2 + $0x8c] sm:$0xf]
      %v4513 = vld [vmem:[#allocation2 + $0x90] sm:$0xf]
      %v4514 = vld [vmem:[#allocation2 + $0x94] sm:$0xf]
      %v4515 = vld [vmem:[#allocation2 + $0x98] sm:$0xf]
      %v4516 = vld [vmem:[#allocation2 + $0x9c] sm:$0xf]
      %v4517 = vld [vmem:[#allocation2 + $0xa0] sm:$0xf]
      %v4518 = vld [vmem:[#allocation2 + $0xa4] sm:$0xf]
      %v4519 = vld [vmem:[#allocation2 + $0xa8] sm:$0xf]
      %v4520 = vld [vmem:[#allocation2 + $0xac] sm:$0xf]
      %v4521 = vld [vmem:[#allocation2 + $0xb0] sm:$0xf]
      %v4522 = vld [vmem:[#allocation2 + $0xb4] sm:$0xf]
      %v4523 = vld [vmem:[#allocation2 + $0xb8] sm:$0xf]
      %v4524 = vld [vmem:[#allocation2 + $0xbc] sm:$0xf]
      %v4525 = vld [vmem:[#allocation2 + $0xc0] sm:$0xf]
      %v4526 = vld [vmem:[#allocation2 + $0xc4] sm:$0xf]
      %v4527 = vld [vmem:[#allocation2 + $0xc8] sm:$0xf]
      %v4528 = vld [vmem:[#allocation2 + $0xcc] sm:$0xf]
      %v4529 = vld [vmem:[#allocation2 + $0xd0] sm:$0xf]
      %v4530 = vld [vmem:[#allocation2 + $0xd4] sm:$0xf]
      %v4579 = vunpack.c.l.b16 %v4483
      %v4580 = vunpack.c.l.b16 %v4484
      %v4581 = vunpack.c.l.b16 %v4485
      %v4582 = vunpack.c.l.b16 %v4486
      %v4583 = vunpack.c.l.b16 %v4487
      %v4584 = vunpack.c.l.b16 %v4488
      %v4585 = vunpack.c.l.b16 %v4489
      %v4586 = vunpack.c.l.b16 %v4490
      %v4587 = vunpack.c.l.b16 %v4491
      %v4588 = vunpack.c.l.b16 %v4492
      %v4589 = vunpack.c.l.b16 %v4493
      %v4590 = vunpack.c.l.b16 %v4494
      %v4591 = vunpack.c.l.b16 %v4495
      %v4592 = vunpack.c.l.b16 %v4496
      %v4593 = vunpack.c.l.b16 %v4497
      %v4594 = vunpack.c.l.b16 %v4498
      %v4595 = vunpack.c.l.b16 %v4499
      %v4596 = vunpack.c.l.b16 %v4500
      %v4597 = vunpack.c.l.b16 %v4501
      %v4598 = vunpack.c.l.b16 %v4502
      %v4599 = vunpack.c.l.b16 %v4503
      %v4600 = vunpack.c.l.b16 %v4504
      %v4601 = vunpack.c.l.b16 %v4505
      %v4602 = vunpack.c.l.b16 %v4506
      %v4603 = vunpack.c.l.b16 %v4507
      %v4604 = vunpack.c.l.b16 %v4508
      %v4605 = vunpack.c.l.b16 %v4509
      %v4606 = vunpack.c.l.b16 %v4510
      %v4607 = vunpack.c.l.b16 %v4511
      %v4608 = vunpack.c.l.b16 %v4512
      %v4609 = vunpack.c.l.b16 %v4513
      %v4610 = vunpack.c.l.b16 %v4514
      %v4611 = vunpack.c.l.b16 %v4515
      %v4612 = vunpack.c.l.b16 %v4516
      %v4613 = vunpack.c.l.b16 %v4517
      %v4614 = vunpack.c.l.b16 %v4518
      %v4615 = vunpack.c.l.b16 %v4519
      %v4616 = vunpack.c.l.b16 %v4520
      %v4617 = vunpack.c.l.b16 %v4521
      %v4618 = vunpack.c.l.b16 %v4522
      %v4619 = vunpack.c.l.b16 %v4523
      %v4620 = vunpack.c.l.b16 %v4524
      %v4621 = vunpack.c.l.b16 %v4525
      %v4622 = vunpack.c.l.b16 %v4526
      %v4623 = vunpack.c.l.b16 %v4527
      %v4624 = vunpack.c.l.b16 %v4528
      %v4625 = vunpack.c.l.b16 %v4529
      %v4626 = vunpack.c.l.b16 %v4530
      %v4627 = vpack.c.b16 %v4580, %v4579
      %v4628 = vpack.c.b16 %v4582, %v4581
      %v4629 = vpack.c.b16 %v4584, %v4583
      %v4630 = vpack.c.b16 %v4586, %v4585
      %v4631 = vpack.c.b16 %v4588, %v4587
      %v4632 = vpack.c.b16 %v4590, %v4589
      %v4633 = vpack.c.b16 %v4592, %v4591
      %v4634 = vpack.c.b16 %v4594, %v4593
      %v4635 = vpack.c.b16 %v4596, %v4595
      %v4636 = vpack.c.b16 %v4598, %v4597
      %v4637 = vpack.c.b16 %v4600, %v4599
      %v4638 = vpack.c.b16 %v4602, %v4601
      %v4639 = vpack.c.b16 %v4604, %v4603
      %v4640 = vpack.c.b16 %v4606, %v4605
      %v4641 = vpack.c.b16 %v4608, %v4607
      %v4642 = vpack.c.b16 %v4610, %v4609
      %v4643 = vpack.c.b16 %v4612, %v4611
      %v4644 = vpack.c.b16 %v4614, %v4613
      %v4645 = vpack.c.b16 %v4616, %v4615
      %v4646 = vpack.c.b16 %v4618, %v4617
      %v4647 = vpack.c.b16 %v4620, %v4619
      %v4648 = vpack.c.b16 %v4622, %v4621
      %v4649 = vpack.c.b16 %v4624, %v4623
      %v4650 = vpack.c.b16 %v4626, %v4625
      %4675 = vst.msk [vmem:[#allocation3 + $0x18] sm:$0xff] %vm2725, %v4627
      %4676 = vst.msk [vmem:[#allocation3 + $0x40] sm:$0xff] %vm2725, %v4628
      %4677 = vst.msk [vmem:[#allocation3 + $0x68] sm:$0xff] %vm2725, %v4629
      %4678 = vst.msk [vmem:[#allocation3 + $0x90] sm:$0xff] %vm2725, %v4630
      %4679 = vst.msk [vmem:[#allocation3 + $0xb8] sm:$0xff] %vm2725, %v4631
      %4680 = vst.msk [vmem:[#allocation3 + $0xe0] sm:$0xff] %vm2725, %v4632
      %4681 = vst.msk [vmem:[#allocation3 + $0x108] sm:$0xff] %vm2725, %v4633
      %4682 = vst.msk [vmem:[#allocation3 + $0x130] sm:$0xff] %vm2725, %v4634
      %4683 = vst.msk [vmem:[#allocation3 + $0x158] sm:$0xff] %vm2725, %v4635
      %4684 = vst.msk [vmem:[#allocation3 + $0x180] sm:$0xff] %vm2725, %v4636
      %4685 = vst.msk [vmem:[#allocation3 + $0x1a8] sm:$0xff] %vm2725, %v4637
      %4686 = vst.msk [vmem:[#allocation3 + $0x1d0] sm:$0xff] %vm2725, %v4638
      %4687 = vst.msk [vmem:[#allocation3 + $0x1f8] sm:$0xff] %vm2725, %v4639
      %4688 = vst.msk [vmem:[#allocation3 + $0x220] sm:$0xff] %vm2725, %v4640
      %4689 = vst.msk [vmem:[#allocation3 + $0x248] sm:$0xff] %vm2725, %v4641
      %4690 = vst.msk [vmem:[#allocation3 + $0x270] sm:$0xff] %vm2725, %v4642
      %4691 = vst.msk [vmem:[#allocation3 + $0x298] sm:$0xff] %vm2725, %v4643
      %4692 = vst.msk [vmem:[#allocation3 + $0x2c0] sm:$0xff] %vm2725, %v4644
      %4693 = vst.msk [vmem:[#allocation3 + $0x2e8] sm:$0xff] %vm2725, %v4645
      %4694 = vst.msk [vmem:[#allocation3 + $0x310] sm:$0xff] %vm2725, %v4646
      %4695 = vst.msk [vmem:[#allocation3 + $0x338] sm:$0xff] %vm2725, %v4647
      %4696 = vst.msk [vmem:[#allocation3 + $0x360] sm:$0xff] %vm2725, %v4648
      %4697 = vst.msk [vmem:[#allocation3 + $0x388] sm:$0xff] %vm2725, %v4649
      %4698 = vst.msk [vmem:[#allocation3 + $0x3b0] sm:$0xff] %vm2725, %v4650
      %v4699 = vld [vmem:[#allocation2 + $0x18] sm:$0xf]
      %v4700 = vld [vmem:[#allocation2 + $0x1c] sm:$0xf]
      %v4701 = vld [vmem:[#allocation2 + $0x20] sm:$0xf]
      %v4702 = vld [vmem:[#allocation2 + $0x24] sm:$0xf]
      %v4703 = vld [vmem:[#allocation2 + $0x28] sm:$0xf]
      %v4704 = vld [vmem:[#allocation2 + $0x2c] sm:$0xf]
      %v4705 = vld [vmem:[#allocation2 + $0x30] sm:$0xf]
      %v4706 = vld [vmem:[#allocation2 + $0x34] sm:$0xf]
      %v4707 = vld [vmem:[#allocation2 + $0x38] sm:$0xf]
      %v4708 = vld [vmem:[#allocation2 + $0x3c] sm:$0xf]
      %v4709 = vld [vmem:[#allocation2 + $0x40] sm:$0xf]
      %v4710 = vld [vmem:[#allocation2 + $0x44] sm:$0xf]
      %v4711 = vld [vmem:[#allocation2 + $0x48] sm:$0xf]
      %v4712 = vld [vmem:[#allocation2 + $0x4c] sm:$0xf]
      %v4713 = vld [vmem:[#allocation2 + $0x50] sm:$0xf]
      %v4714 = vld [vmem:[#allocation2 + $0x54] sm:$0xf]
      %v4715 = vld [vmem:[#allocation2 + $0x58] sm:$0xf]
      %v4716 = vld [vmem:[#allocation2 + $0x5c] sm:$0xf]
      %v4717 = vld [vmem:[#allocation2 + $0x60] sm:$0xf]
      %v4718 = vld [vmem:[#allocation2 + $0x64] sm:$0xf]
      %v4719 = vld [vmem:[#allocation2 + $0x68] sm:$0xf]
      %v4720 = vld [vmem:[#allocation2 + $0x6c] sm:$0xf]
      %v4721 = vld [vmem:[#allocation2 + $0x70] sm:$0xf]
      %v4722 = vld [vmem:[#allocation2 + $0x74] sm:$0xf]
      %v4723 = vld [vmem:[#allocation2 + $0x78] sm:$0xf]
      %v4724 = vld [vmem:[#allocation2 + $0x7c] sm:$0xf]
      %v4725 = vld [vmem:[#allocation2 + $0x80] sm:$0xf]
      %v4726 = vld [vmem:[#allocation2 + $0x84] sm:$0xf]
      %v4727 = vld [vmem:[#allocation2 + $0x88] sm:$0xf]
      %v4728 = vld [vmem:[#allocation2 + $0x8c] sm:$0xf]
      %v4729 = vld [vmem:[#allocation2 + $0x90] sm:$0xf]
      %v4730 = vld [vmem:[#allocation2 + $0x94] sm:$0xf]
      %v4731 = vld [vmem:[#allocation2 + $0x98] sm:$0xf]
      %v4732 = vld [vmem:[#allocation2 + $0x9c] sm:$0xf]
      %v4733 = vld [vmem:[#allocation2 + $0xa0] sm:$0xf]
      %v4734 = vld [vmem:[#allocation2 + $0xa4] sm:$0xf]
      %v4735 = vld [vmem:[#allocation2 + $0xa8] sm:$0xf]
      %v4736 = vld [vmem:[#allocation2 + $0xac] sm:$0xf]
      %v4737 = vld [vmem:[#allocation2 + $0xb0] sm:$0xf]
      %v4738 = vld [vmem:[#allocation2 + $0xb4] sm:$0xf]
      %v4739 = vld [vmem:[#allocation2 + $0xb8] sm:$0xf]
      %v4740 = vld [vmem:[#allocation2 + $0xbc] sm:$0xf]
      %v4741 = vld [vmem:[#allocation2 + $0xc0] sm:$0xf]
      %v4742 = vld [vmem:[#allocation2 + $0xc4] sm:$0xf]
      %v4743 = vld [vmem:[#allocation2 + $0xc8] sm:$0xf]
      %v4744 = vld [vmem:[#allocation2 + $0xcc] sm:$0xf]
      %v4745 = vld [vmem:[#allocation2 + $0xd0] sm:$0xf]
      %v4746 = vld [vmem:[#allocation2 + $0xd4] sm:$0xf]
      %v4747 = vld [vmem:[#allocation2 + $0xd8] sm:$0x1]
      %v4797 = vunpack.c.l.b16 %v4699
      %v4798 = vunpack.c.l.b16 %v4700
      %v4799 = vunpack.c.l.b16 %v4701
      %v4800 = vunpack.c.l.b16 %v4702
      %v4801 = vunpack.c.l.b16 %v4703
      %v4802 = vunpack.c.l.b16 %v4704
      %v4803 = vunpack.c.l.b16 %v4705
      %v4804 = vunpack.c.l.b16 %v4706
      %v4805 = vunpack.c.l.b16 %v4707
      %v4806 = vunpack.c.l.b16 %v4708
      %v4807 = vunpack.c.l.b16 %v4709
      %v4808 = vunpack.c.l.b16 %v4710
      %v4809 = vunpack.c.l.b16 %v4711
      %v4810 = vunpack.c.l.b16 %v4712
      %v4811 = vunpack.c.l.b16 %v4713
      %v4812 = vunpack.c.l.b16 %v4714
      %v4813 = vunpack.c.l.b16 %v4715
      %v4814 = vunpack.c.l.b16 %v4716
      %v4815 = vunpack.c.l.b16 %v4717
      %v4816 = vunpack.c.l.b16 %v4718
      %v4817 = vunpack.c.l.b16 %v4719
      %v4818 = vunpack.c.l.b16 %v4720
      %v4819 = vunpack.c.l.b16 %v4721
      %v4820 = vunpack.c.l.b16 %v4722
      %v4821 = vunpack.c.l.b16 %v4723
      %v4822 = vunpack.c.l.b16 %v4724
      %v4823 = vunpack.c.l.b16 %v4725
      %v4824 = vunpack.c.l.b16 %v4726
      %v4825 = vunpack.c.l.b16 %v4727
      %v4826 = vunpack.c.l.b16 %v4728
      %v4827 = vunpack.c.l.b16 %v4729
      %v4828 = vunpack.c.l.b16 %v4730
      %v4829 = vunpack.c.l.b16 %v4731
      %v4830 = vunpack.c.l.b16 %v4732
      %v4831 = vunpack.c.l.b16 %v4733
      %v4832 = vunpack.c.l.b16 %v4734
      %v4833 = vunpack.c.l.b16 %v4735
      %v4834 = vunpack.c.l.b16 %v4736
      %v4835 = vunpack.c.l.b16 %v4737
      %v4836 = vunpack.c.l.b16 %v4738
      %v4837 = vunpack.c.l.b16 %v4739
      %v4838 = vunpack.c.l.b16 %v4740
      %v4839 = vunpack.c.l.b16 %v4741
      %v4840 = vunpack.c.l.b16 %v4742
      %v4841 = vunpack.c.l.b16 %v4743
      %v4842 = vunpack.c.l.b16 %v4744
      %v4843 = vunpack.c.l.b16 %v4745
      %v4844 = vunpack.c.l.b16 %v4746
      %v4845 = vunpack.c.l.b16 %v4747
      %v4846 = vpack.c.b16 %v4798, %v4797
      %v4847 = vpack.c.b16 %v4800, %v4799
      %v4848 = vpack.c.b16 %v4802, %v4801
      %v4849 = vpack.c.b16 %v4804, %v4803
      %v4850 = vpack.c.b16 %v4806, %v4805
      %v4851 = vpack.c.b16 %v4808, %v4807
      %v4852 = vpack.c.b16 %v4810, %v4809
      %v4853 = vpack.c.b16 %v4812, %v4811
      %v4854 = vpack.c.b16 %v4814, %v4813
      %v4855 = vpack.c.b16 %v4816, %v4815
      %v4856 = vpack.c.b16 %v4818, %v4817
      %v4857 = vpack.c.b16 %v4820, %v4819
      %v4858 = vpack.c.b16 %v4822, %v4821
      %v4859 = vpack.c.b16 %v4824, %v4823
      %v4860 = vpack.c.b16 %v4826, %v4825
      %v4861 = vpack.c.b16 %v4828, %v4827
      %v4862 = vpack.c.b16 %v4830, %v4829
      %v4863 = vpack.c.b16 %v4832, %v4831
      %v4864 = vpack.c.b16 %v4834, %v4833
      %v4865 = vpack.c.b16 %v4836, %v4835
      %v4866 = vpack.c.b16 %v4838, %v4837
      %v4867 = vpack.c.b16 %v4840, %v4839
      %v4868 = vpack.c.b16 %v4842, %v4841
      %v4869 = vpack.c.b16 %v4844, %v4843
      %v4870 = vpack.c.b16 %v4845, %v4845
      %v4872 = vshrl.u32 %v4846, 16
      %v4874 = vshll.u32 %v4846, 16
      %v4876 = vrot.slane %v4874, 1
      %v4877 = vor.u32 %v4872, %v4876
      %v4879 = vshll.u32 %v4847, 16
      %v4881 = vrot.slane %v4879, 1
      %v4882 = vsel %vm2922, %v4877, %v4881
      %v4883 = vshrl.u32 %v4847, 16
      %v4885 = vor.u32 %v4883, %v4881
      %v4887 = vshll.u32 %v4848, 16
      %v4889 = vrot.slane %v4887, 1
      %v4890 = vsel %vm2922, %v4885, %v4889
      %v4891 = vshrl.u32 %v4848, 16
      %v4893 = vor.u32 %v4891, %v4889
      %v4895 = vshll.u32 %v4849, 16
      %v4897 = vrot.slane %v4895, 1
      %v4898 = vsel %vm2922, %v4893, %v4897
      %v4899 = vshrl.u32 %v4849, 16
      %v4901 = vor.u32 %v4899, %v4897
      %v4903 = vshll.u32 %v4850, 16
      %v4905 = vrot.slane %v4903, 1
      %v4906 = vsel %vm2922, %v4901, %v4905
      %v4907 = vshrl.u32 %v4850, 16
      %v4909 = vor.u32 %v4907, %v4905
      %v4911 = vshll.u32 %v4851, 16
      %v4913 = vrot.slane %v4911, 1
      %v4914 = vsel %vm2922, %v4909, %v4913
      %v4915 = vshrl.u32 %v4851, 16
      %v4917 = vor.u32 %v4915, %v4913
      %v4919 = vshll.u32 %v4852, 16
      %v4921 = vrot.slane %v4919, 1
      %v4922 = vsel %vm2922, %v4917, %v4921
      %v4923 = vshrl.u32 %v4852, 16
      %v4925 = vor.u32 %v4923, %v4921
      %v4927 = vshll.u32 %v4853, 16
      %v4929 = vrot.slane %v4927, 1
      %v4930 = vsel %vm2922, %v4925, %v4929
      %v4931 = vshrl.u32 %v4853, 16
      %v4933 = vor.u32 %v4931, %v4929
      %v4935 = vshll.u32 %v4854, 16
      %v4937 = vrot.slane %v4935, 1
      %v4938 = vsel %vm2922, %v4933, %v4937
      %v4939 = vshrl.u32 %v4854, 16
      %v4941 = vor.u32 %v4939, %v4937
      %v4943 = vshll.u32 %v4855, 16
      %v4945 = vrot.slane %v4943, 1
      %v4946 = vsel %vm2922, %v4941, %v4945
      %v4947 = vshrl.u32 %v4855, 16
      %v4949 = vor.u32 %v4947, %v4945
      %v4951 = vshll.u32 %v4856, 16
      %v4953 = vrot.slane %v4951, 1
      %v4954 = vsel %vm2922, %v4949, %v4953
      %v4955 = vshrl.u32 %v4856, 16
      %v4957 = vor.u32 %v4955, %v4953
      %v4959 = vshll.u32 %v4857, 16
      %v4961 = vrot.slane %v4959, 1
      %v4962 = vsel %vm2922, %v4957, %v4961
      %v4963 = vshrl.u32 %v4857, 16
      %v4965 = vor.u32 %v4963, %v4961
      %v4967 = vshll.u32 %v4858, 16
      %v4969 = vrot.slane %v4967, 1
      %v4970 = vsel %vm2922, %v4965, %v4969
      %v4971 = vshrl.u32 %v4858, 16
      %v4973 = vor.u32 %v4971, %v4969
      %v4975 = vshll.u32 %v4859, 16
      %v4977 = vrot.slane %v4975, 1
      %v4978 = vsel %vm2922, %v4973, %v4977
      %v4979 = vshrl.u32 %v4859, 16
      %v4981 = vor.u32 %v4979, %v4977
      %v4983 = vshll.u32 %v4860, 16
      %v4985 = vrot.slane %v4983, 1
      %v4986 = vsel %vm2922, %v4981, %v4985
      %v4987 = vshrl.u32 %v4860, 16
      %v4989 = vor.u32 %v4987, %v4985
      %v4991 = vshll.u32 %v4861, 16
      %v4993 = vrot.slane %v4991, 1
      %v4994 = vsel %vm2922, %v4989, %v4993
      %v4995 = vshrl.u32 %v4861, 16
      %v4997 = vor.u32 %v4995, %v4993
      %v4999 = vshll.u32 %v4862, 16
      %v5001 = vrot.slane %v4999, 1
      %v5002 = vsel %vm2922, %v4997, %v5001
      %v5003 = vshrl.u32 %v4862, 16
      %v5005 = vor.u32 %v5003, %v5001
      %v5007 = vshll.u32 %v4863, 16
      %v5009 = vrot.slane %v5007, 1
      %v5010 = vsel %vm2922, %v5005, %v5009
      %v5011 = vshrl.u32 %v4863, 16
      %v5013 = vor.u32 %v5011, %v5009
      %v5015 = vshll.u32 %v4864, 16
      %v5017 = vrot.slane %v5015, 1
      %v5018 = vsel %vm2922, %v5013, %v5017
      %v5019 = vshrl.u32 %v4864, 16
      %v5021 = vor.u32 %v5019, %v5017
      %v5023 = vshll.u32 %v4865, 16
      %v5025 = vrot.slane %v5023, 1
      %v5026 = vsel %vm2922, %v5021, %v5025
      %v5027 = vshrl.u32 %v4865, 16
      %v5029 = vor.u32 %v5027, %v5025
      %v5031 = vshll.u32 %v4866, 16
      %v5033 = vrot.slane %v5031, 1
      %v5034 = vsel %vm2922, %v5029, %v5033
      %v5035 = vshrl.u32 %v4866, 16
      %v5037 = vor.u32 %v5035, %v5033
      %v5039 = vshll.u32 %v4867, 16
      %v5041 = vrot.slane %v5039, 1
      %v5042 = vsel %vm2922, %v5037, %v5041
      %v5043 = vshrl.u32 %v4867, 16
      %v5045 = vor.u32 %v5043, %v5041
      %v5047 = vshll.u32 %v4868, 16
      %v5049 = vrot.slane %v5047, 1
      %v5050 = vsel %vm2922, %v5045, %v5049
      %v5051 = vshrl.u32 %v4868, 16
      %v5053 = vor.u32 %v5051, %v5049
      %v5055 = vshll.u32 %v4869, 16
      %v5057 = vrot.slane %v5055, 1
      %v5058 = vsel %vm2922, %v5053, %v5057
      %v5059 = vshrl.u32 %v4869, 16
      %v5061 = vor.u32 %v5059, %v5057
      %v5063 = vshll.u32 %v4870, 16
      %v5065 = vrot.slane %v5063, 1
      %v5066 = vsel %vm2922, %v5061, %v5065
      %5067 = vrot.lane.b32.xlu0 %v4882, 64
      %v5068 = vpop.permute.xlu0 %5067
      %5069 = vrot.lane.b32.xlu0 %v4890, 64
      %v5070 = vpop.permute.xlu0 %5069
      %5071 = vrot.lane.b32.xlu0 %v4898, 64
      %v5072 = vpop.permute.xlu0 %5071
      %5073 = vrot.lane.b32.xlu0 %v4906, 64
      %v5074 = vpop.permute.xlu0 %5073
      %5075 = vrot.lane.b32.xlu0 %v4914, 64
      %v5076 = vpop.permute.xlu0 %5075
      %5077 = vrot.lane.b32.xlu0 %v4922, 64
      %v5078 = vpop.permute.xlu0 %5077
      %5079 = vrot.lane.b32.xlu0 %v4930, 64
      %v5080 = vpop.permute.xlu0 %5079
      %5081 = vrot.lane.b32.xlu0 %v4938, 64
      %v5082 = vpop.permute.xlu0 %5081
      %5083 = vrot.lane.b32.xlu0 %v4946, 64
      %v5084 = vpop.permute.xlu0 %5083
      %5085 = vrot.lane.b32.xlu0 %v4954, 64
      %v5086 = vpop.permute.xlu0 %5085
      %5087 = vrot.lane.b32.xlu0 %v4962, 64
      %v5088 = vpop.permute.xlu0 %5087
      %5089 = vrot.lane.b32.xlu0 %v4970, 64
      %v5090 = vpop.permute.xlu0 %5089
      %5091 = vrot.lane.b32.xlu0 %v4978, 64
      %v5092 = vpop.permute.xlu0 %5091
      %5093 = vrot.lane.b32.xlu0 %v4986, 64
      %v5094 = vpop.permute.xlu0 %5093
      %5095 = vrot.lane.b32.xlu0 %v4994, 64
      %v5096 = vpop.permute.xlu0 %5095
      %5097 = vrot.lane.b32.xlu0 %v5002, 64
      %v5098 = vpop.permute.xlu0 %5097
      %5099 = vrot.lane.b32.xlu0 %v5010, 64
      %v5100 = vpop.permute.xlu0 %5099
      %5101 = vrot.lane.b32.xlu0 %v5018, 64
      %v5102 = vpop.permute.xlu0 %5101
      %5103 = vrot.lane.b32.xlu0 %v5026, 64
      %v5104 = vpop.permute.xlu0 %5103
      %5105 = vrot.lane.b32.xlu0 %v5034, 64
      %v5106 = vpop.permute.xlu0 %5105
      %5107 = vrot.lane.b32.xlu0 %v5042, 64
      %v5108 = vpop.permute.xlu0 %5107
      %5109 = vrot.lane.b32.xlu0 %v5050, 64
      %v5110 = vpop.permute.xlu0 %5109
      %5111 = vrot.lane.b32.xlu0 %v5058, 64
      %v5112 = vpop.permute.xlu0 %5111
      %5113 = vrot.lane.b32.xlu0 %v5066, 64
      %v5114 = vpop.permute.xlu0 %5113
      %5139 = vst.msk [vmem:[#allocation3 + $0x18] sm:$0xff] %vm3191, %v5068
      %5140 = vst.msk [vmem:[#allocation3 + $0x40] sm:$0xff] %vm3191, %v5070
      %5141 = vst.msk [vmem:[#allocation3 + $0x68] sm:$0xff] %vm3191, %v5072
      %5142 = vst.msk [vmem:[#allocation3 + $0x90] sm:$0xff] %vm3191, %v5074
      %5143 = vst.msk [vmem:[#allocation3 + $0xb8] sm:$0xff] %vm3191, %v5076
      %5144 = vst.msk [vmem:[#allocation3 + $0xe0] sm:$0xff] %vm3191, %v5078
      %5145 = vst.msk [vmem:[#allocation3 + $0x108] sm:$0xff] %vm3191, %v5080
      %5146 = vst.msk [vmem:[#allocation3 + $0x130] sm:$0xff] %vm3191, %v5082
      %5147 = vst.msk [vmem:[#allocation3 + $0x158] sm:$0xff] %vm3191, %v5084
      %5148 = vst.msk [vmem:[#allocation3 + $0x180] sm:$0xff] %vm3191, %v5086
      %5149 = vst.msk [vmem:[#allocation3 + $0x1a8] sm:$0xff] %vm3191, %v5088
      %5150 = vst.msk [vmem:[#allocation3 + $0x1d0] sm:$0xff] %vm3191, %v5090
      %5151 = vst.msk [vmem:[#allocation3 + $0x1f8] sm:$0xff] %vm3191, %v5092
      %5152 = vst.msk [vmem:[#allocation3 + $0x220] sm:$0xff] %vm3191, %v5094
      %5153 = vst.msk [vmem:[#allocation3 + $0x248] sm:$0xff] %vm3191, %v5096
      %5154 = vst.msk [vmem:[#allocation3 + $0x270] sm:$0xff] %vm3191, %v5098
      %5155 = vst.msk [vmem:[#allocation3 + $0x298] sm:$0xff] %vm3191, %v5100
      %5156 = vst.msk [vmem:[#allocation3 + $0x2c0] sm:$0xff] %vm3191, %v5102
      %5157 = vst.msk [vmem:[#allocation3 + $0x2e8] sm:$0xff] %vm3191, %v5104
      %5158 = vst.msk [vmem:[#allocation3 + $0x310] sm:$0xff] %vm3191, %v5106
      %5159 = vst.msk [vmem:[#allocation3 + $0x338] sm:$0xff] %vm3191, %v5108
      %5160 = vst.msk [vmem:[#allocation3 + $0x360] sm:$0xff] %vm3191, %v5110
      %5161 = vst.msk [vmem:[#allocation3 + $0x388] sm:$0xff] %vm3191, %v5112
      %5162 = vst.msk [vmem:[#allocation3 + $0x3b0] sm:$0xff] %vm3191, %v5114
      %v5163 = vld [vmem:[#allocation2 + $0x18] sm:$0xe]
      %v5164 = vld [vmem:[#allocation2 + $0x1c] sm:$0xf]
      %v5165 = vld [vmem:[#allocation2 + $0x20] sm:$0xf]
      %v5166 = vld [vmem:[#allocation2 + $0x24] sm:$0xf]
      %v5167 = vld [vmem:[#allocation2 + $0x28] sm:$0xf]
      %v5168 = vld [vmem:[#allocation2 + $0x2c] sm:$0xf]
      %v5169 = vld [vmem:[#allocation2 + $0x30] sm:$0xf]
      %v5170 = vld [vmem:[#allocation2 + $0x34] sm:$0xf]
      %v5171 = vld [vmem:[#allocation2 + $0x38] sm:$0xf]
      %v5172 = vld [vmem:[#allocation2 + $0x3c] sm:$0xf]
      %v5173 = vld [vmem:[#allocation2 + $0x40] sm:$0xf]
      %v5174 = vld [vmem:[#allocation2 + $0x44] sm:$0xf]
      %v5175 = vld [vmem:[#allocation2 + $0x48] sm:$0xf]
      %v5176 = vld [vmem:[#allocation2 + $0x4c] sm:$0xf]
      %v5177 = vld [vmem:[#allocation2 + $0x50] sm:$0xf]
      %v5178 = vld [vmem:[#allocation2 + $0x54] sm:$0xf]
      %v5179 = vld [vmem:[#allocation2 + $0x58] sm:$0xf]
      %v5180 = vld [vmem:[#allocation2 + $0x5c] sm:$0xf]
      %v5181 = vld [vmem:[#allocation2 + $0x60] sm:$0xf]
      %v5182 = vld [vmem:[#allocation2 + $0x64] sm:$0xf]
      %v5183 = vld [vmem:[#allocation2 + $0x68] sm:$0xf]
      %v5184 = vld [vmem:[#allocation2 + $0x6c] sm:$0xf]
      %v5185 = vld [vmem:[#allocation2 + $0x70] sm:$0xf]
      %v5186 = vld [vmem:[#allocation2 + $0x74] sm:$0xf]
      %v5187 = vld [vmem:[#allocation2 + $0x78] sm:$0xf]
      %v5188 = vld [vmem:[#allocation2 + $0x7c] sm:$0xf]
      %v5189 = vld [vmem:[#allocation2 + $0x80] sm:$0xf]
      %v5190 = vld [vmem:[#allocation2 + $0x84] sm:$0xf]
      %v5191 = vld [vmem:[#allocation2 + $0x88] sm:$0xf]
      %v5192 = vld [vmem:[#allocation2 + $0x8c] sm:$0xf]
      %v5193 = vld [vmem:[#allocation2 + $0x90] sm:$0xf]
      %v5194 = vld [vmem:[#allocation2 + $0x94] sm:$0xf]
      %v5195 = vld [vmem:[#allocation2 + $0x98] sm:$0xf]
      %v5196 = vld [vmem:[#allocation2 + $0x9c] sm:$0xf]
      %v5197 = vld [vmem:[#allocation2 + $0xa0] sm:$0xf]
      %v5198 = vld [vmem:[#allocation2 + $0xa4] sm:$0xf]
      %v5199 = vld [vmem:[#allocation2 + $0xa8] sm:$0xf]
      %v5200 = vld [vmem:[#allocation2 + $0xac] sm:$0xf]
      %v5201 = vld [vmem:[#allocation2 + $0xb0] sm:$0xf]
      %v5202 = vld [vmem:[#allocation2 + $0xb4] sm:$0xf]
      %v5203 = vld [vmem:[#allocation2 + $0xb8] sm:$0xf]
      %v5204 = vld [vmem:[#allocation2 + $0xbc] sm:$0xf]
      %v5205 = vld [vmem:[#allocation2 + $0xc0] sm:$0xf]
      %v5206 = vld [vmem:[#allocation2 + $0xc4] sm:$0xf]
      %v5207 = vld [vmem:[#allocation2 + $0xc8] sm:$0xf]
      %v5208 = vld [vmem:[#allocation2 + $0xcc] sm:$0xf]
      %v5209 = vld [vmem:[#allocation2 + $0xd0] sm:$0xf]
      %v5210 = vld [vmem:[#allocation2 + $0xd4] sm:$0xf]
      %v5211 = vld [vmem:[#allocation2 + $0xd8] sm:$0x1]
      %v5261 = vunpack.c.l.b16 %v5163
      %v5262 = vunpack.c.l.b16 %v5164
      %v5263 = vunpack.c.l.b16 %v5165
      %v5264 = vunpack.c.l.b16 %v5166
      %v5265 = vunpack.c.l.b16 %v5167
      %v5266 = vunpack.c.l.b16 %v5168
      %v5267 = vunpack.c.l.b16 %v5169
      %v5268 = vunpack.c.l.b16 %v5170
      %v5269 = vunpack.c.l.b16 %v5171
      %v5270 = vunpack.c.l.b16 %v5172
      %v5271 = vunpack.c.l.b16 %v5173
      %v5272 = vunpack.c.l.b16 %v5174
      %v5273 = vunpack.c.l.b16 %v5175
      %v5274 = vunpack.c.l.b16 %v5176
      %v5275 = vunpack.c.l.b16 %v5177
      %v5276 = vunpack.c.l.b16 %v5178
      %v5277 = vunpack.c.l.b16 %v5179
      %v5278 = vunpack.c.l.b16 %v5180
      %v5279 = vunpack.c.l.b16 %v5181
      %v5280 = vunpack.c.l.b16 %v5182
      %v5281 = vunpack.c.l.b16 %v5183
      %v5282 = vunpack.c.l.b16 %v5184
      %v5283 = vunpack.c.l.b16 %v5185
      %v5284 = vunpack.c.l.b16 %v5186
      %v5285 = vunpack.c.l.b16 %v5187
      %v5286 = vunpack.c.l.b16 %v5188
      %v5287 = vunpack.c.l.b16 %v5189
      %v5288 = vunpack.c.l.b16 %v5190
      %v5289 = vunpack.c.l.b16 %v5191
      %v5290 = vunpack.c.l.b16 %v5192
      %v5291 = vunpack.c.l.b16 %v5193
      %v5292 = vunpack.c.l.b16 %v5194
      %v5293 = vunpack.c.l.b16 %v5195
      %v5294 = vunpack.c.l.b16 %v5196
      %v5295 = vunpack.c.l.b16 %v5197
      %v5296 = vunpack.c.l.b16 %v5198
      %v5297 = vunpack.c.l.b16 %v5199
      %v5298 = vunpack.c.l.b16 %v5200
      %v5299 = vunpack.c.l.b16 %v5201
      %v5300 = vunpack.c.l.b16 %v5202
      %v5301 = vunpack.c.l.b16 %v5203
      %v5302 = vunpack.c.l.b16 %v5204
      %v5303 = vunpack.c.l.b16 %v5205
      %v5304 = vunpack.c.l.b16 %v5206
      %v5305 = vunpack.c.l.b16 %v5207
      %v5306 = vunpack.c.l.b16 %v5208
      %v5307 = vunpack.c.l.b16 %v5209
      %v5308 = vunpack.c.l.b16 %v5210
      %v5309 = vunpack.c.l.b16 %v5211
      %v5310 = vpack.c.b16 %v5262, %v5261
      %v5311 = vpack.c.b16 %v5264, %v5263
      %v5312 = vpack.c.b16 %v5266, %v5265
      %v5313 = vpack.c.b16 %v5268, %v5267
      %v5314 = vpack.c.b16 %v5270, %v5269
      %v5315 = vpack.c.b16 %v5272, %v5271
      %v5316 = vpack.c.b16 %v5274, %v5273
      %v5317 = vpack.c.b16 %v5276, %v5275
      %v5318 = vpack.c.b16 %v5278, %v5277
      %v5319 = vpack.c.b16 %v5280, %v5279
      %v5320 = vpack.c.b16 %v5282, %v5281
      %v5321 = vpack.c.b16 %v5284, %v5283
      %v5322 = vpack.c.b16 %v5286, %v5285
      %v5323 = vpack.c.b16 %v5288, %v5287
      %v5324 = vpack.c.b16 %v5290, %v5289
      %v5325 = vpack.c.b16 %v5292, %v5291
      %v5326 = vpack.c.b16 %v5294, %v5293
      %v5327 = vpack.c.b16 %v5296, %v5295
      %v5328 = vpack.c.b16 %v5298, %v5297
      %v5329 = vpack.c.b16 %v5300, %v5299
      %v5330 = vpack.c.b16 %v5302, %v5301
      %v5331 = vpack.c.b16 %v5304, %v5303
      %v5332 = vpack.c.b16 %v5306, %v5305
      %v5333 = vpack.c.b16 %v5308, %v5307
      %v5334 = vpack.c.b16 %v5309, %v5309
      %v5335 = vrot.slane %v5310, 1
      %v5336 = vrot.slane %v5311, 1
      %v5337 = vsel %vm3388, %v5335, %v5336
      %v5338 = vrot.slane %v5312, 1
      %v5339 = vsel %vm3388, %v5336, %v5338
      %v5340 = vrot.slane %v5313, 1
      %v5341 = vsel %vm3388, %v5338, %v5340
      %v5342 = vrot.slane %v5314, 1
      %v5343 = vsel %vm3388, %v5340, %v5342
      %v5344 = vrot.slane %v5315, 1
      %v5345 = vsel %vm3388, %v5342, %v5344
      %v5346 = vrot.slane %v5316, 1
      %v5347 = vsel %vm3388, %v5344, %v5346
      %v5348 = vrot.slane %v5317, 1
      %v5349 = vsel %vm3388, %v5346, %v5348
      %v5350 = vrot.slane %v5318, 1
      %v5351 = vsel %vm3388, %v5348, %v5350
      %v5352 = vrot.slane %v5319, 1
      %v5353 = vsel %vm3388, %v5350, %v5352
      %v5354 = vrot.slane %v5320, 1
      %v5355 = vsel %vm3388, %v5352, %v5354
      %v5356 = vrot.slane %v5321, 1
      %v5357 = vsel %vm3388, %v5354, %v5356
      %v5358 = vrot.slane %v5322, 1
      %v5359 = vsel %vm3388, %v5356, %v5358
      %v5360 = vrot.slane %v5323, 1
      %v5361 = vsel %vm3388, %v5358, %v5360
      %v5362 = vrot.slane %v5324, 1
      %v5363 = vsel %vm3388, %v5360, %v5362
      %v5364 = vrot.slane %v5325, 1
      %v5365 = vsel %vm3388, %v5362, %v5364
      %v5366 = vrot.slane %v5326, 1
      %v5367 = vsel %vm3388, %v5364, %v5366
      %v5368 = vrot.slane %v5327, 1
      %v5369 = vsel %vm3388, %v5366, %v5368
      %v5370 = vrot.slane %v5328, 1
      %v5371 = vsel %vm3388, %v5368, %v5370
      %v5372 = vrot.slane %v5329, 1
      %v5373 = vsel %vm3388, %v5370, %v5372
      %v5374 = vrot.slane %v5330, 1
      %v5375 = vsel %vm3388, %v5372, %v5374
      %v5376 = vrot.slane %v5331, 1
      %v5377 = vsel %vm3388, %v5374, %v5376
      %v5378 = vrot.slane %v5332, 1
      %v5379 = vsel %vm3388, %v5376, %v5378
      %v5380 = vrot.slane %v5333, 1
      %v5381 = vsel %vm3388, %v5378, %v5380
      %v5382 = vrot.slane %v5334, 1
      %v5383 = vsel %vm3388, %v5380, %v5382
      %5408 = vst.msk [vmem:[#allocation3 + $0x20] sm:$0xff] %vm2725, %v5337
      %5409 = vst.msk [vmem:[#allocation3 + $0x48] sm:$0xff] %vm2725, %v5339
      %5410 = vst.msk [vmem:[#allocation3 + $0x70] sm:$0xff] %vm2725, %v5341
      %5411 = vst.msk [vmem:[#allocation3 + $0x98] sm:$0xff] %vm2725, %v5343
      %5412 = vst.msk [vmem:[#allocation3 + $0xc0] sm:$0xff] %vm2725, %v5345
      %5413 = vst.msk [vmem:[#allocation3 + $0xe8] sm:$0xff] %vm2725, %v5347
      %5414 = vst.msk [vmem:[#allocation3 + $0x110] sm:$0xff] %vm2725, %v5349
      %5415 = vst.msk [vmem:[#allocation3 + $0x138] sm:$0xff] %vm2725, %v5351
      %5416 = vst.msk [vmem:[#allocation3 + $0x160] sm:$0xff] %vm2725, %v5353
      %5417 = vst.msk [vmem:[#allocation3 + $0x188] sm:$0xff] %vm2725, %v5355
      %5418 = vst.msk [vmem:[#allocation3 + $0x1b0] sm:$0xff] %vm2725, %v5357
      %5419 = vst.msk [vmem:[#allocation3 + $0x1d8] sm:$0xff] %vm2725, %v5359
      %5420 = vst.msk [vmem:[#allocation3 + $0x200] sm:$0xff] %vm2725, %v5361
      %5421 = vst.msk [vmem:[#allocation3 + $0x228] sm:$0xff] %vm2725, %v5363
      %5422 = vst.msk [vmem:[#allocation3 + $0x250] sm:$0xff] %vm2725, %v5365
      %5423 = vst.msk [vmem:[#allocation3 + $0x278] sm:$0xff] %vm2725, %v5367
      %5424 = vst.msk [vmem:[#allocation3 + $0x2a0] sm:$0xff] %vm2725, %v5369
      %5425 = vst.msk [vmem:[#allocation3 + $0x2c8] sm:$0xff] %vm2725, %v5371
      %5426 = vst.msk [vmem:[#allocation3 + $0x2f0] sm:$0xff] %vm2725, %v5373
      %5427 = vst.msk [vmem:[#allocation3 + $0x318] sm:$0xff] %vm2725, %v5375
      %5428 = vst.msk [vmem:[#allocation3 + $0x340] sm:$0xff] %vm2725, %v5377
      %5429 = vst.msk [vmem:[#allocation3 + $0x368] sm:$0xff] %vm2725, %v5379
      %5430 = vst.msk [vmem:[#allocation3 + $0x390] sm:$0xff] %vm2725, %v5381
      %5431 = vst.msk [vmem:[#allocation3 + $0x3b8] sm:$0xff] %vm2725, %v5383
      %v5432 = vld [vmem:[#allocation3] sm:$0xff]
      %v5433 = vld [vmem:[#allocation3 + $0x8] sm:$0xff]
      %v5434 = vld [vmem:[#allocation3 + $0x10] sm:$0xff]
      %v5435 = vld [vmem:[#allocation3 + $0x18] sm:$0xff]
      %v5436 = vld [vmem:[#allocation3 + $0x20] sm:$0xff]
      %v5437 = vld [vmem:[#allocation3 + $0x28] sm:$0xff]
      %v5438 = vld [vmem:[#allocation3 + $0x30] sm:$0xff]
      %v5439 = vld [vmem:[#allocation3 + $0x38] sm:$0xff]
      %v5440 = vld [vmem:[#allocation3 + $0x40] sm:$0xff]
      %v5441 = vld [vmem:[#allocation3 + $0x48] sm:$0xff]
      %v5442 = vld [vmem:[#allocation3 + $0x50] sm:$0xff]
      %v5443 = vld [vmem:[#allocation3 + $0x58] sm:$0xff]
      %v5444 = vld [vmem:[#allocation3 + $0x60] sm:$0xff]
      %v5445 = vld [vmem:[#allocation3 + $0x68] sm:$0xff]
      %v5446 = vld [vmem:[#allocation3 + $0x70] sm:$0xff]
      %v5447 = vld [vmem:[#allocation3 + $0x78] sm:$0xff]
      %v5448 = vld [vmem:[#allocation3 + $0x80] sm:$0xff]
      %v5449 = vld [vmem:[#allocation3 + $0x88] sm:$0xff]
      %v5450 = vld [vmem:[#allocation3 + $0x90] sm:$0xff]
      %v5451 = vld [vmem:[#allocation3 + $0x98] sm:$0xff]
      %v5452 = vld [vmem:[#allocation3 + $0xa0] sm:$0xff]
      %v5453 = vld [vmem:[#allocation3 + $0xa8] sm:$0xff]
      %v5454 = vld [vmem:[#allocation3 + $0xb0] sm:$0xff]
      %v5455 = vld [vmem:[#allocation3 + $0xb8] sm:$0xff]
      %v5456 = vld [vmem:[#allocation3 + $0xc0] sm:$0xff]
      %v5457 = vld [vmem:[#allocation3 + $0xc8] sm:$0xff]
      %v5458 = vld [vmem:[#allocation3 + $0xd0] sm:$0xff]
      %v5459 = vld [vmem:[#allocation3 + $0xd8] sm:$0xff]
      %v5460 = vld [vmem:[#allocation3 + $0xe0] sm:$0xff]
      %v5461 = vld [vmem:[#allocation3 + $0xe8] sm:$0xff]
      %v5462 = vld [vmem:[#allocation3 + $0xf0] sm:$0xff]
      %v5463 = vld [vmem:[#allocation3 + $0xf8] sm:$0xff]
      %v5464 = vld [vmem:[#allocation3 + $0x100] sm:$0xff]
      %v5465 = vld [vmem:[#allocation3 + $0x108] sm:$0xff]
      %v5466 = vld [vmem:[#allocation3 + $0x110] sm:$0xff]
      %v5467 = vld [vmem:[#allocation3 + $0x118] sm:$0xff]
      %v5468 = vld [vmem:[#allocation3 + $0x120] sm:$0xff]
      %v5469 = vld [vmem:[#allocation3 + $0x128] sm:$0xff]
      %v5470 = vld [vmem:[#allocation3 + $0x130] sm:$0xff]
      %v5471 = vld [vmem:[#allocation3 + $0x138] sm:$0xff]
      %v5472 = vld [vmem:[#allocation3 + $0x140] sm:$0xff]
      %v5473 = vld [vmem:[#allocation3 + $0x148] sm:$0xff]
      %v5474 = vld [vmem:[#allocation3 + $0x150] sm:$0xff]
      %v5475 = vld [vmem:[#allocation3 + $0x158] sm:$0xff]
      %v5476 = vld [vmem:[#allocation3 + $0x160] sm:$0xff]
      %v5477 = vld [vmem:[#allocation3 + $0x168] sm:$0xff]
      %v5478 = vld [vmem:[#allocation3 + $0x170] sm:$0xff]
      %v5479 = vld [vmem:[#allocation3 + $0x178] sm:$0xff]
      %v5480 = vld [vmem:[#allocation3 + $0x180] sm:$0xff]
      %v5481 = vld [vmem:[#allocation3 + $0x188] sm:$0xff]
      %v5482 = vld [vmem:[#allocation3 + $0x190] sm:$0xff]
      %v5483 = vld [vmem:[#allocation3 + $0x198] sm:$0xff]
      %v5484 = vld [vmem:[#allocation3 + $0x1a0] sm:$0xff]
      %v5485 = vld [vmem:[#allocation3 + $0x1a8] sm:$0xff]
      %v5486 = vld [vmem:[#allocation3 + $0x1b0] sm:$0xff]
      %v5487 = vld [vmem:[#allocation3 + $0x1b8] sm:$0xff]
      %v5488 = vld [vmem:[#allocation3 + $0x1c0] sm:$0xff]
      %v5489 = vld [vmem:[#allocation3 + $0x1c8] sm:$0xff]
      %v5490 = vld [vmem:[#allocation3 + $0x1d0] sm:$0xff]
      %v5491 = vld [vmem:[#allocation3 + $0x1d8] sm:$0xff]
      %v5492 = vld [vmem:[#allocation3 + $0x1e0] sm:$0xff]
      %v5493 = vld [vmem:[#allocation3 + $0x1e8] sm:$0xff]
      %v5494 = vld [vmem:[#allocation3 + $0x1f0] sm:$0xff]
      %v5495 = vld [vmem:[#allocation3 + $0x1f8] sm:$0xff]
      %v5496 = vld [vmem:[#allocation3 + $0x200] sm:$0xff]
      %v5497 = vld [vmem:[#allocation3 + $0x208] sm:$0xff]
      %v5498 = vld [vmem:[#allocation3 + $0x210] sm:$0xff]
      %v5499 = vld [vmem:[#allocation3 + $0x218] sm:$0xff]
      %v5500 = vld [vmem:[#allocation3 + $0x220] sm:$0xff]
      %v5501 = vld [vmem:[#allocation3 + $0x228] sm:$0xff]
      %v5502 = vld [vmem:[#allocation3 + $0x230] sm:$0xff]
      %v5503 = vld [vmem:[#allocation3 + $0x238] sm:$0xff]
      %v5504 = vld [vmem:[#allocation3 + $0x240] sm:$0xff]
      %v5505 = vld [vmem:[#allocation3 + $0x248] sm:$0xff]
      %v5506 = vld [vmem:[#allocation3 + $0x250] sm:$0xff]
      %v5507 = vld [vmem:[#allocation3 + $0x258] sm:$0xff]
      %v5508 = vld [vmem:[#allocation3 + $0x260] sm:$0xff]
      %v5509 = vld [vmem:[#allocation3 + $0x268] sm:$0xff]
      %v5510 = vld [vmem:[#allocation3 + $0x270] sm:$0xff]
      %v5511 = vld [vmem:[#allocation3 + $0x278] sm:$0xff]
      %v5512 = vld [vmem:[#allocation3 + $0x280] sm:$0xff]
      %v5513 = vld [vmem:[#allocation3 + $0x288] sm:$0xff]
      %v5514 = vld [vmem:[#allocation3 + $0x290] sm:$0xff]
      %v5515 = vld [vmem:[#allocation3 + $0x298] sm:$0xff]
      %v5516 = vld [vmem:[#allocation3 + $0x2a0] sm:$0xff]
      %v5517 = vld [vmem:[#allocation3 + $0x2a8] sm:$0xff]
      %v5518 = vld [vmem:[#allocation3 + $0x2b0] sm:$0xff]
      %v5519 = vld [vmem:[#allocation3 + $0x2b8] sm:$0xff]
      %v5520 = vld [vmem:[#allocation3 + $0x2c0] sm:$0xff]
      %v5521 = vld [vmem:[#allocation3 + $0x2c8] sm:$0xff]
      %v5522 = vld [vmem:[#allocation3 + $0x2d0] sm:$0xff]
      %v5523 = vld [vmem:[#allocation3 + $0x2d8] sm:$0xff]
      %v5524 = vld [vmem:[#allocation3 + $0x2e0] sm:$0xff]
      %v5525 = vld [vmem:[#allocation3 + $0x2e8] sm:$0xff]
      %v5526 = vld [vmem:[#allocation3 + $0x2f0] sm:$0xff]
      %v5527 = vld [vmem:[#allocation3 + $0x2f8] sm:$0xff]
      %v5528 = vld [vmem:[#allocation3 + $0x300] sm:$0xff]
      %v5529 = vld [vmem:[#allocation3 + $0x308] sm:$0xff]
      %v5530 = vld [vmem:[#allocation3 + $0x310] sm:$0xff]
      %v5531 = vld [vmem:[#allocation3 + $0x318] sm:$0xff]
      %v5532 = vld [vmem:[#allocation3 + $0x320] sm:$0xff]
      %v5533 = vld [vmem:[#allocation3 + $0x328] sm:$0xff]
      %v5534 = vld [vmem:[#allocation3 + $0x330] sm:$0xff]
      %v5535 = vld [vmem:[#allocation3 + $0x338] sm:$0xff]
      %v5536 = vld [vmem:[#allocation3 + $0x340] sm:$0xff]
      %v5537 = vld [vmem:[#allocation3 + $0x348] sm:$0xff]
      %v5538 = vld [vmem:[#allocation3 + $0x350] sm:$0xff]
      %v5539 = vld [vmem:[#allocation3 + $0x358] sm:$0xff]
      %v5540 = vld [vmem:[#allocation3 + $0x360] sm:$0xff]
      %v5541 = vld [vmem:[#allocation3 + $0x368] sm:$0xff]
      %v5542 = vld [vmem:[#allocation3 + $0x370] sm:$0xff]
      %v5543 = vld [vmem:[#allocation3 + $0x378] sm:$0xff]
      %v5544 = vld [vmem:[#allocation3 + $0x380] sm:$0xff]
      %v5545 = vld [vmem:[#allocation3 + $0x388] sm:$0xff]
      %v5546 = vld [vmem:[#allocation3 + $0x390] sm:$0xff]
      %v5547 = vld [vmem:[#allocation3 + $0x398] sm:$0xff]
      %v5548 = vld [vmem:[#allocation3 + $0x3a0] sm:$0xff]
      %v5549 = vld [vmem:[#allocation3 + $0x3a8] sm:$0xff]
      %v5550 = vld [vmem:[#allocation3 + $0x3b0] sm:$0xff]
      %v5551 = vld [vmem:[#allocation3 + $0x3b8] sm:$0xff]
      %v5552 = vld [vmem:[%s3] sm:$0xf]
      %v5553 = vld [vmem:[%s3 + $0x4] sm:$0xf]
      %v5554 = vld [vmem:[%s3 + $0x8] sm:$0xf]
      %v5555 = vld [vmem:[%s3 + $0xc] sm:$0xf]
      %v5556 = vld [vmem:[%s3 + $0x10] sm:$0xf]
      %v5557 = vld [vmem:[%s3 + $0x14] sm:$0xf]
      %v5558 = vld [vmem:[%s3 + $0x18] sm:$0xf]
      %v5559 = vld [vmem:[%s3 + $0x1c] sm:$0xf]
      %v5560 = vld [vmem:[%s3 + $0x20] sm:$0xf]
      %v5561 = vld [vmem:[%s3 + $0x24] sm:$0xf]
      %v5562 = vld [vmem:[%s3 + $0x28] sm:$0xf]
      %v5563 = vld [vmem:[%s3 + $0x2c] sm:$0xf]
      %v5564 = vld [vmem:[%s3 + $0x30] sm:$0xf]
      %v5565 = vld [vmem:[%s3 + $0x34] sm:$0xf]
      %v5566 = vld [vmem:[%s3 + $0x38] sm:$0xf]
      %v5567 = vld [vmem:[%s3 + $0x3c] sm:$0xf]
      %v5568 = vld [vmem:[%s3 + $0x40] sm:$0xf]
      %v5569 = vld [vmem:[%s3 + $0x44] sm:$0xf]
      %v5570 = vld [vmem:[%s3 + $0x48] sm:$0xf]
      %v5571 = vld [vmem:[%s3 + $0x4c] sm:$0xf]
      %v5572 = vld [vmem:[%s3 + $0x50] sm:$0xf]
      %v5573 = vld [vmem:[%s3 + $0x54] sm:$0xf]
      %v5574 = vld [vmem:[%s3 + $0x58] sm:$0xf]
      %v5575 = vld [vmem:[%s3 + $0x5c] sm:$0xf]
      %v5576 = vld [vmem:[%s3 + $0x60] sm:$0xf]
      %v5577 = vld [vmem:[%s3 + $0x64] sm:$0xf]
      %v5578 = vld [vmem:[%s3 + $0x68] sm:$0xf]
      %v5579 = vld [vmem:[%s3 + $0x6c] sm:$0xf]
      %v5580 = vld [vmem:[%s3 + $0x70] sm:$0xf]
      %v5581 = vld [vmem:[%s3 + $0x74] sm:$0xf]
      %v5582 = vld [vmem:[%s3 + $0x78] sm:$0xf]
      %v5583 = vld [vmem:[%s3 + $0x7c] sm:$0xf]
      %v5584 = vld [vmem:[%s3 + $0x80] sm:$0xf]
      %v5585 = vld [vmem:[%s3 + $0x84] sm:$0xf]
      %v5586 = vld [vmem:[%s3 + $0x88] sm:$0xf]
      %v5587 = vld [vmem:[%s3 + $0x8c] sm:$0xf]
      %v5588 = vld [vmem:[%s3 + $0x90] sm:$0xf]
      %v5589 = vld [vmem:[%s3 + $0x94] sm:$0xf]
      %v5590 = vld [vmem:[%s3 + $0x98] sm:$0xf]
      %v5591 = vld [vmem:[%s3 + $0x9c] sm:$0xf]
      %v5592 = vld [vmem:[%s3 + $0xa0] sm:$0xf]
      %v5593 = vld [vmem:[%s3 + $0xa4] sm:$0xf]
      %v5594 = vld [vmem:[%s3 + $0xa8] sm:$0xf]
      %v5595 = vld [vmem:[%s3 + $0xac] sm:$0xf]
      %v5596 = vld [vmem:[%s3 + $0xb0] sm:$0xf]
      %v5597 = vld [vmem:[%s3 + $0xb4] sm:$0xf]
      %v5598 = vld [vmem:[%s3 + $0xb8] sm:$0xf]
      %v5599 = vld [vmem:[%s3 + $0xbc] sm:$0xf]
      %v5600 = vld [vmem:[%s3 + $0xc0] sm:$0xf]
      %v5601 = vld [vmem:[%s3 + $0xc4] sm:$0xf]
      %v5602 = vld [vmem:[%s3 + $0xc8] sm:$0xf]
      %v5603 = vld [vmem:[%s3 + $0xcc] sm:$0xf]
      %v5604 = vld [vmem:[%s3 + $0xd0] sm:$0xf]
      %v5605 = vld [vmem:[%s3 + $0xd4] sm:$0xf]
      %v5606 = vld [vmem:[%s3 + $0xd8] sm:$0xf]
      %v5607 = vld [vmem:[%s3 + $0xdc] sm:$0xf]
      %v5608 = vld [vmem:[%s3 + $0xe0] sm:$0xf]
      %v5609 = vld [vmem:[%s3 + $0xe4] sm:$0xf]
      %v5610 = vld [vmem:[%s3 + $0xe8] sm:$0xf]
      %v5611 = vld [vmem:[%s3 + $0xec] sm:$0xf]
      %v5612 = vld [vmem:[%s3 + $0xf0] sm:$0xf]
      %v5613 = vld [vmem:[%s3 + $0xf4] sm:$0xf]
      %v5614 = vld [vmem:[%s3 + $0xf8] sm:$0xf]
      %v5615 = vld [vmem:[%s3 + $0xfc] sm:$0xf]
      %v5616 = vld [vmem:[%s3 + $0x100] sm:$0xf]
      %v5617 = vld [vmem:[%s3 + $0x104] sm:$0xf]
      %v5618 = vld [vmem:[%s3 + $0x108] sm:$0xf]
      %v5619 = vld [vmem:[%s3 + $0x10c] sm:$0xf]
      %v5620 = vld [vmem:[%s3 + $0x110] sm:$0xf]
      %v5621 = vld [vmem:[%s3 + $0x114] sm:$0xf]
      %v5622 = vld [vmem:[%s3 + $0x118] sm:$0xf]
      %v5623 = vld [vmem:[%s3 + $0x11c] sm:$0xf]
      %v5624 = vld [vmem:[%s4] sm:$0x1]
      %v5626 = vlaneseq
      %v5627 = vshrl.u32 %v5626, 7
      %v5628 = vsub.s32 0, %v5627
      %v5629 = vrot.slane %v5624, %v5628
      %v5703 = vunpack.c.l.b16 %v5552
      %v5704 = vunpack.c.l.b16 %v5553
      %v5705 = vunpack.c.l.b16 %v5554
      %v5706 = vunpack.c.l.b16 %v5555
      %v5707 = vunpack.c.l.b16 %v5556
      %v5708 = vunpack.c.l.b16 %v5557
      %v5709 = vunpack.c.l.b16 %v5558
      %v5710 = vunpack.c.l.b16 %v5559
      %v5711 = vunpack.c.l.b16 %v5560
      %v5712 = vunpack.c.l.b16 %v5561
      %v5713 = vunpack.c.l.b16 %v5562
      %v5714 = vunpack.c.l.b16 %v5563
      %v5715 = vunpack.c.l.b16 %v5564
      %v5716 = vunpack.c.l.b16 %v5565
      %v5717 = vunpack.c.l.b16 %v5566
      %v5718 = vunpack.c.l.b16 %v5567
      %v5719 = vunpack.c.l.b16 %v5568
      %v5720 = vunpack.c.l.b16 %v5569
      %v5721 = vunpack.c.l.b16 %v5570
      %v5722 = vunpack.c.l.b16 %v5571
      %v5723 = vunpack.c.l.b16 %v5572
      %v5724 = vunpack.c.l.b16 %v5573
      %v5725 = vunpack.c.l.b16 %v5574
      %v5726 = vunpack.c.l.b16 %v5575
      %v5727 = vunpack.c.l.b16 %v5576
      %v5728 = vunpack.c.l.b16 %v5577
      %v5729 = vunpack.c.l.b16 %v5578
      %v5730 = vunpack.c.l.b16 %v5579
      %v5731 = vunpack.c.l.b16 %v5580
      %v5732 = vunpack.c.l.b16 %v5581
      %v5733 = vunpack.c.l.b16 %v5582
      %v5734 = vunpack.c.l.b16 %v5583
      %v5735 = vunpack.c.l.b16 %v5584
      %v5736 = vunpack.c.l.b16 %v5585
      %v5737 = vunpack.c.l.b16 %v5586
      %v5738 = vunpack.c.l.b16 %v5587
      %v5739 = vunpack.c.l.b16 %v5588
      %v5740 = vunpack.c.l.b16 %v5589
      %v5741 = vunpack.c.l.b16 %v5590
      %v5742 = vunpack.c.l.b16 %v5591
      %v5743 = vunpack.c.l.b16 %v5592
      %v5744 = vunpack.c.l.b16 %v5593
      %v5745 = vunpack.c.l.b16 %v5594
      %v5746 = vunpack.c.l.b16 %v5595
      %v5747 = vunpack.c.l.b16 %v5596
      %v5748 = vunpack.c.l.b16 %v5597
      %v5749 = vunpack.c.l.b16 %v5598
      %v5750 = vunpack.c.l.b16 %v5599
      %v5751 = vunpack.c.l.b16 %v5600
      %v5752 = vunpack.c.l.b16 %v5601
      %v5753 = vunpack.c.l.b16 %v5602
      %v5754 = vunpack.c.l.b16 %v5603
      %v5755 = vunpack.c.l.b16 %v5604
      %v5756 = vunpack.c.l.b16 %v5605
      %v5757 = vunpack.c.l.b16 %v5606
      %v5758 = vunpack.c.l.b16 %v5607
      %v5759 = vunpack.c.l.b16 %v5608
      %v5760 = vunpack.c.l.b16 %v5609
      %v5761 = vunpack.c.l.b16 %v5610
      %v5762 = vunpack.c.l.b16 %v5611
      %v5763 = vunpack.c.l.b16 %v5612
      %v5764 = vunpack.c.l.b16 %v5613
      %v5765 = vunpack.c.l.b16 %v5614
      %v5766 = vunpack.c.l.b16 %v5615
      %v5767 = vunpack.c.l.b16 %v5616
      %v5768 = vunpack.c.l.b16 %v5617
      %v5769 = vunpack.c.l.b16 %v5618
      %v5770 = vunpack.c.l.b16 %v5619
      %v5771 = vunpack.c.l.b16 %v5620
      %v5772 = vunpack.c.l.b16 %v5621
      %v5773 = vunpack.c.l.b16 %v5622
      %v5774 = vunpack.c.l.b16 %v5623
      %v5775 = vpack.c.b16 %v5704, %v5703
      %v5776 = vpack.c.b16 %v5706, %v5705
      %v5777 = vpack.c.b16 %v5708, %v5707
      %v5778 = vpack.c.b16 %v5710, %v5709
      %v5779 = vpack.c.b16 %v5712, %v5711
      %v5780 = vpack.c.b16 %v5714, %v5713
      %v5781 = vpack.c.b16 %v5716, %v5715
      %v5782 = vpack.c.b16 %v5718, %v5717
      %v5783 = vpack.c.b16 %v5720, %v5719
      %v5784 = vpack.c.b16 %v5722, %v5721
      %v5785 = vpack.c.b16 %v5724, %v5723
      %v5786 = vpack.c.b16 %v5726, %v5725
      %v5787 = vpack.c.b16 %v5728, %v5727
      %v5788 = vpack.c.b16 %v5730, %v5729
      %v5789 = vpack.c.b16 %v5732, %v5731
      %v5790 = vpack.c.b16 %v5734, %v5733
      %v5791 = vpack.c.b16 %v5736, %v5735
      %v5792 = vpack.c.b16 %v5738, %v5737
      %v5793 = vpack.c.b16 %v5740, %v5739
      %v5794 = vpack.c.b16 %v5742, %v5741
      %v5795 = vpack.c.b16 %v5744, %v5743
      %v5796 = vpack.c.b16 %v5746, %v5745
      %v5797 = vpack.c.b16 %v5748, %v5747
      %v5798 = vpack.c.b16 %v5750, %v5749
      %v5799 = vpack.c.b16 %v5752, %v5751
      %v5800 = vpack.c.b16 %v5754, %v5753
      %v5801 = vpack.c.b16 %v5756, %v5755
      %v5802 = vpack.c.b16 %v5758, %v5757
      %v5803 = vpack.c.b16 %v5760, %v5759
      %v5804 = vpack.c.b16 %v5762, %v5761
      %v5805 = vpack.c.b16 %v5764, %v5763
      %v5806 = vpack.c.b16 %v5766, %v5765
      %v5807 = vpack.c.b16 %v5768, %v5767
      %v5808 = vpack.c.b16 %v5770, %v5769
      %v5809 = vpack.c.b16 %v5772, %v5771
      %v5810 = vpack.c.b16 %v5774, %v5773
      %v5848 = vsel %vm2725, %v5436, 0
      %v5851 = vsel %vm2725, %v5441, 0
      %v5854 = vsel %vm2725, %v5446, 0
      %v5857 = vsel %vm2725, %v5451, 0
      %v5860 = vsel %vm2725, %v5456, 0
      %v5863 = vsel %vm2725, %v5461, 0
      %v5866 = vsel %vm2725, %v5466, 0
      %v5869 = vsel %vm2725, %v5471, 0
      %v5872 = vsel %vm2725, %v5476, 0
      %v5875 = vsel %vm2725, %v5481, 0
      %v5878 = vsel %vm2725, %v5486, 0
      %v5881 = vsel %vm2725, %v5491, 0
      %v5884 = vsel %vm2725, %v5496, 0
      %v5887 = vsel %vm2725, %v5501, 0
      %v5890 = vsel %vm2725, %v5506, 0
      %v5893 = vsel %vm2725, %v5511, 0
      %v5896 = vsel %vm2725, %v5516, 0
      %v5899 = vsel %vm2725, %v5521, 0
      %v5902 = vsel %vm2725, %v5526, 0
      %v5905 = vsel %vm2725, %v5531, 0
      %v5908 = vsel %vm2725, %v5536, 0
      %v5911 = vsel %vm2725, %v5541, 0
      %v5914 = vsel %vm2725, %v5546, 0
      %v5917 = vsel %vm2725, %v5551, 0
      %5919 = vmatprep.subr.bf16.mxu0 0
      %5920 = vmatpush1.bf16.msra.mxu0 %v5775
      %5921 = vmatprep.subr.bf16.mxu0 0
      %5922 = vmatpush1.bf16.msra.mxu0 %v5776
      %5923 = vmatprep.subr.bf16.mxu0 0
      %5924 = vmatpush1.bf16.msra.mxu0 %v5777
      %5925 = vmatprep.subr.bf16.mxu0 0
      %5926 = vmatpush1.bf16.msra.mxu0 %v5778
      %5927 = vmatprep.subr.bf16.mxu0 0
      %5928 = vmatpush1.bf16.msra.mxu0 %v5779
      %5929 = vmatprep.subr.bf16.mxu0 0
      %5930 = vmatpush1.bf16.msra.mxu0 %v5780
      %5931 = vmatprep.subr.bf16.mxu0 0
      %5932 = vmatpush1.bf16.msra.mxu0 %v5781
      %5933 = vmatprep.subr.bf16.mxu0 0
      %5934 = vmatpush1.bf16.msra.mxu0 %v5782
      %5935 = vmatprep.subr.bf16.mxu0 0
      %5936 = vmatpush1.bf16.msra.mxu0 %v5783
      %5937 = vmatprep.subr.bf16.mxu0 0
      %5938 = vmatpush1.bf16.msra.mxu0 %v5784
      %5939 = vmatprep.subr.bf16.mxu0 0
      %5940 = vmatpush1.bf16.msra.mxu0 %v5785
      %5941 = vmatprep.subr.bf16.mxu0 0
      %5942 = vmatpush1.bf16.msra.mxu0 %v5786
      %5943 = vmatprep.subr.bf16.mxu0 0
      %5944 = vmatpush1.bf16.msra.mxu0 %v5787
      %5945 = vmatprep.subr.bf16.mxu0 0
      %5946 = vmatpush1.bf16.msra.mxu0 %v5788
      %5947 = vmatprep.subr.bf16.mxu0 0
      %5948 = vmatpush1.bf16.msra.mxu0 %v5789
      %5949 = vmatprep.subr.bf16.mxu0 0
      %5950 = vmatpush1.bf16.msra.mxu0 %v5790
      %5951 = vmatprep.mubr.bf16.mxu0 %v5433
      %5952 = vmatmul.mubr.bf16.gmra.mrb[0].mxu0 %v5432
      %v5953 = vpop.f32.mrb[0].mxu0
      %v5954 = vadd.f32 %v5629, %v5953
      %v5955 = vpop.f32.mrb[0].mxu0
      %v5956 = vpop.f32.mrb[0].mxu0
      %v5957 = vadd.f32 %v5629, %v5956
      %v5958 = vpop.f32.mrb[0].mxu0
      %5959 = vmatprep.mubr.bf16.mxu0 %v5438
      %5960 = vmatmul.mubr.bf16.gmra.mrb[0].mxu0 %v5437
      %v5961 = vpop.f32.mrb[0].mxu0
      %v5962 = vadd.f32 %v5629, %v5961
      %v5963 = vpop.f32.mrb[0].mxu0
      %v5964 = vpop.f32.mrb[0].mxu0
      %v5965 = vadd.f32 %v5629, %v5964
      %v5966 = vpop.f32.mrb[0].mxu0
      %5967 = vmatprep.mubr.bf16.mxu0 %v5443
      %5968 = vmatmul.mubr.bf16.gmra.mrb[0].mxu0 %v5442
      %v5969 = vpop.f32.mrb[0].mxu0
      %v5970 = vadd.f32 %v5629, %v5969
      %v5971 = vpop.f32.mrb[0].mxu0
      %v5972 = vpop.f32.mrb[0].mxu0
      %v5973 = vadd.f32 %v5629, %v5972
      %v5974 = vpop.f32.mrb[0].mxu0
      %5975 = vmatprep.mubr.bf16.mxu0 %v5448
      %5976 = vmatmul.mubr.bf16.gmra.mrb[0].mxu0 %v5447
      %v5977 = vpop.f32.mrb[0].mxu0
      %v5978 = vadd.f32 %v5629, %v5977
      %v5979 = vpop.f32.mrb[0].mxu0
      %v5980 = vpop.f32.mrb[0].mxu0
      %v5981 = vadd.f32 %v5629, %v5980
      %v5982 = vpop.f32.mrb[0].mxu0
      %5983 = vmatprep.mubr.bf16.mxu0 %v5453
      %5984 = vmatmul.mubr.bf16.gmra.mrb[0].mxu0 %v5452
      %v5985 = vpop.f32.mrb[0].mxu0
      %v5986 = vadd.f32 %v5629, %v5985
      %v5987 = vpop.f32.mrb[0].mxu0
      %v5988 = vpop.f32.mrb[0].mxu0
      %v5989 = vadd.f32 %v5629, %v5988
      %v5990 = vpop.f32.mrb[0].mxu0
      %5991 = vmatprep.mubr.bf16.mxu0 %v5458
      %5992 = vmatmul.mubr.bf16.gmra.mrb[0].mxu0 %v5457
      %v5993 = vpop.f32.mrb[0].mxu0
      %v5994 = vadd.f32 %v5629, %v5993
      %v5995 = vpop.f32.mrb[0].mxu0
      %v5996 = vpop.f32.mrb[0].mxu0
      %v5997 = vadd.f32 %v5629, %v5996
      %v5998 = vpop.f32.mrb[0].mxu0
      %5999 = vmatprep.mubr.bf16.mxu0 %v5463
      %6000 = vmatmul.mubr.bf16.gmra.mrb[0].mxu0 %v5462
      %v6001 = vpop.f32.mrb[0].mxu0
      %v6002 = vadd.f32 %v5629, %v6001
      %v6003 = vpop.f32.mrb[0].mxu0
      %v6004 = vpop.f32.mrb[0].mxu0
      %v6005 = vadd.f32 %v5629, %v6004
      %v6006 = vpop.f32.mrb[0].mxu0
      %6007 = vmatprep.mubr.bf16.mxu0 %v5468
      %6008 = vmatmul.mubr.bf16.gmra.mrb[0].mxu0 %v5467
      %v6009 = vpop.f32.mrb[0].mxu0
      %v6010 = vadd.f32 %v5629, %v6009
      %v6011 = vpop.f32.mrb[0].mxu0
      %v6012 = vpop.f32.mrb[0].mxu0
      %v6013 = vadd.f32 %v5629, %v6012
      %v6014 = vpop.f32.mrb[0].mxu0
      %6015 = vmatprep.mubr.bf16.mxu0 %v5473
      %6016 = vmatmul.mubr.bf16.gmra.mrb[0].mxu0 %v5472
      %v6017 = vpop.f32.mrb[0].mxu0
      %v6018 = vadd.f32 %v5629, %v6017
      %v6019 = vpop.f32.mrb[0].mxu0
      %v6020 = vpop.f32.mrb[0].mxu0
      %v6021 = vadd.f32 %v5629, %v6020
      %v6022 = vpop.f32.mrb[0].mxu0
      %6023 = vmatprep.mubr.bf16.mxu0 %v5478
      %6024 = vmatmul.mubr.bf16.gmra.mrb[0].mxu0 %v5477
      %v6025 = vpop.f32.mrb[0].mxu0
      %v6026 = vadd.f32 %v5629, %v6025
      %v6027 = vpop.f32.mrb[0].mxu0
      %v6028 = vpop.f32.mrb[0].mxu0
      %v6029 = vadd.f32 %v5629, %v6028
      %v6030 = vpop.f32.mrb[0].mxu0
      %6031 = vmatprep.mubr.bf16.mxu0 %v5483
      %6032 = vmatmul.mubr.bf16.gmra.mrb[0].mxu0 %v5482
      %v6033 = vpop.f32.mrb[0].mxu0
      %v6034 = vadd.f32 %v5629, %v6033
      %v6035 = vpop.f32.mrb[0].mxu0
      %v6036 = vpop.f32.mrb[0].mxu0
      %v6037 = vadd.f32 %v5629, %v6036
      %v6038 = vpop.f32.mrb[0].mxu0
      %6039 = vmatprep.mubr.bf16.mxu0 %v5488
      %6040 = vmatmul.mubr.bf16.gmra.mrb[0].mxu0 %v5487
      %v6041 = vpop.f32.mrb[0].mxu0
      %v6042 = vadd.f32 %v5629, %v6041
      %v6043 = vpop.f32.mrb[0].mxu0
      %v6044 = vpop.f32.mrb[0].mxu0
      %v6045 = vadd.f32 %v5629, %v6044
      %v6046 = vpop.f32.mrb[0].mxu0
      %6047 = vmatprep.mubr.bf16.mxu0 %v5493
      %6048 = vmatmul.mubr.bf16.gmra.mrb[0].mxu0 %v5492
      %v6049 = vpop.f32.mrb[0].mxu0
      %v6050 = vadd.f32 %v5629, %v6049
      %v6051 = vpop.f32.mrb[0].mxu0
      %v6052 = vpop.f32.mrb[0].mxu0
      %v6053 = vadd.f32 %v5629, %v6052
      %v6054 = vpop.f32.mrb[0].mxu0
      %6055 = vmatprep.mubr.bf16.mxu0 %v5498
      %6056 = vmatmul.mubr.bf16.gmra.mrb[0].mxu0 %v5497
      %v6057 = vpop.f32.mrb[0].mxu0
      %v6058 = vadd.f32 %v5629, %v6057
      %v6059 = vpop.f32.mrb[0].mxu0
      %v6060 = vpop.f32.mrb[0].mxu0
      %v6061 = vadd.f32 %v5629, %v6060
      %v6062 = vpop.f32.mrb[0].mxu0
      %6063 = vmatprep.mubr.bf16.mxu0 %v5503
      %6064 = vmatmul.mubr.bf16.gmra.mrb[0].mxu0 %v5502
      %v6065 = vpop.f32.mrb[0].mxu0
      %v6066 = vadd.f32 %v5629, %v6065
      %v6067 = vpop.f32.mrb[0].mxu0
      %v6068 = vpop.f32.mrb[0].mxu0
      %v6069 = vadd.f32 %v5629, %v6068
      %v6070 = vpop.f32.mrb[0].mxu0
      %6071 = vmatprep.mubr.bf16.mxu0 %v5508
      %6072 = vmatmul.mubr.bf16.gmra.mrb[0].mxu0 %v5507
      %v6073 = vpop.f32.mrb[0].mxu0
      %v6074 = vadd.f32 %v5629, %v6073
      %v6075 = vpop.f32.mrb[0].mxu0
      %v6076 = vpop.f32.mrb[0].mxu0
      %v6077 = vadd.f32 %v5629, %v6076
      %v6078 = vpop.f32.mrb[0].mxu0
      %6079 = vmatprep.mubr.bf16.mxu0 %v5513
      %6080 = vmatmul.mubr.bf16.gmra.mrb[0].mxu0 %v5512
      %v6081 = vpop.f32.mrb[0].mxu0
      %v6082 = vadd.f32 %v5629, %v6081
      %v6083 = vpop.f32.mrb[0].mxu0
      %v6084 = vpop.f32.mrb[0].mxu0
      %v6085 = vadd.f32 %v5629, %v6084
      %v6086 = vpop.f32.mrb[0].mxu0
      %6087 = vmatprep.mubr.bf16.mxu0 %v5518
      %6088 = vmatmul.mubr.bf16.gmra.mrb[0].mxu0 %v5517
      %v6089 = vpop.f32.mrb[0].mxu0
      %v6090 = vadd.f32 %v5629, %v6089
      %v6091 = vpop.f32.mrb[0].mxu0
      %v6092 = vpop.f32.mrb[0].mxu0
      %v6093 = vadd.f32 %v5629, %v6092
      %v6094 = vpop.f32.mrb[0].mxu0
      %6095 = vmatprep.mubr.bf16.mxu0 %v5523
      %6096 = vmatmul.mubr.bf16.gmra.mrb[0].mxu0 %v5522
      %v6097 = vpop.f32.mrb[0].mxu0
      %v6098 = vadd.f32 %v5629, %v6097
      %v6099 = vpop.f32.mrb[0].mxu0
      %v6100 = vpop.f32.mrb[0].mxu0
      %v6101 = vadd.f32 %v5629, %v6100
      %v6102 = vpop.f32.mrb[0].mxu0
      %6103 = vmatprep.mubr.bf16.mxu0 %v5528
      %6104 = vmatmul.mubr.bf16.gmra.mrb[0].mxu0 %v5527
      %v6105 = vpop.f32.mrb[0].mxu0
      %v6106 = vadd.f32 %v5629, %v6105
      %v6107 = vpop.f32.mrb[0].mxu0
      %v6108 = vpop.f32.mrb[0].mxu0
      %v6109 = vadd.f32 %v5629, %v6108
      %v6110 = vpop.f32.mrb[0].mxu0
      %6111 = vmatprep.mubr.bf16.mxu0 %v5533
      %6112 = vmatmul.mubr.bf16.gmra.mrb[0].mxu0 %v5532
      %v6113 = vpop.f32.mrb[0].mxu0
      %v6114 = vadd.f32 %v5629, %v6113
      %v6115 = vpop.f32.mrb[0].mxu0
      %v6116 = vpop.f32.mrb[0].mxu0
      %v6117 = vadd.f32 %v5629, %v6116
      %v6118 = vpop.f32.mrb[0].mxu0
      %6119 = vmatprep.mubr.bf16.mxu0 %v5538
      %6120 = vmatmul.mubr.bf16.gmra.mrb[0].mxu0 %v5537
      %v6121 = vpop.f32.mrb[0].mxu0
      %v6122 = vadd.f32 %v5629, %v6121
      %v6123 = vpop.f32.mrb[0].mxu0
      %v6124 = vpop.f32.mrb[0].mxu0
      %v6125 = vadd.f32 %v5629, %v6124
      %v6126 = vpop.f32.mrb[0].mxu0
      %6127 = vmatprep.mubr.bf16.mxu0 %v5543
      %6128 = vmatmul.mubr.bf16.gmra.mrb[0].mxu0 %v5542
      %v6129 = vpop.f32.mrb[0].mxu0
      %v6130 = vadd.f32 %v5629, %v6129
      %v6131 = vpop.f32.mrb[0].mxu0
      %v6132 = vpop.f32.mrb[0].mxu0
      %v6133 = vadd.f32 %v5629, %v6132
      %v6134 = vpop.f32.mrb[0].mxu0
      %6135 = vmatprep.mubr.bf16.mxu0 %v5548
      %6136 = vmatmul.mubr.bf16.gmra.mrb[0].mxu0 %v5547
      %v6137 = vpop.f32.mrb[0].mxu0
      %v6138 = vadd.f32 %v5629, %v6137
      %v6139 = vpop.f32.mrb[0].mxu0
      %v6140 = vpop.f32.mrb[0].mxu0
      %v6141 = vadd.f32 %v5629, %v6140
      %v6142 = vpop.f32.mrb[0].mxu0
      %6143 = vdwg.mxu0
      %6144 = vmatprep.subr.bf16.mxu0 0
      %6145 = vmatpush1.bf16.msra.mxu0 %v5791
      %6146 = vmatprep.subr.bf16.mxu0 0
      %6147 = vmatpush1.bf16.msra.mxu0 %v5792
      %6148 = vmatprep.subr.bf16.mxu0 0
      %6149 = vmatpush1.bf16.msra.mxu0 %v5793
      %6150 = vmatprep.subr.bf16.mxu0 0
      %6151 = vmatpush1.bf16.msra.mxu0 %v5794
      %6152 = vmatprep.subr.bf16.mxu0 0
      %6153 = vmatpush1.bf16.msra.mxu0 %v5795
      %6154 = vmatprep.subr.bf16.mxu0 0
      %6155 = vmatpush1.bf16.msra.mxu0 %v5796
      %6156 = vmatprep.subr.bf16.mxu0 0
      %6157 = vmatpush1.bf16.msra.mxu0 %v5797
      %6158 = vmatprep.subr.bf16.mxu0 0
      %6159 = vmatpush1.bf16.msra.mxu0 %v5798
      %6160 = vmatprep.subr.bf16.mxu0 0
      %6161 = vmatpush1.bf16.msra.mxu0 %v5799
      %6162 = vmatprep.subr.bf16.mxu0 0
      %6163 = vmatpush1.bf16.msra.mxu0 %v5800
      %6164 = vmatprep.subr.bf16.mxu0 0
      %6165 = vmatpush1.bf16.msra.mxu0 %v5801
      %6166 = vmatprep.subr.bf16.mxu0 0
      %6167 = vmatpush1.bf16.msra.mxu0 %v5802
      %6168 = vmatprep.subr.bf16.mxu0 0
      %6169 = vmatpush1.bf16.msra.mxu0 %v5803
      %6170 = vmatprep.subr.bf16.mxu0 0
      %6171 = vmatpush1.bf16.msra.mxu0 %v5804
      %6172 = vmatprep.subr.bf16.mxu0 0
      %6173 = vmatpush1.bf16.msra.mxu0 %v5805
      %6174 = vmatprep.subr.bf16.mxu0 0
      %6175 = vmatpush1.bf16.msra.mxu0 %v5806
      %6176 = vmatprep.mubr.bf16.mxu0 %v5435
      %6177 = vmatmul.mubr.bf16.gmra.mrb[0].mxu0 %v5434
      %v6178 = vpop.f32.mrb[0].mxu0
      %v6179 = vadd.f32 %v5954, %v6178
      %v6180 = vpop.f32.mrb[0].mxu0
      %v6181 = vpop.f32.mrb[0].mxu0
      %v6182 = vadd.f32 %v5957, %v6181
      %v6183 = vpop.f32.mrb[0].mxu0
      %6184 = vmatprep.mubr.bf16.mxu0 %v5440
      %6185 = vmatmul.mubr.bf16.gmra.mrb[0].mxu0 %v5439
      %v6186 = vpop.f32.mrb[0].mxu0
      %v6187 = vadd.f32 %v5962, %v6186
      %v6188 = vpop.f32.mrb[0].mxu0
      %v6189 = vpop.f32.mrb[0].mxu0
      %v6190 = vadd.f32 %v5965, %v6189
      %v6191 = vpop.f32.mrb[0].mxu0
      %6192 = vmatprep.mubr.bf16.mxu0 %v5445
      %6193 = vmatmul.mubr.bf16.gmra.mrb[0].mxu0 %v5444
      %v6194 = vpop.f32.mrb[0].mxu0
      %v6195 = vadd.f32 %v5970, %v6194
      %v6196 = vpop.f32.mrb[0].mxu0
      %v6197 = vpop.f32.mrb[0].mxu0
      %v6198 = vadd.f32 %v5973, %v6197
      %v6199 = vpop.f32.mrb[0].mxu0
      %6200 = vmatprep.mubr.bf16.mxu0 %v5450
      %6201 = vmatmul.mubr.bf16.gmra.mrb[0].mxu0 %v5449
      %v6202 = vpop.f32.mrb[0].mxu0
      %v6203 = vadd.f32 %v5978, %v6202
      %v6204 = vpop.f32.mrb[0].mxu0
      %v6205 = vpop.f32.mrb[0].mxu0
      %v6206 = vadd.f32 %v5981, %v6205
      %v6207 = vpop.f32.mrb[0].mxu0
      %6208 = vmatprep.mubr.bf16.mxu0 %v5455
      %6209 = vmatmul.mubr.bf16.gmra.mrb[0].mxu0 %v5454
      %v6210 = vpop.f32.mrb[0].mxu0
      %v6211 = vadd.f32 %v5986, %v6210
      %v6212 = vpop.f32.mrb[0].mxu0
      %v6213 = vpop.f32.mrb[0].mxu0
      %v6214 = vadd.f32 %v5989, %v6213
      %v6215 = vpop.f32.mrb[0].mxu0
      %6216 = vmatprep.mubr.bf16.mxu0 %v5460
      %6217 = vmatmul.mubr.bf16.gmra.mrb[0].mxu0 %v5459
      %v6218 = vpop.f32.mrb[0].mxu0
      %v6219 = vadd.f32 %v5994, %v6218
      %v6220 = vpop.f32.mrb[0].mxu0
      %v6221 = vpop.f32.mrb[0].mxu0
      %v6222 = vadd.f32 %v5997, %v6221
      %v6223 = vpop.f32.mrb[0].mxu0
      %6224 = vmatprep.mubr.bf16.mxu0 %v5465
      %6225 = vmatmul.mubr.bf16.gmra.mrb[0].mxu0 %v5464
      %v6226 = vpop.f32.mrb[0].mxu0
      %v6227 = vadd.f32 %v6002, %v6226
      %v6228 = vpop.f32.mrb[0].mxu0
      %v6229 = vpop.f32.mrb[0].mxu0
      %v6230 = vadd.f32 %v6005, %v6229
      %v6231 = vpop.f32.mrb[0].mxu0
      %6232 = vmatprep.mubr.bf16.mxu0 %v5470
      %6233 = vmatmul.mubr.bf16.gmra.mrb[0].mxu0 %v5469
      %v6234 = vpop.f32.mrb[0].mxu0
      %v6235 = vadd.f32 %v6010, %v6234
      %v6236 = vpop.f32.mrb[0].mxu0
      %v6237 = vpop.f32.mrb[0].mxu0
      %v6238 = vadd.f32 %v6013, %v6237
      %v6239 = vpop.f32.mrb[0].mxu0
      %6240 = vmatprep.mubr.bf16.mxu0 %v5475
      %6241 = vmatmul.mubr.bf16.gmra.mrb[0].mxu0 %v5474
      %v6242 = vpop.f32.mrb[0].mxu0
      %v6243 = vadd.f32 %v6018, %v6242
      %v6244 = vpop.f32.mrb[0].mxu0
      %v6245 = vpop.f32.mrb[0].mxu0
      %v6246 = vadd.f32 %v6021, %v6245
      %v6247 = vpop.f32.mrb[0].mxu0
      %6248 = vmatprep.mubr.bf16.mxu0 %v5480
      %6249 = vmatmul.mubr.bf16.gmra.mrb[0].mxu0 %v5479
      %v6250 = vpop.f32.mrb[0].mxu0
      %v6251 = vadd.f32 %v6026, %v6250
      %v6252 = vpop.f32.mrb[0].mxu0
      %v6253 = vpop.f32.mrb[0].mxu0
      %v6254 = vadd.f32 %v6029, %v6253
      %v6255 = vpop.f32.mrb[0].mxu0
      %6256 = vmatprep.mubr.bf16.mxu0 %v5485
      %6257 = vmatmul.mubr.bf16.gmra.mrb[0].mxu0 %v5484
      %v6258 = vpop.f32.mrb[0].mxu0
      %v6259 = vadd.f32 %v6034, %v6258
      %v6260 = vpop.f32.mrb[0].mxu0
      %v6261 = vpop.f32.mrb[0].mxu0
      %v6262 = vadd.f32 %v6037, %v6261
      %v6263 = vpop.f32.mrb[0].mxu0
      %6264 = vmatprep.mubr.bf16.mxu0 %v5490
      %6265 = vmatmul.mubr.bf16.gmra.mrb[0].mxu0 %v5489
      %v6266 = vpop.f32.mrb[0].mxu0
      %v6267 = vadd.f32 %v6042, %v6266
      %v6268 = vpop.f32.mrb[0].mxu0
      %v6269 = vpop.f32.mrb[0].mxu0
      %v6270 = vadd.f32 %v6045, %v6269
      %v6271 = vpop.f32.mrb[0].mxu0
      %6272 = vmatprep.mubr.bf16.mxu0 %v5495
      %6273 = vmatmul.mubr.bf16.gmra.mrb[0].mxu0 %v5494
      %v6274 = vpop.f32.mrb[0].mxu0
      %v6275 = vadd.f32 %v6050, %v6274
      %v6276 = vpop.f32.mrb[0].mxu0
      %v6277 = vpop.f32.mrb[0].mxu0
      %v6278 = vadd.f32 %v6053, %v6277
      %v6279 = vpop.f32.mrb[0].mxu0
      %6280 = vmatprep.mubr.bf16.mxu0 %v5500
      %6281 = vmatmul.mubr.bf16.gmra.mrb[0].mxu0 %v5499
      %v6282 = vpop.f32.mrb[0].mxu0
      %v6283 = vadd.f32 %v6058, %v6282
      %v6284 = vpop.f32.mrb[0].mxu0
      %v6285 = vpop.f32.mrb[0].mxu0
      %v6286 = vadd.f32 %v6061, %v6285
      %v6287 = vpop.f32.mrb[0].mxu0
      %6288 = vmatprep.mubr.bf16.mxu0 %v5505
      %6289 = vmatmul.mubr.bf16.gmra.mrb[0].mxu0 %v5504
      %v6290 = vpop.f32.mrb[0].mxu0
      %v6291 = vadd.f32 %v6066, %v6290
      %v6292 = vpop.f32.mrb[0].mxu0
      %v6293 = vpop.f32.mrb[0].mxu0
      %v6294 = vadd.f32 %v6069, %v6293
      %v6295 = vpop.f32.mrb[0].mxu0
      %6296 = vmatprep.mubr.bf16.mxu0 %v5510
      %6297 = vmatmul.mubr.bf16.gmra.mrb[0].mxu0 %v5509
      %v6298 = vpop.f32.mrb[0].mxu0
      %v6299 = vadd.f32 %v6074, %v6298
      %v6300 = vpop.f32.mrb[0].mxu0
      %v6301 = vpop.f32.mrb[0].mxu0
      %v6302 = vadd.f32 %v6077, %v6301
      %v6303 = vpop.f32.mrb[0].mxu0
      %6304 = vmatprep.mubr.bf16.mxu0 %v5515
      %6305 = vmatmul.mubr.bf16.gmra.mrb[0].mxu0 %v5514
      %v6306 = vpop.f32.mrb[0].mxu0
      %v6307 = vadd.f32 %v6082, %v6306
      %v6308 = vpop.f32.mrb[0].mxu0
      %v6309 = vpop.f32.mrb[0].mxu0
      %v6310 = vadd.f32 %v6085, %v6309
      %v6311 = vpop.f32.mrb[0].mxu0
      %6312 = vmatprep.mubr.bf16.mxu0 %v5520
      %6313 = vmatmul.mubr.bf16.gmra.mrb[0].mxu0 %v5519
      %v6314 = vpop.f32.mrb[0].mxu0
      %v6315 = vadd.f32 %v6090, %v6314
      %v6316 = vpop.f32.mrb[0].mxu0
      %v6317 = vpop.f32.mrb[0].mxu0
      %v6318 = vadd.f32 %v6093, %v6317
      %v6319 = vpop.f32.mrb[0].mxu0
      %6320 = vmatprep.mubr.bf16.mxu0 %v5525
      %6321 = vmatmul.mubr.bf16.gmra.mrb[0].mxu0 %v5524
      %v6322 = vpop.f32.mrb[0].mxu0
      %v6323 = vadd.f32 %v6098, %v6322
      %v6324 = vpop.f32.mrb[0].mxu0
      %v6325 = vpop.f32.mrb[0].mxu0
      %v6326 = vadd.f32 %v6101, %v6325
      %v6327 = vpop.f32.mrb[0].mxu0
      %6328 = vmatprep.mubr.bf16.mxu0 %v5530
      %6329 = vmatmul.mubr.bf16.gmra.mrb[0].mxu0 %v5529
      %v6330 = vpop.f32.mrb[0].mxu0
      %v6331 = vadd.f32 %v6106, %v6330
      %v6332 = vpop.f32.mrb[0].mxu0
      %v6333 = vpop.f32.mrb[0].mxu0
      %v6334 = vadd.f32 %v6109, %v6333
      %v6335 = vpop.f32.mrb[0].mxu0
      %6336 = vmatprep.mubr.bf16.mxu0 %v5535
      %6337 = vmatmul.mubr.bf16.gmra.mrb[0].mxu0 %v5534
      %v6338 = vpop.f32.mrb[0].mxu0
      %v6339 = vadd.f32 %v6114, %v6338
      %v6340 = vpop.f32.mrb[0].mxu0
      %v6341 = vpop.f32.mrb[0].mxu0
      %v6342 = vadd.f32 %v6117, %v6341
      %v6343 = vpop.f32.mrb[0].mxu0
      %6344 = vmatprep.mubr.bf16.mxu0 %v5540
      %6345 = vmatmul.mubr.bf16.gmra.mrb[0].mxu0 %v5539
      %v6346 = vpop.f32.mrb[0].mxu0
      %v6347 = vadd.f32 %v6122, %v6346
      %v6348 = vpop.f32.mrb[0].mxu0
      %v6349 = vpop.f32.mrb[0].mxu0
      %v6350 = vadd.f32 %v6125, %v6349
      %v6351 = vpop.f32.mrb[0].mxu0
      %6352 = vmatprep.mubr.bf16.mxu0 %v5545
      %6353 = vmatmul.mubr.bf16.gmra.mrb[0].mxu0 %v5544
      %v6354 = vpop.f32.mrb[0].mxu0
      %v6355 = vadd.f32 %v6130, %v6354
      %v6356 = vpop.f32.mrb[0].mxu0
      %v6357 = vpop.f32.mrb[0].mxu0
      %v6358 = vadd.f32 %v6133, %v6357
      %v6359 = vpop.f32.mrb[0].mxu0
      %6360 = vmatprep.mubr.bf16.mxu0 %v5550
      %6361 = vmatmul.mubr.bf16.gmra.mrb[0].mxu0 %v5549
      %v6362 = vpop.f32.mrb[0].mxu0
      %v6363 = vadd.f32 %v6138, %v6362
      %v6364 = vpop.f32.mrb[0].mxu0
      %v6365 = vpop.f32.mrb[0].mxu0
      %v6366 = vadd.f32 %v6141, %v6365
      %v6367 = vpop.f32.mrb[0].mxu0
      %6368 = vdwg.mxu0
      %6369 = vmatprep.subr.bf16.mxu0 0
      %6370 = vmatpush1.bf16.msra.mxu0 %v5807
      %6371 = vmatprep.subr.bf16.mxu0 0
      %6372 = vmatpush1.bf16.msra.mxu0 %v5808
      %6373 = vmatprep.subr.bf16.mxu0 0
      %6374 = vmatpush1.bf16.msra.mxu0 %v5809
      %6375 = vmatprep.subr.bf16.mxu0 0
      %6376 = vmatpush1.bf16.msra.mxu0 %v5810
      %6377 = vmatprep.subr.bf16.mxu0 0
      %6378 = vmatpush1.bf16.msra.mxu0 0
      %6379 = vmatprep.subr.bf16.mxu0 0
      %6380 = vmatpush1.bf16.msra.mxu0 0
      %6381 = vmatprep.subr.bf16.mxu0 0
      %6382 = vmatpush1.bf16.msra.mxu0 0
      %6383 = vmatprep.subr.bf16.mxu0 0
      %6384 = vmatpush1.bf16.msra.mxu0 0
      %6385 = vmatprep.subr.bf16.mxu0 0
      %6386 = vmatpush1.bf16.msra.mxu0 0
      %6387 = vmatprep.subr.bf16.mxu0 0
      %6388 = vmatpush1.bf16.msra.mxu0 0
      %6389 = vmatprep.subr.bf16.mxu0 0
      %6390 = vmatpush1.bf16.msra.mxu0 0
      %6391 = vmatprep.subr.bf16.mxu0 0
      %6392 = vmatpush1.bf16.msra.mxu0 0
      %6393 = vmatprep.subr.bf16.mxu0 0
      %6394 = vmatpush1.bf16.msra.mxu0 0
      %6395 = vmatprep.subr.bf16.mxu0 0
      %6396 = vmatpush1.bf16.msra.mxu0 0
      %6397 = vmatprep.subr.bf16.mxu0 0
      %6398 = vmatpush1.bf16.msra.mxu0 0
      %6399 = vmatprep.subr.bf16.mxu0 0
      %6400 = vmatpush1.bf16.msra.mxu0 0
      %6401 = vmatprep.mubr.bf16.mxu0 0
      %6402 = vmatmul.mubr.bf16.gmra.mrb[0].mxu0 %v5848
      %v6403 = vpop.f32.mrb[0].mxu0
      %v6404 = vadd.f32 %v6179, %v6403
      %v6405 = vpop.f32.mrb[0].mxu0
      %v6406 = vpop.f32.mrb[0].mxu0
      %v6407 = vadd.f32 %v6182, %v6406
      %v6408 = vpop.f32.mrb[0].mxu0
      %6409 = vmatprep.mubr.bf16.mxu0 0
      %6410 = vmatmul.mubr.bf16.gmra.mrb[0].mxu0 %v5851
      %v6411 = vpop.f32.mrb[0].mxu0
      %v6412 = vadd.f32 %v6187, %v6411
      %v6413 = vpop.f32.mrb[0].mxu0
      %v6414 = vpop.f32.mrb[0].mxu0
      %v6415 = vadd.f32 %v6190, %v6414
      %v6416 = vpop.f32.mrb[0].mxu0
      %6417 = vmatprep.mubr.bf16.mxu0 0
      %6418 = vmatmul.mubr.bf16.gmra.mrb[0].mxu0 %v5854
      %v6419 = vpop.f32.mrb[0].mxu0
      %v6420 = vadd.f32 %v6195, %v6419
      %v6421 = vpop.f32.mrb[0].mxu0
      %v6422 = vpop.f32.mrb[0].mxu0
      %v6423 = vadd.f32 %v6198, %v6422
      %v6424 = vpop.f32.mrb[0].mxu0
      %6425 = vmatprep.mubr.bf16.mxu0 0
      %6426 = vmatmul.mubr.bf16.gmra.mrb[0].mxu0 %v5857
      %v6427 = vpop.f32.mrb[0].mxu0
      %v6428 = vadd.f32 %v6203, %v6427
      %v6429 = vpop.f32.mrb[0].mxu0
      %v6430 = vpop.f32.mrb[0].mxu0
      %v6431 = vadd.f32 %v6206, %v6430
      %v6432 = vpop.f32.mrb[0].mxu0
      %6433 = vmatprep.mubr.bf16.mxu0 0
      %6434 = vmatmul.mubr.bf16.gmra.mrb[0].mxu0 %v5860
      %v6435 = vpop.f32.mrb[0].mxu0
      %v6436 = vadd.f32 %v6211, %v6435
      %v6437 = vpop.f32.mrb[0].mxu0
      %v6438 = vpop.f32.mrb[0].mxu0
      %v6439 = vadd.f32 %v6214, %v6438
      %v6440 = vpop.f32.mrb[0].mxu0
      %6441 = vmatprep.mubr.bf16.mxu0 0
      %6442 = vmatmul.mubr.bf16.gmra.mrb[0].mxu0 %v5863
      %v6443 = vpop.f32.mrb[0].mxu0
      %v6444 = vadd.f32 %v6219, %v6443
      %v6445 = vpop.f32.mrb[0].mxu0
      %v6446 = vpop.f32.mrb[0].mxu0
      %v6447 = vadd.f32 %v6222, %v6446
      %v6448 = vpop.f32.mrb[0].mxu0
      %6449 = vmatprep.mubr.bf16.mxu0 0
      %6450 = vmatmul.mubr.bf16.gmra.mrb[0].mxu0 %v5866
      %v6451 = vpop.f32.mrb[0].mxu0
      %v6452 = vadd.f32 %v6227, %v6451
      %v6453 = vpop.f32.mrb[0].mxu0
      %v6454 = vpop.f32.mrb[0].mxu0
      %v6455 = vadd.f32 %v6230, %v6454
      %v6456 = vpop.f32.mrb[0].mxu0
      %6457 = vmatprep.mubr.bf16.mxu0 0
      %6458 = vmatmul.mubr.bf16.gmra.mrb[0].mxu0 %v5869
      %v6459 = vpop.f32.mrb[0].mxu0
      %v6460 = vadd.f32 %v6235, %v6459
      %v6461 = vpop.f32.mrb[0].mxu0
      %v6462 = vpop.f32.mrb[0].mxu0
      %v6463 = vadd.f32 %v6238, %v6462
      %v6464 = vpop.f32.mrb[0].mxu0
      %6465 = vmatprep.mubr.bf16.mxu0 0
      %6466 = vmatmul.mubr.bf16.gmra.mrb[0].mxu0 %v5872
      %v6467 = vpop.f32.mrb[0].mxu0
      %v6468 = vadd.f32 %v6243, %v6467
      %v6469 = vpop.f32.mrb[0].mxu0
      %v6470 = vpop.f32.mrb[0].mxu0
      %v6471 = vadd.f32 %v6246, %v6470
      %v6472 = vpop.f32.mrb[0].mxu0
      %6473 = vmatprep.mubr.bf16.mxu0 0
      %6474 = vmatmul.mubr.bf16.gmra.mrb[0].mxu0 %v5875
      %v6475 = vpop.f32.mrb[0].mxu0
      %v6476 = vadd.f32 %v6251, %v6475
      %v6477 = vpop.f32.mrb[0].mxu0
      %v6478 = vpop.f32.mrb[0].mxu0
      %v6479 = vadd.f32 %v6254, %v6478
      %v6480 = vpop.f32.mrb[0].mxu0
      %6481 = vmatprep.mubr.bf16.mxu0 0
      %6482 = vmatmul.mubr.bf16.gmra.mrb[0].mxu0 %v5878
      %v6483 = vpop.f32.mrb[0].mxu0
      %v6484 = vadd.f32 %v6259, %v6483
      %v6485 = vpop.f32.mrb[0].mxu0
      %v6486 = vpop.f32.mrb[0].mxu0
      %v6487 = vadd.f32 %v6262, %v6486
      %v6488 = vpop.f32.mrb[0].mxu0
      %6489 = vmatprep.mubr.bf16.mxu0 0
      %6490 = vmatmul.mubr.bf16.gmra.mrb[0].mxu0 %v5881
      %v6491 = vpop.f32.mrb[0].mxu0
      %v6492 = vadd.f32 %v6267, %v6491
      %v6493 = vpop.f32.mrb[0].mxu0
      %v6494 = vpop.f32.mrb[0].mxu0
      %v6495 = vadd.f32 %v6270, %v6494
      %v6496 = vpop.f32.mrb[0].mxu0
      %6497 = vmatprep.mubr.bf16.mxu0 0
      %6498 = vmatmul.mubr.bf16.gmra.mrb[0].mxu0 %v5884
      %v6499 = vpop.f32.mrb[0].mxu0
      %v6500 = vadd.f32 %v6275, %v6499
      %v6501 = vpop.f32.mrb[0].mxu0
      %v6502 = vpop.f32.mrb[0].mxu0
      %v6503 = vadd.f32 %v6278, %v6502
      %v6504 = vpop.f32.mrb[0].mxu0
      %6505 = vmatprep.mubr.bf16.mxu0 0
      %6506 = vmatmul.mubr.bf16.gmra.mrb[0].mxu0 %v5887
      %v6507 = vpop.f32.mrb[0].mxu0
      %v6508 = vadd.f32 %v6283, %v6507
      %v6509 = vpop.f32.mrb[0].mxu0
      %v6510 = vpop.f32.mrb[0].mxu0
      %v6511 = vadd.f32 %v6286, %v6510
      %v6512 = vpop.f32.mrb[0].mxu0
      %6513 = vmatprep.mubr.bf16.mxu0 0
      %6514 = vmatmul.mubr.bf16.gmra.mrb[0].mxu0 %v5890
      %v6515 = vpop.f32.mrb[0].mxu0
      %v6516 = vadd.f32 %v6291, %v6515
      %v6517 = vpop.f32.mrb[0].mxu0
      %v6518 = vpop.f32.mrb[0].mxu0
      %v6519 = vadd.f32 %v6294, %v6518
      %v6520 = vpop.f32.mrb[0].mxu0
      %6521 = vmatprep.mubr.bf16.mxu0 0
      %6522 = vmatmul.mubr.bf16.gmra.mrb[0].mxu0 %v5893
      %v6523 = vpop.f32.mrb[0].mxu0
      %v6524 = vadd.f32 %v6299, %v6523
      %v6525 = vpop.f32.mrb[0].mxu0
      %v6526 = vpop.f32.mrb[0].mxu0
      %v6527 = vadd.f32 %v6302, %v6526
      %v6528 = vpop.f32.mrb[0].mxu0
      %6529 = vmatprep.mubr.bf16.mxu0 0
      %6530 = vmatmul.mubr.bf16.gmra.mrb[0].mxu0 %v5896
      %v6531 = vpop.f32.mrb[0].mxu0
      %v6532 = vadd.f32 %v6307, %v6531
      %v6533 = vpop.f32.mrb[0].mxu0
      %v6534 = vpop.f32.mrb[0].mxu0
      %v6535 = vadd.f32 %v6310, %v6534
      %v6536 = vpop.f32.mrb[0].mxu0
      %6537 = vmatprep.mubr.bf16.mxu0 0
      %6538 = vmatmul.mubr.bf16.gmra.mrb[0].mxu0 %v5899
      %v6539 = vpop.f32.mrb[0].mxu0
      %v6540 = vadd.f32 %v6315, %v6539
      %v6541 = vpop.f32.mrb[0].mxu0
      %v6542 = vpop.f32.mrb[0].mxu0
      %v6543 = vadd.f32 %v6318, %v6542
      %v6544 = vpop.f32.mrb[0].mxu0
      %6545 = vmatprep.mubr.bf16.mxu0 0
      %6546 = vmatmul.mubr.bf16.gmra.mrb[0].mxu0 %v5902
      %v6547 = vpop.f32.mrb[0].mxu0
      %v6548 = vadd.f32 %v6323, %v6547
      %v6549 = vpop.f32.mrb[0].mxu0
      %v6550 = vpop.f32.mrb[0].mxu0
      %v6551 = vadd.f32 %v6326, %v6550
      %v6552 = vpop.f32.mrb[0].mxu0
      %6553 = vmatprep.mubr.bf16.mxu0 0
      %6554 = vmatmul.mubr.bf16.gmra.mrb[0].mxu0 %v5905
      %v6555 = vpop.f32.mrb[0].mxu0
      %v6556 = vadd.f32 %v6331, %v6555
      %v6557 = vpop.f32.mrb[0].mxu0
      %v6558 = vpop.f32.mrb[0].mxu0
      %v6559 = vadd.f32 %v6334, %v6558
      %v6560 = vpop.f32.mrb[0].mxu0
      %6561 = vmatprep.mubr.bf16.mxu0 0
      %6562 = vmatmul.mubr.bf16.gmra.mrb[0].mxu0 %v5908
      %v6563 = vpop.f32.mrb[0].mxu0
      %v6564 = vadd.f32 %v6339, %v6563
      %v6565 = vpop.f32.mrb[0].mxu0
      %v6566 = vpop.f32.mrb[0].mxu0
      %v6567 = vadd.f32 %v6342, %v6566
      %v6568 = vpop.f32.mrb[0].mxu0
      %6569 = vmatprep.mubr.bf16.mxu0 0
      %6570 = vmatmul.mubr.bf16.gmra.mrb[0].mxu0 %v5911
      %v6571 = vpop.f32.mrb[0].mxu0
      %v6572 = vadd.f32 %v6347, %v6571
      %v6573 = vpop.f32.mrb[0].mxu0
      %v6574 = vpop.f32.mrb[0].mxu0
      %v6575 = vadd.f32 %v6350, %v6574
      %v6576 = vpop.f32.mrb[0].mxu0
      %6577 = vmatprep.mubr.bf16.mxu0 0
      %6578 = vmatmul.mubr.bf16.gmra.mrb[0].mxu0 %v5914
      %v6579 = vpop.f32.mrb[0].mxu0
      %v6580 = vadd.f32 %v6355, %v6579
      %v6581 = vpop.f32.mrb[0].mxu0
      %v6582 = vpop.f32.mrb[0].mxu0
      %v6583 = vadd.f32 %v6358, %v6582
      %v6584 = vpop.f32.mrb[0].mxu0
      %6585 = vmatprep.mubr.bf16.mxu0 0
      %6586 = vmatmul.mubr.bf16.gmra.mrb[0].mxu0 %v5917
      %v6587 = vpop.f32.mrb[0].mxu0
      %v6588 = vadd.f32 %v6363, %v6587
      %v6589 = vpop.f32.mrb[0].mxu0
      %v6590 = vpop.f32.mrb[0].mxu0
      %v6591 = vadd.f32 %v6366, %v6590
      %v6592 = vpop.f32.mrb[0].mxu0
      %6593 = vdwg.mxu0
      %v6594 = vmax.f32 %v6404, 0.0
      %v6595 = vmax.f32 %v6407, 0.0
      %v6596 = vmax.f32 %v6412, 0.0
      %v6597 = vmax.f32 %v6415, 0.0
      %v6598 = vmax.f32 %v6420, 0.0
      %v6599 = vmax.f32 %v6423, 0.0
      %v6600 = vmax.f32 %v6428, 0.0
      %v6601 = vmax.f32 %v6431, 0.0
      %v6602 = vmax.f32 %v6436, 0.0
      %v6603 = vmax.f32 %v6439, 0.0
      %v6604 = vmax.f32 %v6444, 0.0
      %v6605 = vmax.f32 %v6447, 0.0
      %v6606 = vmax.f32 %v6452, 0.0
      %v6607 = vmax.f32 %v6455, 0.0
      %v6608 = vmax.f32 %v6460, 0.0
      %v6609 = vmax.f32 %v6463, 0.0
      %v6610 = vmax.f32 %v6468, 0.0
      %v6611 = vmax.f32 %v6471, 0.0
      %v6612 = vmax.f32 %v6476, 0.0
      %v6613 = vmax.f32 %v6479, 0.0
      %v6614 = vmax.f32 %v6484, 0.0
      %v6615 = vmax.f32 %v6487, 0.0
      %v6616 = vmax.f32 %v6492, 0.0
      %v6617 = vmax.f32 %v6495, 0.0
      %v6618 = vmax.f32 %v6500, 0.0
      %v6619 = vmax.f32 %v6503, 0.0
      %v6620 = vmax.f32 %v6508, 0.0
      %v6621 = vmax.f32 %v6511, 0.0
      %v6622 = vmax.f32 %v6516, 0.0
      %v6623 = vmax.f32 %v6519, 0.0
      %v6624 = vmax.f32 %v6524, 0.0
      %v6625 = vmax.f32 %v6527, 0.0
      %v6626 = vmax.f32 %v6532, 0.0
      %v6627 = vmax.f32 %v6535, 0.0
      %v6628 = vmax.f32 %v6540, 0.0
      %v6629 = vmax.f32 %v6543, 0.0
      %v6630 = vmax.f32 %v6548, 0.0
      %v6631 = vmax.f32 %v6551, 0.0
      %v6632 = vmax.f32 %v6556, 0.0
      %v6633 = vmax.f32 %v6559, 0.0
      %v6634 = vmax.f32 %v6564, 0.0
      %v6635 = vmax.f32 %v6567, 0.0
      %v6636 = vmax.f32 %v6572, 0.0
      %v6637 = vmax.f32 %v6575, 0.0
      %v6638 = vmax.f32 %v6580, 0.0
      %v6639 = vmax.f32 %v6583, 0.0
      %v6640 = vmax.f32 %v6588, 0.0
      %v6641 = vmax.f32 %v6591, 0.0
      %v6642 = vld [vmem:[%s5] sm:$0x3]
      %v6643 = vpack.c.bf16 %v6595, %v6594
      %v6644 = vpack.c.bf16 %v6597, %v6596
      %v6645 = vpack.c.bf16 %v6599, %v6598
      %v6646 = vpack.c.bf16 %v6601, %v6600
      %v6647 = vpack.c.bf16 %v6603, %v6602
      %v6648 = vpack.c.bf16 %v6605, %v6604
      %v6649 = vpack.c.bf16 %v6607, %v6606
      %v6650 = vpack.c.bf16 %v6609, %v6608
      %v6651 = vpack.c.bf16 %v6611, %v6610
      %v6652 = vpack.c.bf16 %v6613, %v6612
      %v6653 = vpack.c.bf16 %v6615, %v6614
      %v6654 = vpack.c.bf16 %v6617, %v6616
      %v6655 = vpack.c.bf16 %v6619, %v6618
      %v6656 = vpack.c.bf16 %v6621, %v6620
      %v6657 = vpack.c.bf16 %v6623, %v6622
      %v6658 = vpack.c.bf16 %v6625, %v6624
      %v6659 = vpack.c.bf16 %v6627, %v6626
      %v6660 = vpack.c.bf16 %v6629, %v6628
      %v6661 = vpack.c.bf16 %v6631, %v6630
      %v6662 = vpack.c.bf16 %v6633, %v6632
      %v6663 = vpack.c.bf16 %v6635, %v6634
      %v6664 = vpack.c.bf16 %v6637, %v6636
      %v6665 = vpack.c.bf16 %v6639, %v6638
      %v6666 = vpack.c.bf16 %v6641, %v6640
      %v6667 = vld [vmem:[%s6] sm:$0x7]
      %6669 = vset.pattern.permute.xlu0 0
      %6670 = vperm.xlu0 %6669, %v6667
      %v6671 = vpop.permute.xlu0 %6670
      %v6674 = vsel %vm2725, %v6642, 0
      %v6677 = vsel %vm2725, %v6643, 0
      %v6680 = vsel %vm2725, %v6644, 0
      %v6683 = vsel %vm2725, %v6645, 0
      %v6686 = vsel %vm2725, %v6646, 0
      %v6689 = vsel %vm2725, %v6647, 0
      %v6692 = vsel %vm2725, %v6648, 0
      %v6695 = vsel %vm2725, %v6649, 0
      %v6698 = vsel %vm2725, %v6650, 0
      %v6701 = vsel %vm2725, %v6651, 0
      %v6704 = vsel %vm2725, %v6652, 0
      %v6707 = vsel %vm2725, %v6653, 0
      %v6710 = vsel %vm2725, %v6654, 0
      %v6713 = vsel %vm2725, %v6655, 0
      %v6716 = vsel %vm2725, %v6656, 0
      %v6719 = vsel %vm2725, %v6657, 0
      %v6722 = vsel %vm2725, %v6658, 0
      %v6725 = vsel %vm2725, %v6659, 0
      %v6728 = vsel %vm2725, %v6660, 0
      %v6731 = vsel %vm2725, %v6661, 0
      %v6734 = vsel %vm2725, %v6662, 0
      %v6737 = vsel %vm2725, %v6663, 0
      %v6740 = vsel %vm2725, %v6664, 0
      %v6743 = vsel %vm2725, %v6665, 0
      %v6746 = vsel %vm2725, %v6666, 0
      %6748 = vmatprep.subr.bf16.mxu0 0
      %6749 = vmatpush1.bf16.xpose.msra.mxu0 %v6677
      %6750 = vmatprep.subr.bf16.mxu0 0
      %6751 = vmatpush1.bf16.xpose.msra.mxu0 %v6680
      %6752 = vmatprep.subr.bf16.mxu0 0
      %6753 = vmatpush1.bf16.xpose.msra.mxu0 %v6683
      %6754 = vmatprep.subr.bf16.mxu0 0
      %6755 = vmatpush1.bf16.xpose.msra.mxu0 %v6686
      %6756 = vmatprep.subr.bf16.mxu0 0
      %6757 = vmatpush1.bf16.xpose.msra.mxu0 %v6689
      %6758 = vmatprep.subr.bf16.mxu0 0
      %6759 = vmatpush1.bf16.xpose.msra.mxu0 %v6692
      %6760 = vmatprep.subr.bf16.mxu0 0
      %6761 = vmatpush1.bf16.xpose.msra.mxu0 %v6695
      %6762 = vmatprep.subr.bf16.mxu0 0
      %6763 = vmatpush1.bf16.xpose.msra.mxu0 %v6698
      %6764 = vmatprep.subr.bf16.mxu0 0
      %6765 = vmatpush1.bf16.xpose.msra.mxu0 %v6701
      %6766 = vmatprep.subr.bf16.mxu0 0
      %6767 = vmatpush1.bf16.xpose.msra.mxu0 %v6704
      %6768 = vmatprep.subr.bf16.mxu0 0
      %6769 = vmatpush1.bf16.xpose.msra.mxu0 %v6707
      %6770 = vmatprep.subr.bf16.mxu0 0
      %6771 = vmatpush1.bf16.xpose.msra.mxu0 %v6710
      %6772 = vmatprep.subr.bf16.mxu0 0
      %6773 = vmatpush1.bf16.xpose.msra.mxu0 %v6713
      %6774 = vmatprep.subr.bf16.mxu0 0
      %6775 = vmatpush1.bf16.xpose.msra.mxu0 %v6716
      %6776 = vmatprep.subr.bf16.mxu0 0
      %6777 = vmatpush1.bf16.xpose.msra.mxu0 %v6719
      %6778 = vmatprep.subr.bf16.mxu0 0
      %6779 = vmatpush1.bf16.xpose.msra.mxu0 %v6722
      %6780 = vmatprep.mubr.bf16.mxu0 0
      %6781 = vmatmul.mubr.bf16.gmra.mrb[0].mxu0 %v6674
      %v6782 = vpop.f32.mrb[0].mxu0
      %v6783 = vadd.f32 %v6671, %v6782
      %v6784 = vpop.f32.mrb[0].mxu0
      %v6785 = vadd.f32 %v6671, %v6784
      %v6786 = vpop.f32.mrb[0].mxu0
      %v6787 = vpop.f32.mrb[0].mxu0
      %6788 = vdwg.mxu0
      %6789 = vmatprep.subr.bf16.mxu0 0
      %6790 = vmatpush1.bf16.xpose.msra.mxu0 %v6725
      %6791 = vmatprep.subr.bf16.mxu0 0
      %6792 = vmatpush1.bf16.xpose.msra.mxu0 %v6728
      %6793 = vmatprep.subr.bf16.mxu0 0
      %6794 = vmatpush1.bf16.xpose.msra.mxu0 %v6731
      %6795 = vmatprep.subr.bf16.mxu0 0
      %6796 = vmatpush1.bf16.xpose.msra.mxu0 %v6734
      %6797 = vmatprep.subr.bf16.mxu0 0
      %6798 = vmatpush1.bf16.xpose.msra.mxu0 %v6737
      %6799 = vmatprep.subr.bf16.mxu0 0
      %6800 = vmatpush1.bf16.xpose.msra.mxu0 %v6740
      %6801 = vmatprep.subr.bf16.mxu0 0
      %6802 = vmatpush1.bf16.xpose.msra.mxu0 %v6743
      %6803 = vmatprep.subr.bf16.mxu0 0
      %6804 = vmatpush1.bf16.xpose.msra.mxu0 %v6746
      %6805 = vmatprep.subr.bf16.mxu0 0
      %6806 = vmatpush1.bf16.xpose.msra.mxu0 0
      %6807 = vmatprep.subr.bf16.mxu0 0
      %6808 = vmatpush1.bf16.xpose.msra.mxu0 0
      %6809 = vmatprep.subr.bf16.mxu0 0
      %6810 = vmatpush1.bf16.xpose.msra.mxu0 0
      %6811 = vmatprep.subr.bf16.mxu0 0
      %6812 = vmatpush1.bf16.xpose.msra.mxu0 0
      %6813 = vmatprep.subr.bf16.mxu0 0
      %6814 = vmatpush1.bf16.xpose.msra.mxu0 0
      %6815 = vmatprep.subr.bf16.mxu0 0
      %6816 = vmatpush1.bf16.xpose.msra.mxu0 0
      %6817 = vmatprep.subr.bf16.mxu0 0
      %6818 = vmatpush1.bf16.xpose.msra.mxu0 0
      %6819 = vmatprep.subr.bf16.mxu0 0
      %6820 = vmatpush1.bf16.xpose.msra.mxu0 0
      %6821 = vmatprep.mubr.bf16.mxu0 0
      %6822 = vmatmul.mubr.bf16.gmra.mrb[0].mxu0 %v6674
      %v6823 = vpop.f32.mrb[0].mxu0
      %v6824 = vadd.f32 %v6671, %v6823
      %v6825 = vpop.f32.mrb[0].mxu0
      %v6826 = vpop.f32.mrb[0].mxu0
      %v6827 = vpop.f32.mrb[0].mxu0
      %6828 = vdwg.mxu0
      %v6831 = vcombine.low %v6783, %v6785
      %6833 = vst [vmem:[%s278] sm:$0x77] %v6831
      %6834 = vst [vmem:[%s278 + $0x8] sm:$0x7] %v6824
      %p6835 = scmp.lt.s32.totalorder %s18, 1
      %s6836 = scalar_select %p6835, %s18, 1
      %s6837 = smul.addr %s6836, 3
      %s6838 = smul.addr %s6837, 4
      %s6839 = scalar_lea.vmem %s7, %s6838
      // Predicated region
      $region49: #{unet_forward_impl.1} parent=47 // pred_check
        %p6840 = pneg %p188
      $region50: #{unet_forward_impl.1} parent=47 // pred_check_branch
        %6842 = sbr.rel (%p6840) target = $region52
      $region51: #{unet_forward_impl.1} parent=47 // pred_region
        _
      $region52: #{unet_forward_impl.1} parent=47 // pred_fallthru
        _
    $region48: #{unet_forward_impl.1} parent=5 // pred_fallthru
      _
    %p6843 = scmp.le.s32.totalorder 2, %s13
    // Predicated region
    $region53: #{unet_forward_impl.1} parent=5 // pred_check
      %p6844 = pneg %p6843
    $region54: #{unet_forward_impl.1} parent=5 // pred_check_branch
      %6846 = sbr.rel (%p6844) target = $region56
    $region55: #{unet_forward_impl.1} parent=5 // pred_region
      %s6847 = ssub.s32 %s13, 2
      // Predicated region
      $region57: #{unet_forward_impl.1} parent=55 // pred_check
        %p6848 = pneg %p194
      $region58: #{unet_forward_impl.1} parent=55 // pred_check_branch
        %6850 = sbr.rel (%p6848) target = $region60
      $region59: #{unet_forward_impl.1} parent=55 // pred_region
        %p6851 = scmp.lt.s32.totalorder %s19, 1
        %s6852 = scalar_select %p6851, %s19, 1
        %s6853 = smul.addr %s6852, 3
        %s6854 = smul.addr %s6853, 4
        %s6855 = scalar_lea.vmem %s7, %s6854
      $region60: #{unet_forward_impl.1} parent=55 // pred_fallthru
        _
    $region56: #{unet_forward_impl.1} parent=5 // pred_fallthru
      _
  $region6: #{unet_forward_impl.1} parent=0 // loop_footer
    %s17 = sadd.s32 1, %s13
  $region7: #{unet_forward_impl.1} parent=0 // loop_footer_branch
    %12 = sbr.rel target = $region3
  $region8: #{unet_forward_impl.1} parent=0 // loop_exit
    _

</llo_original>
